<compile_context>
chip_gen: v5e
topology: v5e:2x2
jax: 0.10.0
libtpu: 0.0.40
codegen_flags: <defaults>
</compile_context>

<pallas_src>
import functools

import jax
import jax.numpy as jnp
from jax import lax
from jax.experimental import pallas as pl
from jax.experimental.pallas import tpu as pltpu

AMBIENT = 0.4
DIFFUSE = 0.6
LIGHT_DIR = (0.30151134, 0.30151134, 0.90453404)  # normalized (1, 1, 3)/|.|
FOCAL = 1.0
EPS = 1e-6


def _pick_tile(total, target, align):
    """Largest divisor of `total` <= target that is a multiple of `align`;
    falls back to the full extent (always a legal block size)."""
    if total <= target:
        return total
    t = (target // align) * align
    while t >= align:
        if total % t == 0:
            return t
        t -= align
    return total


# --------------------------------------------------------------------------- #
# Kernel 1: normals + lighting + camera transform / projection
# --------------------------------------------------------------------------- #
def _point_prep_kernel(R_ref, T_ref, azim_ref, elev_ref, colors_ref, points_ref,
                       act_ref, normals_ref, proj_ref, colors4_ref):
    b = pl.program_id(0)

    azim = azim_ref[...]                       # (1, N)
    elev = elev_ref[...]                       # (1, N)
    cos_e = jnp.cos(elev)
    nx = cos_e * jnp.sin(azim)                 # (1, N)
    ny = jnp.sin(elev)
    nz = cos_e * jnp.cos(azim)

    # normals are batch-invariant: write (per-row, no sublane concat) only once.
    @pl.when(b == 0)
    def _():
        normals_ref[0:1, :] = nx
        normals_ref[1:2, :] = ny
        normals_ref[2:3, :] = nz

    # LightingTexture(specular=False): ambient + diffuse directional light.
    ldx, ldy, ldz = LIGHT_DIR
    ndotl = jnp.maximum(nx * ldx + ny * ldy + nz * ldz, 0.0)        # (1, N)
    shade = AMBIENT + DIFFUSE * ndotl                               # (1, N)

    # Camera transform p_cam = R @ p_world + T (R, T scalars from SMEM).
    x = points_ref[0:1, :]
    y = points_ref[1:2, :]
    z = points_ref[2:3, :]
    cx = R_ref[b, 0] * x + R_ref[b, 1] * y + R_ref[b, 2] * z + T_ref[b, 0]
    cy = R_ref[b, 3] * x + R_ref[b, 4] * y + R_ref[b, 5] * z + T_ref[b, 1]
    cz = R_ref[b, 6] * x + R_ref[b, 7] * y + R_ref[b, 8] * z + T_ref[b, 2]

    safe_z = jnp.where(cz > EPS, cz, 1.0)
    inv_z = FOCAL / safe_z
    proj_ref[0, 0:1, :] = cx * inv_z           # px
    proj_ref[0, 1:2, :] = cy * inv_z           # py

    # Fold lighting, per-camera validity and the wsum "ones" column into one
    # coordinate-major (4, N) operand: [lit_r, lit_g, lit_b, 1] * valid.
    valid = jnp.where(cz > EPS, 1.0, 0.0) * act_ref[...]            # (1, N)
    lit_scale = shade * valid
    colors4_ref[0, 0:1, :] = colors_ref[0:1, :] * lit_scale
    colors4_ref[0, 1:2, :] = colors_ref[1:2, :] * lit_scale
    colors4_ref[0, 2:3, :] = colors_ref[2:3, :] * lit_scale
    colors4_ref[0, 3:4, :] = valid


def point_prep(azim, elev, colors_3n, points_3n, activation, R_flat, T):
    B = R_flat.shape[0]
    N = points_3n.shape[1]
    return pl.pallas_call(
        _point_prep_kernel,
        out_shape=(
            jax.ShapeDtypeStruct((3, N), jnp.float32),      # normals
            jax.ShapeDtypeStruct((B, 2, N), jnp.float32),   # (px, py)
            jax.ShapeDtypeStruct((B, 4, N), jnp.float32),   # lit rgb * valid, valid
        ),
        grid=(B,),
        in_specs=[
            pl.BlockSpec(memory_space=pltpu.MemorySpace.SMEM),      # R (B, 9)
            pl.BlockSpec(memory_space=pltpu.MemorySpace.SMEM),      # T (B, 3)
            pl.BlockSpec((1, N), lambda b: (0, 0)),                 # azim
            pl.BlockSpec((1, N), lambda b: (0, 0)),                 # elev
            pl.BlockSpec((3, N), lambda b: (0, 0)),                 # colors
            pl.BlockSpec((3, N), lambda b: (0, 0)),                 # points
            pl.BlockSpec((1, N), lambda b: (0, 0)),                 # activation
        ],
        out_specs=(
            pl.BlockSpec((3, N), lambda b: (0, 0)),                 # revisited
            pl.BlockSpec((1, 2, N), lambda b: (b, 0, 0)),
            pl.BlockSpec((1, 4, N), lambda b: (b, 0, 0)),
        ),
        compiler_params=pltpu.CompilerParams(
            dimension_semantics=("arbitrary",)),   # normals block revisited
    )(R_flat, T, azim, elev, colors_3n, points_3n, activation)


# --------------------------------------------------------------------------- #
# Kernel 2: tiled soft Gaussian splatting renderer -> RGBA image
# --------------------------------------------------------------------------- #
def _make_splat_kernel(H, W, tile_hw):
    u_scale = 2.0 / W
    v_scale = 2.0 / H

    def kernel(inv2s2_ref, proj_ref, colors4_ref, rgba_ref, acc_ref):
        k = pl.program_id(2)

        @pl.when(k == 0)
        def _():
            acc_ref[...] = jnp.zeros_like(acc_ref)

        inv2s2 = inv2s2_ref[0, 0]
        px = proj_ref[0, 0:1, :]                       # (1, tile_n)
        py = proj_ref[0, 1:2, :]

        # Pixel NDC coordinates generated in-kernel (no (HW,1) inputs / DMA).
        pix = (pl.program_id(1) * tile_hw
               + lax.broadcasted_iota(jnp.int32, (tile_hw, 1), 0))   # (tile_hw,1)
        row = lax.div(pix, jnp.int32(W))
        col = pix - row * W
        u = (col.astype(jnp.float32) + 0.5) * u_scale - 1.0
        v = (row.astype(jnp.float32) + 0.5) * v_scale - 1.0

        du = u - px                                    # (tile_hw, tile_n)
        dv = v - py
        # TODO(synk): du/dv/exp can run in bf16 on v6e/v7x for ~2x VPU/EUP
        # throughput; kept f32 here so the kernel is safe/accurate on v5e too.
        w = jnp.exp(-(du * du + dv * dv) * inv2s2)
        wb = w.astype(jnp.bfloat16)
        c4 = colors4_ref[0].astype(jnp.bfloat16)       # (4, tile_n)

        # One bf16 MXU matmul reduces over points and yields [r, g, b, wsum]
        # (wsum fused via the ones column; validity already folded into c4).
        acc_ref[...] += lax.dot_general(
            wb, c4, dimension_numbers=(((1,), (1,)), ((), ())),
            preferred_element_type=jnp.float32)        # (tile_hw, 4)

        @pl.when(k == pl.num_programs(2) - 1)
        def _():
            wsum = acc_ref[:, 3:4]
            inv_wsum = pl.reciprocal(wsum + EPS, approx=True)
            rgba_ref[0, :, 0:3] = acc_ref[:, 0:3] * inv_wsum
            rgba_ref[0, :, 3:4] = jnp.clip(wsum, 0.0, 1.0)

    return kernel


def splat(inv2s2, proj, colors4, H, W, *, tile_hw_target=1024, tile_n_target=1024):
    B, _, N = proj.shape
    HW = H * W
    # ~3-4 live f32 (tile_hw, tile_n) temporaries -> ~16-20 MiB at 1024x1024;
    # fits v7x's 64 MiB physical VMEM with headroom, trivially fits v5e/v6e.
    tile_hw = _pick_tile(HW, tile_hw_target, 8)
    tile_n = _pick_tile(N, tile_n_target, 128)
    grid = (B, HW // tile_hw, N // tile_n)

    rgba = pl.pallas_call(
        _make_splat_kernel(H, W, tile_hw),
        out_shape=jax.ShapeDtypeStruct((B, HW, 4), jnp.float32),
        grid=grid,
        in_specs=[
            pl.BlockSpec(memory_space=pltpu.MemorySpace.SMEM),         # inv2s2 (1,1)
            pl.BlockSpec((1, 2, tile_n), lambda b, j, k: (b, 0, k)),   # px / py
            pl.BlockSpec((1, 4, tile_n), lambda b, j, k: (b, 0, k)),   # lit rgb + 1
        ],
        out_specs=pl.BlockSpec((1, tile_hw, 4), lambda b, j, k: (b, j, 0)),
        scratch_shapes=[pltpu.VMEM((tile_hw, 4), jnp.float32)],        # rgb + wsum
        compiler_params=pltpu.CompilerParams(
            dimension_semantics=("parallel", "parallel", "arbitrary"),
            vmem_limit_bytes=48 * 1024 * 1024),
    )(inv2s2, proj, colors4)
    return rgba.reshape(B, H, W, 4)


# --------------------------------------------------------------------------- #
# Model (parameter setup + forward glue)
# --------------------------------------------------------------------------- #
def vectors_to_angles(nx, ny, nz):
    norm = jnp.sqrt(nx * nx + ny * ny + nz * nz) + 1e-12
    elev = jnp.arcsin(jnp.clip(ny / norm, -1.0, 1.0))
    azim = jnp.arctan2(nx, nz)
    return azim, elev


class PointModel:
    def __init__(self, points, normals, colors,
                 point_scale_range=(0.5, 1.5), sigma=0.08):
        # points, normals, colors : (1, N, 3) float32
        self.points = points
        nx, ny, nz = normals[..., 0], normals[..., 1], normals[..., 2]
        self.normal_azim, self.normal_elev = vectors_to_angles(nx, ny, nz)  # (1,N)
        self.colors = colors
        self.point_size_scaler = jnp.float32(1.0)
        self.point_scale_range = point_scale_range
        self.points_activation = jnp.ones(points.shape[:2], jnp.float32)
        self.sigma = sigma

    @functools.partial(jax.jit, static_argnums=(0, 3, 4))
    def forward(self, cameras_R, cameras_T, H, W):
        # glue: coordinate-major layout for the kernels
        pts_3n = jnp.transpose(self.points[0]).astype(jnp.float32)   # (3, N)
        col_3n = jnp.transpose(self.colors[0]).astype(jnp.float32)   # (3, N)
        R_flat = cameras_R.reshape(cameras_R.shape[0], 9).astype(jnp.float32)
        T = cameras_T.astype(jnp.float32)

        normals_3n, proj, colors4 = point_prep(
            self.normal_azim.astype(jnp.float32),
            self.normal_elev.astype(jnp.float32),
            col_3n, pts_3n,
            self.points_activation.astype(jnp.float32),
            R_flat, T)

        # point_size_scaler clamp (as in forward) drives the splat radius.
        scale = jnp.clip(self.point_size_scaler,
                         self.point_scale_range[0], self.point_scale_range[1])
        inv2s2 = (1.0 / (2.0 * (self.sigma * scale) ** 2)
                  ).reshape(1, 1).astype(jnp.float32)

        rgba = splat(inv2s2, proj, colors4, H, W)
        rgb = rgba[..., :3]        # (B, H, W, 3)
        mask = rgba[..., -1:]      # (B, H, W, 1)

        point_clouds = {
            "points": self.points,                            # (1, N, 3)
            "normals": jnp.transpose(normals_3n)[None],       # (1, N, 3)
            "colors": self.colors,                            # (1, N, 3)
        }
        return point_clouds, rgb, mask


def _rot_y(theta):
    c, s = jnp.cos(theta), jnp.sin(theta)
    return jnp.array([[c, 0.0, s],
                      [0.0, 1.0, 0.0],
                      [-s, 0.0, c]], dtype=jnp.float32)


if __name__ == "__main__":
    key = jax.random.PRNGKey(0)
    k1, k2, k3 = jax.random.split(key, 3)

    B, N, H, W = 2, 256, 16, 16
    points = (jax.random.uniform(k1, (1, N, 3), jnp.float32) - 0.5)   # in [-0.5, 0.5]
    raw_n = jax.random.normal(k2, (1, N, 3), jnp.float32)
    normals = raw_n / (jnp.linalg.norm(raw_n, axis=-1, keepdims=True) + 1e-8)
    colors = jax.random.uniform(k3, (1, N, 3), jnp.float32)

    cameras_R = jnp.stack([_rot_y(0.0), _rot_y(jnp.pi / 6)], axis=0)      # (B, 3, 3)
    cameras_T = jnp.tile(jnp.array([[0.0, 0.0, 2.5]], jnp.float32), (B, 1))  # (B, 3)

    model = PointModel(points, normals, colors)
    point_clouds, rgb, mask = model.forward(cameras_R, cameras_T, H, W)
    jax.block_until_ready((point_clouds, rgb, mask))

    assert rgb.shape == (B, H, W, 3) and mask.shape == (B, H, W, 1)
    assert point_clouds["normals"].shape == (1, N, 3)
    assert bool(jnp.all(jnp.isfinite(rgb))) and bool(jnp.all(jnp.isfinite(mask)))
    print("KERNEL_OK")
</pallas_src>

<mosaic_0001>
module attributes {stable_mosaic.version = 11 : i64} {
  func.func @_point_prep_kernel(%arg0: i32, %arg1: memref<2x9xf32, #tpu.memory_space<smem>>, %arg2: memref<2x3xf32, #tpu.memory_space<smem>>, %arg3: memref<1x256xf32, #tpu.memory_space<vmem>>, %arg4: memref<1x256xf32, #tpu.memory_space<vmem>>, %arg5: memref<3x256xf32, #tpu.memory_space<vmem>>, %arg6: memref<3x256xf32, #tpu.memory_space<vmem>>, %arg7: memref<1x256xf32, #tpu.memory_space<vmem>>, %arg8: memref<3x256xf32, #tpu.memory_space<vmem>>, %arg9: memref<1x2x256xf32, #tpu.memory_space<vmem>>, %arg10: memref<1x4x256xf32, #tpu.memory_space<vmem>>) attributes {dimension_semantics = [#tpu.dimension_semantics<arbitrary>], iteration_bounds = array<i64: 2>, scalar_prefetch = 0 : i64, scratch_operands = 0 : i64, tpu.core_type = #tpu.core_type<tc>, window_params = [{transform_indices = @transform_0, window_bounds = array<i64: 2, 9>}, {transform_indices = @transform_1, window_bounds = array<i64: 2, 3>}, {pipeline_mode = #tpu.pipeline_mode<synchronous>, transform_indices = @transform_2, window_bounds = array<i64: 1, 256>}, {pipeline_mode = #tpu.pipeline_mode<synchronous>, transform_indices = @transform_3, window_bounds = array<i64: 1, 256>}, {pipeline_mode = #tpu.pipeline_mode<synchronous>, transform_indices = @transform_4, window_bounds = array<i64: 3, 256>}, {pipeline_mode = #tpu.pipeline_mode<synchronous>, transform_indices = @transform_5, window_bounds = array<i64: 3, 256>}, {pipeline_mode = #tpu.pipeline_mode<synchronous>, transform_indices = @transform_6, window_bounds = array<i64: 1, 256>}, {pipeline_mode = #tpu.pipeline_mode<synchronous>, transform_indices = @transform_7, window_bounds = array<i64: 3, 256>}, {transform_indices = @transform_8, window_bounds = array<i64: 1, 2, 256>}, {transform_indices = @transform_9, window_bounds = array<i64: 1, 4, 256>}]} {
    %c0 = arith.constant 0 : index
    %c0_0 = arith.constant 0 : index
    %0 = vector.load %arg3[%c0, %c0_0] : memref<1x256xf32, #tpu.memory_space<vmem>>, vector<1x256xf32>
    %c0_1 = arith.constant 0 : index
    %c0_2 = arith.constant 0 : index
    %1 = vector.load %arg4[%c0_1, %c0_2] : memref<1x256xf32, #tpu.memory_space<vmem>>, vector<1x256xf32>
    %2 = math.cos %1 : vector<1x256xf32>
    %3 = math.sin %0 : vector<1x256xf32>
    %4 = arith.mulf %2, %3 : vector<1x256xf32>
    %5 = math.sin %1 : vector<1x256xf32>
    %6 = math.cos %0 : vector<1x256xf32>
    %7 = arith.mulf %2, %6 : vector<1x256xf32>
    %c0_i32 = arith.constant 0 : i32
    %8 = arith.cmpi eq, %arg0, %c0_i32 : i32
    %9 = arith.extui %8 : i1 to i32
    %c0_i32_3 = arith.constant 0 : i32
    %10 = arith.cmpi ne, %9, %c0_i32_3 : i32
    scf.if %10 {
      %c0_51 = arith.constant 0 : index
      %c0_52 = arith.constant 0 : index
      %122 = vector.load %arg8[%c0_51, %c0_52] : memref<3x256xf32, #tpu.memory_space<vmem>>, vector<1x256xf32>
      tpu.vector_store %arg8[%c0_51, %c0_52], %4 {strides = array<i32>} : memref<3x256xf32, #tpu.memory_space<vmem>>, vector<1x256xf32>,
      %c1_53 = arith.constant 1 : index
      %c0_54 = arith.constant 0 : index
      %123 = vector.load %arg8[%c1_53, %c0_54] : memref<3x256xf32, #tpu.memory_space<vmem>>, vector<1x256xf32>
      tpu.vector_store %arg8[%c1_53, %c0_54], %5 {strides = array<i32>} : memref<3x256xf32, #tpu.memory_space<vmem>>, vector<1x256xf32>,
      %c2_55 = arith.constant 2 : index
      %c0_56 = arith.constant 0 : index
      %124 = vector.load %arg8[%c2_55, %c0_56] : memref<3x256xf32, #tpu.memory_space<vmem>>, vector<1x256xf32>
      tpu.vector_store %arg8[%c2_55, %c0_56], %7 {strides = array<i32>} : memref<3x256xf32, #tpu.memory_space<vmem>>, vector<1x256xf32>,
    } else {
    }
    %cst = arith.constant 0.301511347 : f32
    %11 = vector.broadcast %cst : f32 to vector<1x256xf32>
    %12 = arith.mulf %4, %11 : vector<1x256xf32>
    %cst_4 = arith.constant 0.301511347 : f32
    %13 = vector.broadcast %cst_4 : f32 to vector<1x256xf32>
    %14 = arith.mulf %5, %13 : vector<1x256xf32>
    %15 = arith.addf %12, %14 : vector<1x256xf32>
    %cst_5 = arith.constant 0.904534041 : f32
    %16 = vector.broadcast %cst_5 : f32 to vector<1x256xf32>
    %17 = arith.mulf %7, %16 : vector<1x256xf32>
    %18 = arith.addf %15, %17 : vector<1x256xf32>
    %cst_6 = arith.constant 0.000000e+00 : f32
    %19 = vector.broadcast %cst_6 : f32 to vector<1x256xf32>
    %20 = arith.maximumf %18, %19 : vector<1x256xf32>
    %cst_7 = arith.constant 6.000000e-01 : f32
    %21 = vector.broadcast %cst_7 : f32 to vector<1x256xf32>
    %22 = arith.mulf %21, %20 : vector<1x256xf32>
    %cst_8 = arith.constant 4.000000e-01 : f32
    %23 = vector.broadcast %cst_8 : f32 to vector<1x256xf32>
    %24 = arith.addf %23, %22 : vector<1x256xf32>
    %c0_9 = arith.constant 0 : index
    %c0_10 = arith.constant 0 : index
    %25 = vector.load %arg6[%c0_9, %c0_10] : memref<3x256xf32, #tpu.memory_space<vmem>>, vector<1x256xf32>
    %c1 = arith.constant 1 : index
    %c0_11 = arith.constant 0 : index
    %26 = vector.load %arg6[%c1, %c0_11] : memref<3x256xf32, #tpu.memory_space<vmem>>, vector<1x256xf32>
    %c2 = arith.constant 2 : index
    %c0_12 = arith.constant 0 : index
    %27 = vector.load %arg6[%c2, %c0_12] : memref<3x256xf32, #tpu.memory_space<vmem>>, vector<1x256xf32>
    %28 = arith.index_cast %arg0 : i32 to index
    %c0_13 = arith.constant 0 : index
    %29 = memref.load %arg1[%28, %c0_13] : memref<2x9xf32, #tpu.memory_space<smem>>
    %30 = vector.broadcast %29 : f32 to vector<1x256xf32>
    %31 = arith.mulf %30, %25 : vector<1x256xf32>
    %32 = arith.index_cast %arg0 : i32 to index
    %c1_14 = arith.constant 1 : index
    %33 = memref.load %arg1[%32, %c1_14] : memref<2x9xf32, #tpu.memory_space<smem>>
    %34 = vector.broadcast %33 : f32 to vector<1x256xf32>
    %35 = arith.mulf %34, %26 : vector<1x256xf32>
    %36 = arith.addf %31, %35 : vector<1x256xf32>
    %37 = arith.index_cast %arg0 : i32 to index
    %c2_15 = arith.constant 2 : index
    %38 = memref.load %arg1[%37, %c2_15] : memref<2x9xf32, #tpu.memory_space<smem>>
    %39 = vector.broadcast %38 : f32 to vector<1x256xf32>
    %40 = arith.mulf %39, %27 : vector<1x256xf32>
    %41 = arith.addf %36, %40 : vector<1x256xf32>
    %42 = arith.index_cast %arg0 : i32 to index
    %c0_16 = arith.constant 0 : index
    %43 = memref.load %arg2[%42, %c0_16] : memref<2x3xf32, #tpu.memory_space<smem>>
    %44 = vector.broadcast %43 : f32 to vector<1x256xf32>
    %45 = arith.addf %41, %44 : vector<1x256xf32>
    %46 = arith.index_cast %arg0 : i32 to index
    %c3 = arith.constant 3 : index
    %47 = memref.load %arg1[%46, %c3] : memref<2x9xf32, #tpu.memory_space<smem>>
    %48 = vector.broadcast %47 : f32 to vector<1x256xf32>
    %49 = arith.mulf %48, %25 : vector<1x256xf32>
    %50 = arith.index_cast %arg0 : i32 to index
    %c4 = arith.constant 4 : index
    %51 = memref.load %arg1[%50, %c4] : memref<2x9xf32, #tpu.memory_space<smem>>
    %52 = vector.broadcast %51 : f32 to vector<1x256xf32>
    %53 = arith.mulf %52, %26 : vector<1x256xf32>
    %54 = arith.addf %49, %53 : vector<1x256xf32>
    %55 = arith.index_cast %arg0 : i32 to index
    %c5 = arith.constant 5 : index
    %56 = memref.load %arg1[%55, %c5] : memref<2x9xf32, #tpu.memory_space<smem>>
    %57 = vector.broadcast %56 : f32 to vector<1x256xf32>
    %58 = arith.mulf %57, %27 : vector<1x256xf32>
    %59 = arith.addf %54, %58 : vector<1x256xf32>
    %60 = arith.index_cast %arg0 : i32 to index
    %c1_17 = arith.constant 1 : index
    %61 = memref.load %arg2[%60, %c1_17] : memref<2x3xf32, #tpu.memory_space<smem>>
    %62 = vector.broadcast %61 : f32 to vector<1x256xf32>
    %63 = arith.addf %59, %62 : vector<1x256xf32>
    %64 = arith.index_cast %arg0 : i32 to index
    %c6 = arith.constant 6 : index
    %65 = memref.load %arg1[%64, %c6] : memref<2x9xf32, #tpu.memory_space<smem>>
    %66 = vector.broadcast %65 : f32 to vector<1x256xf32>
    %67 = arith.mulf %66, %25 : vector<1x256xf32>
    %68 = arith.index_cast %arg0 : i32 to index
    %c7 = arith.constant 7 : index
    %69 = memref.load %arg1[%68, %c7] : memref<2x9xf32, #tpu.memory_space<smem>>
    %70 = vector.broadcast %69 : f32 to vector<1x256xf32>
    %71 = arith.mulf %70, %26 : vector<1x256xf32>
    %72 = arith.addf %67, %71 : vector<1x256xf32>
    %73 = arith.index_cast %arg0 : i32 to index
    %c8 = arith.constant 8 : index
    %74 = memref.load %arg1[%73, %c8] : memref<2x9xf32, #tpu.memory_space<smem>>
    %75 = vector.broadcast %74 : f32 to vector<1x256xf32>
    %76 = arith.mulf %75, %27 : vector<1x256xf32>
    %77 = arith.addf %72, %76 : vector<1x256xf32>
    %78 = arith.index_cast %arg0 : i32 to index
    %c2_18 = arith.constant 2 : index
    %79 = memref.load %arg2[%78, %c2_18] : memref<2x3xf32, #tpu.memory_space<smem>>
    %80 = vector.broadcast %79 : f32 to vector<1x256xf32>
    %81 = arith.addf %77, %80 : vector<1x256xf32>
    %cst_19 = arith.constant 9.99999997E-7 : f32
    %82 = vector.broadcast %cst_19 : f32 to vector<1x256xf32>
    %83 = arith.cmpf ogt, %81, %82 : vector<1x256xf32>
    %cst_20 = arith.constant 1.000000e+00 : f32
    %84 = vector.broadcast %cst_20 : f32 to vector<1x256xf32>
    %85 = arith.select %83, %81, %84 : vector<1x256xi1>, vector<1x256xf32>
    %cst_21 = arith.constant 1.000000e+00 : f32
    %86 = vector.broadcast %cst_21 : f32 to vector<1x256xf32>
    %87 = arith.divf %86, %85 : vector<1x256xf32>
    %88 = arith.mulf %45, %87 : vector<1x256xf32>
    %c0_22 = arith.constant 0 : index
    %c0_23 = arith.constant 0 : index
    %c0_24 = arith.constant 0 : index
    %89 = vector.load %arg9[%c0_22, %c0_23, %c0_24] : memref<1x2x256xf32, #tpu.memory_space<vmem>>, vector<1x1x256xf32>
    %90 = vector.shape_cast %89 : vector<1x1x256xf32> to vector<1x256xf32>
    %91 = vector.shape_cast %88 : vector<1x256xf32> to vector<1x1x256xf32>
    tpu.vector_store %arg9[%c0_22, %c0_23, %c0_24], %91 {strides = array<i32>} : memref<1x2x256xf32, #tpu.memory_space<vmem>>, vector<1x1x256xf32>,
    %92 = arith.mulf %63, %87 : vector<1x256xf32>
    %c0_25 = arith.constant 0 : index
    %c1_26 = arith.constant 1 : index
    %c0_27 = arith.constant 0 : index
    %93 = vector.load %arg9[%c0_25, %c1_26, %c0_27] : memref<1x2x256xf32, #tpu.memory_space<vmem>>, vector<1x1x256xf32>
    %94 = vector.shape_cast %93 : vector<1x1x256xf32> to vector<1x256xf32>
    %95 = vector.shape_cast %92 : vector<1x256xf32> to vector<1x1x256xf32>
    tpu.vector_store %arg9[%c0_25, %c1_26, %c0_27], %95 {strides = array<i32>} : memref<1x2x256xf32, #tpu.memory_space<vmem>>, vector<1x1x256xf32>,
    %cst_28 = arith.constant 9.99999997E-7 : f32
    %96 = vector.broadcast %cst_28 : f32 to vector<1x256xf32>
    %97 = arith.cmpf ogt, %81, %96 : vector<1x256xf32>
    %cst_29 = arith.constant 1.000000e+00 : f32
    %cst_30 = arith.constant 0.000000e+00 : f32
    %98 = vector.broadcast %cst_29 : f32 to vector<1x256xf32>
    %99 = vector.broadcast %cst_30 : f32 to vector<1x256xf32>
    %100 = arith.select %97, %98, %99 : vector<1x256xi1>, vector<1x256xf32>
    %c0_31 = arith.constant 0 : index
    %c0_32 = arith.constant 0 : index
    %101 = vector.load %arg7[%c0_31, %c0_32] : memref<1x256xf32, #tpu.memory_space<vmem>>, vector<1x256xf32>
    %102 = arith.mulf %100, %101 : vector<1x256xf32>
    %103 = arith.mulf %24, %102 : vector<1x256xf32>
    %c0_33 = arith.constant 0 : index
    %c0_34 = arith.constant 0 : index
    %104 = vector.load %arg5[%c0_33, %c0_34] : memref<3x256xf32, #tpu.memory_space<vmem>>, vector<1x256xf32>
    %105 = arith.mulf %104, %103 : vector<1x256xf32>
    %c0_35 = arith.constant 0 : index
    %c0_36 = arith.constant 0 : index
    %c0_37 = arith.constant 0 : index
    %106 = vector.load %arg10[%c0_35, %c0_36, %c0_37] : memref<1x4x256xf32, #tpu.memory_space<vmem>>, vector<1x1x256xf32>
    %107 = vector.shape_cast %106 : vector<1x1x256xf32> to vector<1x256xf32>
    %108 = vector.shape_cast %105 : vector<1x256xf32> to vector<1x1x256xf32>
    tpu.vector_store %arg10[%c0_35, %c0_36, %c0_37], %108 {strides = array<i32>} : memref<1x4x256xf32, #tpu.memory_space<vmem>>, vector<1x1x256xf32>,
    %c1_38 = arith.constant 1 : index
    %c0_39 = arith.constant 0 : index
    %109 = vector.load %arg5[%c1_38, %c0_39] : memref<3x256xf32, #tpu.memory_space<vmem>>, vector<1x256xf32>
    %110 = arith.mulf %109, %103 : vector<1x256xf32>
    %c0_40 = arith.constant 0 : index
    %c1_41 = arith.constant 1 : index
    %c0_42 = arith.constant 0 : index
    %111 = vector.load %arg10[%c0_40, %c1_41, %c0_42] : memref<1x4x256xf32, #tpu.memory_space<vmem>>, vector<1x1x256xf32>
    %112 = vector.shape_cast %111 : vector<1x1x256xf32> to vector<1x256xf32>
    %113 = vector.shape_cast %110 : vector<1x256xf32> to vector<1x1x256xf32>
    tpu.vector_store %arg10[%c0_40, %c1_41, %c0_42], %113 {strides = array<i32>} : memref<1x4x256xf32, #tpu.memory_space<vmem>>, vector<1x1x256xf32>,
    %c2_43 = arith.constant 2 : index
    %c0_44 = arith.constant 0 : index
    %114 = vector.load %arg5[%c2_43, %c0_44] : memref<3x256xf32, #tpu.memory_space<vmem>>, vector<1x256xf32>
    %115 = arith.mulf %114, %103 : vector<1x256xf32>
    %c0_45 = arith.constant 0 : index
    %c2_46 = arith.constant 2 : index
    %c0_47 = arith.constant 0 : index
    %116 = vector.load %arg10[%c0_45, %c2_46, %c0_47] : memref<1x4x256xf32, #tpu.memory_space<vmem>>, vector<1x1x256xf32>
    %117 = vector.shape_cast %116 : vector<1x1x256xf32> to vector<1x256xf32>
    %118 = vector.shape_cast %115 : vector<1x256xf32> to vector<1x1x256xf32>
    tpu.vector_store %arg10[%c0_45, %c2_46, %c0_47], %118 {strides = array<i32>} : memref<1x4x256xf32, #tpu.memory_space<vmem>>, vector<1x1x256xf32>,
    %c0_48 = arith.constant 0 : index
    %c3_49 = arith.constant 3 : index
    %c0_50 = arith.constant 0 : index
    %119 = vector.load %arg10[%c0_48, %c3_49, %c0_50] : memref<1x4x256xf32, #tpu.memory_space<vmem>>, vector<1x1x256xf32>
    %120 = vector.shape_cast %119 : vector<1x1x256xf32> to vector<1x256xf32>
    %121 = vector.shape_cast %102 : vector<1x256xf32> to vector<1x1x256xf32>
    tpu.vector_store %arg10[%c0_48, %c3_49, %c0_50], %121 {strides = array<i32>} : memref<1x4x256xf32, #tpu.memory_space<vmem>>, vector<1x1x256xf32>,
    return
  }
  func.func @transform_0(%arg0: i32) -> (i32, i32) {
    %c0_i32 = arith.constant 0 : i32
    %c0_i32_0 = arith.constant 0 : i32
    %c0_i32_1 = arith.constant 0 : i32
    return %c0_i32, %c0_i32_0 : i32, i32
  }
  func.func @transform_1(%arg0: i32) -> (i32, i32) {
    %c0_i32 = arith.constant 0 : i32
    %c0_i32_0 = arith.constant 0 : i32
    %c0_i32_1 = arith.constant 0 : i32
    return %c0_i32, %c0_i32_0 : i32, i32
  }
  func.func @transform_2(%arg0: i32) -> (i32, i32) {
    %c0_i32 = arith.constant 0 : i32
    %c0_i32_0 = arith.constant 0 : i32
    %c0_i32_1 = arith.constant 0 : i32
    return %c0_i32, %c0_i32_0 : i32, i32
  }
  func.func @transform_3(%arg0: i32) -> (i32, i32) {
    %c0_i32 = arith.constant 0 : i32
    %c0_i32_0 = arith.constant 0 : i32
    %c0_i32_1 = arith.constant 0 : i32
    return %c0_i32, %c0_i32_0 : i32, i32
  }
  func.func @transform_4(%arg0: i32) -> (i32, i32) {
    %c0_i32 = arith.constant 0 : i32
    %c0_i32_0 = arith.constant 0 : i32
    %c0_i32_1 = arith.constant 0 : i32
    return %c0_i32, %c0_i32_0 : i32, i32
  }
  func.func @transform_5(%arg0: i32) -> (i32, i32) {
    %c0_i32 = arith.constant 0 : i32
    %c0_i32_0 = arith.constant 0 : i32
    %c0_i32_1 = arith.constant 0 : i32
    return %c0_i32, %c0_i32_0 : i32, i32
  }
  func.func @transform_6(%arg0: i32) -> (i32, i32) {
    %c0_i32 = arith.constant 0 : i32
    %c0_i32_0 = arith.constant 0 : i32
    %c0_i32_1 = arith.constant 0 : i32
    return %c0_i32, %c0_i32_0 : i32, i32
  }
  func.func @transform_7(%arg0: i32) -> (i32, i32) {
    %c0_i32 = arith.constant 0 : i32
    %c0_i32_0 = arith.constant 0 : i32
    %c0_i32_1 = arith.constant 0 : i32
    return %c0_i32, %c0_i32_0 : i32, i32
  }
  func.func @transform_8(%arg0: i32) -> (i32, i32, i32) {
    %c0_i32 = arith.constant 0 : i32
    %c0_i32_0 = arith.constant 0 : i32
    %c0_i32_1 = arith.constant 0 : i32
    return %arg0, %c0_i32, %c0_i32_0 : i32, i32, i32
  }
  func.func @transform_9(%arg0: i32) -> (i32, i32, i32) {
    %c0_i32 = arith.constant 0 : i32
    %c0_i32_0 = arith.constant 0 : i32
    %c0_i32_1 = arith.constant 0 : i32
    return %arg0, %c0_i32, %c0_i32_0 : i32, i32, i32
  }
}

module attributes {stable_mosaic.version = 11 : i64} {
  func.func @kernel(%arg0: i32, %arg1: i32, %arg2: i32, %arg3: memref<1x1xf32, #tpu.memory_space<smem>>, %arg4: memref<1x2x256xf32, #tpu.memory_space<vmem>>, %arg5: memref<1x4x256xf32, #tpu.memory_space<vmem>>, %arg6: memref<1x256x4xf32, #tpu.memory_space<vmem>>, %arg7: memref<256x4xf32, #tpu.memory_space<vmem>>) attributes {dimension_semantics = [#tpu.dimension_semantics<parallel>, #tpu.dimension_semantics<parallel>, #tpu.dimension_semantics<arbitrary>], iteration_bounds = array<i64: 2, 1, 1>, scalar_prefetch = 0 : i64, scratch_operands = 1 : i64, tpu.core_type = #tpu.core_type<tc>, window_params = [{transform_indices = @transform_0, window_bounds = array<i64: 1, 1>}, {transform_indices = @transform_1, window_bounds = array<i64: 1, 2, 256>}, {transform_indices = @transform_2, window_bounds = array<i64: 1, 4, 256>}, {transform_indices = @transform_3, window_bounds = array<i64: 1, 256, 4>}]} {
    %c0_i32 = arith.constant 0 : i32
    %0 = arith.cmpi eq, %arg2, %c0_i32 : i32
    %1 = arith.extui %0 : i1 to i32
    %c0_i32_0 = arith.constant 0 : i32
    %2 = arith.cmpi ne, %1, %c0_i32_0 : i32
    scf.if %2 {
      %cst_24 = arith.constant 0.000000e+00 : f32
      %56 = vector.broadcast %cst_24 : f32 to vector<256x4xf32>
      %c0_25 = arith.constant 0 : index
      %c0_26 = arith.constant 0 : index
      %57 = vector.load %arg7[%c0_25, %c0_26] : memref<256x4xf32, #tpu.memory_space<vmem>>, vector<256x4xf32>
      tpu.vector_store %arg7[%c0_25, %c0_26], %56 {strides = array<i32>} : memref<256x4xf32, #tpu.memory_space<vmem>>, vector<256x4xf32>,
    } else {
    }
    %c0 = arith.constant 0 : index
    %c0_1 = arith.constant 0 : index
    %3 = memref.load %arg3[%c0, %c0_1] : memref<1x1xf32, #tpu.memory_space<smem>>
    %c0_2 = arith.constant 0 : index
    %c0_3 = arith.constant 0 : index
    %c0_4 = arith.constant 0 : index
    %4 = vector.load %arg4[%c0_2, %c0_3, %c0_4] : memref<1x2x256xf32, #tpu.memory_space<vmem>>, vector<1x1x256xf32>
    %5 = vector.shape_cast %4 : vector<1x1x256xf32> to vector<1x256xf32>
    %c0_5 = arith.constant 0 : index
    %c1 = arith.constant 1 : index
    %c0_6 = arith.constant 0 : index
    %6 = vector.load %arg4[%c0_5, %c1, %c0_6] : memref<1x2x256xf32, #tpu.memory_space<vmem>>, vector<1x1x256xf32>
    %7 = vector.shape_cast %6 : vector<1x1x256xf32> to vector<1x256xf32>
    %c256_i32 = arith.constant 256 : i32
    %8 = arith.muli %arg1, %c256_i32 : i32
    %9 = tpu.iota {dimensions = array<i32: 0>} : vector<256x1xi32>
    %10 = vector.broadcast %8 : i32 to vector<256x1xi32>
    %11 = arith.addi %10, %9 : vector<256x1xi32>
    %c16_i32 = arith.constant 16 : i32
    %12 = vector.broadcast %c16_i32 : i32 to vector<256x1xi32>
    %13 = arith.divsi %11, %12 : vector<256x1xi32>
    %c16_i32_7 = arith.constant 16 : i32
    %14 = vector.broadcast %c16_i32_7 : i32 to vector<256x1xi32>
    %15 = arith.muli %13, %14 : vector<256x1xi32>
    %16 = arith.subi %11, %15 : vector<256x1xi32>
    %17 = arith.sitofp %16 : vector<256x1xi32> to vector<256x1xf32>
    %cst = arith.constant 5.000000e-01 : f32
    %18 = vector.broadcast %cst : f32 to vector<256x1xf32>
    %19 = arith.addf %17, %18 : vector<256x1xf32>
    %cst_8 = arith.constant 1.250000e-01 : f32
    %20 = vector.broadcast %cst_8 : f32 to vector<256x1xf32>
    %21 = arith.mulf %19, %20 : vector<256x1xf32>
    %cst_9 = arith.constant 1.000000e+00 : f32
    %22 = vector.broadcast %cst_9 : f32 to vector<256x1xf32>
    %23 = arith.subf %21, %22 : vector<256x1xf32>
    %24 = arith.sitofp %13 : vector<256x1xi32> to vector<256x1xf32>
    %cst_10 = arith.constant 5.000000e-01 : f32
    %25 = vector.broadcast %cst_10 : f32 to vector<256x1xf32>
    %26 = arith.addf %24, %25 : vector<256x1xf32>
    %cst_11 = arith.constant 1.250000e-01 : f32
    %27 = vector.broadcast %cst_11 : f32 to vector<256x1xf32>
    %28 = arith.mulf %26, %27 : vector<256x1xf32>
    %cst_12 = arith.constant 1.000000e+00 : f32
    %29 = vector.broadcast %cst_12 : f32 to vector<256x1xf32>
    %30 = arith.subf %28, %29 : vector<256x1xf32>
    %31 = vector.broadcast %23 : vector<256x1xf32> to vector<256x256xf32>
    %32 = vector.broadcast %5 : vector<1x256xf32> to vector<256x256xf32>
    %33 = arith.subf %31, %32 : vector<256x256xf32>
    %34 = vector.broadcast %30 : vector<256x1xf32> to vector<256x256xf32>
    %35 = vector.broadcast %7 : vector<1x256xf32> to vector<256x256xf32>
    %36 = arith.subf %34, %35 : vector<256x256xf32>
    %37 = arith.mulf %33, %33 : vector<256x256xf32>
    %38 = arith.mulf %36, %36 : vector<256x256xf32>
    %39 = arith.addf %37, %38 : vector<256x256xf32>
    %cst_13 = arith.constant 0.000000e+00 : f32
    %40 = vector.broadcast %cst_13 : f32 to vector<256x256xf32>
    %41 = arith.subf %40, %39 : vector<256x256xf32>
    %42 = vector.broadcast %3 : f32 to vector<256x256xf32>
    %43 = arith.mulf %41, %42 : vector<256x256xf32>
    %44 = math.exp %43 : vector<256x256xf32>
    %45 = arith.truncf %44 : vector<256x256xf32> to vector<256x256xbf16>
    %c0_14 = arith.constant 0 : index
    %c0_15 = arith.constant 0 : index
    %c0_16 = arith.constant 0 : index
    %46 = vector.load %arg5[%c0_14, %c0_15, %c0_16] : memref<1x4x256xf32, #tpu.memory_space<vmem>>, vector<1x4x256xf32>
    %47 = vector.shape_cast %46 : vector<1x4x256xf32> to vector<4x256xf32>
    %48 = arith.truncf %47 : vector<4x256xf32> to vector<4x256xbf16>
    %c0_17 = arith.constant 0 : index
    %c0_18 = arith.constant 0 : index
    %49 = vector.load %arg7[%c0_17, %c0_18] : memref<256x4xf32, #tpu.memory_space<vmem>>, vector<256x4xf32>
    %cst_19 = arith.constant dense<0.000000e+00> : vector<256x4xf32>
    %50 = tpu.matmul %45, %48, %cst_19 {dimension_numbers = #tpu.dot_dimension_numbers<[1], [1], [0], [0], [0, 0, 1, 0], [], []>} : vector<256x256xbf16>, vector<4x256xbf16>, vector<256x4xf32> -> vector<256x4xf32>
    %51 = arith.addf %49, %50 : vector<256x4xf32>
    %c0_20 = arith.constant 0 : index
    %c0_21 = arith.constant 0 : index
    %52 = vector.load %arg7[%c0_20, %c0_21] : memref<256x4xf32, #tpu.memory_space<vmem>>, vector<256x4xf32>
    tpu.vector_store %arg7[%c0_20, %c0_21], %51 {strides = array<i32>} : memref<256x4xf32, #tpu.memory_space<vmem>>, vector<256x4xf32>,
    %c0_i32_22 = arith.constant 0 : i32
    %53 = arith.cmpi eq, %arg2, %c0_i32_22 : i32
    %54 = arith.extui %53 : i1 to i32
    %c0_i32_23 = arith.constant 0 : i32
    %55 = arith.cmpi ne, %54, %c0_i32_23 : i32
    scf.if %55 {
      %c0_24 = arith.constant 0 : index
      %c3 = arith.constant 3 : index
      %56 = vector.load %arg7[%c0_24, %c3] : memref<256x4xf32, #tpu.memory_space<vmem>>, vector<256x1xf32>
      %cst_25 = arith.constant 9.99999997E-7 : f32
      %57 = vector.broadcast %cst_25 : f32 to vector<256x1xf32>
      %58 = arith.addf %56, %57 : vector<256x1xf32>
      %59 = tpu.reciprocal %58 {approx = true} : vector<256x1xf32> -> vector<256x1xf32>
      %c0_26 = arith.constant 0 : index
      %c0_27 = arith.constant 0 : index
      %60 = vector.load %arg7[%c0_26, %c0_27] : memref<256x4xf32, #tpu.memory_space<vmem>>, vector<256x3xf32>
      %61 = vector.broadcast %59 : vector<256x1xf32> to vector<256x3xf32>
      %62 = arith.mulf %60, %61 : vector<256x3xf32>
      %c0_28 = arith.constant 0 : index
      %c0_29 = arith.constant 0 : index
      %c0_30 = arith.constant 0 : index
      %63 = vector.load %arg6[%c0_28, %c0_29, %c0_30] : memref<1x256x4xf32, #tpu.memory_space<vmem>>, vector<1x256x3xf32>
      %64 = vector.shape_cast %63 : vector<1x256x3xf32> to vector<256x3xf32>
      %65 = vector.shape_cast %62 : vector<256x3xf32> to vector<1x256x3xf32>
      tpu.vector_store %arg6[%c0_28, %c0_29, %c0_30], %65 {strides = array<i32>} : memref<1x256x4xf32, #tpu.memory_space<vmem>>, vector<1x256x3xf32>,
      %cst_31 = arith.constant 0.000000e+00 : f32
      %cst_32 = arith.constant 1.000000e+00 : f32
      %66 = vector.broadcast %cst_31 : f32 to vector<256x1xf32>
      %67 = arith.maximumf %66, %56 : vector<256x1xf32>
      %68 = vector.broadcast %cst_32 : f32 to vector<256x1xf32>
      %69 = arith.minimumf %68, %67 : vector<256x1xf32>
      %c0_33 = arith.constant 0 : index
      %c0_34 = arith.constant 0 : index
      %c3_35 = arith.constant 3 : index
      %70 = vector.load %arg6[%c0_33, %c0_34, %c3_35] : memref<1x256x4xf32, #tpu.memory_space<vmem>>, vector<1x256x1xf32>
      %71 = vector.shape_cast %70 : vector<1x256x1xf32> to vector<256x1xf32>
      %72 = vector.shape_cast %69 : vector<256x1xf32> to vector<1x256x1xf32>
      tpu.vector_store %arg6[%c0_33, %c0_34, %c3_35], %72 {strides = array<i32>} : memref<1x256x4xf32, #tpu.memory_space<vmem>>, vector<1x256x1xf32>,
    } else {
    }
    return
  }
  func.func @transform_0(%arg0: i32, %arg1: i32, %arg2: i32) -> (i32, i32) {
    %c0_i32 = arith.constant 0 : i32
    %c0_i32_0 = arith.constant 0 : i32
    %c0_i32_1 = arith.constant 0 : i32
    return %c0_i32, %c0_i32_0 : i32, i32
  }
  func.func @transform_1(%arg0: i32, %arg1: i32, %arg2: i32) -> (i32, i32, i32) {
    %c0_i32 = arith.constant 0 : i32
    %c0_i32_0 = arith.constant 0 : i32
    return %arg0, %c0_i32, %arg2 : i32, i32, i32
  }
  func.func @transform_2(%arg0: i32, %arg1: i32, %arg2: i32) -> (i32, i32, i32) {
    %c0_i32 = arith.constant 0 : i32
    %c0_i32_0 = arith.constant 0 : i32
    return %arg0, %c0_i32, %arg2 : i32, i32, i32
  }
  func.func @transform_3(%arg0: i32, %arg1: i32, %arg2: i32) -> (i32, i32, i32) {
    %c0_i32 = arith.constant 0 : i32
    %c0_i32_0 = arith.constant 0 : i32
    return %arg0, %arg1, %c0_i32 : i32, i32, i32
  }
}

</mosaic_0001>

<llo_original>
// kernel: forward.2
$region0: #{forward.2}
  #allocation0 [shape = 'u32[]', space=smem, size = 0x4, offset = 0x4, fixed_abs, tag = 'smem constant byte address 0x4 - core index']
  #allocation1 [shape = 'u32[72,128]{1,0:T(1,128)}', space=vmem, size = 0x9000, scoped, tag = 'internal scratch']
  %s0 = inlined_call_operand.vmem [shape: f32[2,9], index: 0, kind: input, shape index: {}]
  %s1 = inlined_call_operand.vmem [shape: f32[2,3], index: 1, kind: input, shape index: {}]
  %s2 = inlined_call_operand.vmem [shape: f32[1,256], index: 2, kind: input, shape index: {}]
  %s3 = inlined_call_operand.vmem [shape: f32[1,256], index: 3, kind: input, shape index: {}]
  %s4 = inlined_call_operand.vmem [shape: f32[3,256], index: 4, kind: input, shape index: {}]
  %s5 = inlined_call_operand.vmem [shape: f32[3,256], index: 5, kind: input, shape index: {}]
  %s6 = inlined_call_operand.vmem [shape: f32[1,256], index: 6, kind: input, shape index: {}]
  %s7 = inlined_call_operand.vmem [shape: f32[3,256], index: 7, kind: output, shape index: {0}]
  %s8 = inlined_call_operand.vmem [shape: f32[2,2,256], index: 8, kind: output, shape index: {1}]
  %s9 = inlined_call_operand.vmem [shape: f32[2,4,256], index: 9, kind: output, shape index: {2}]
  %10 = xla_tuple %s7, %s8, %s9
  %s11 = sld [smem:[#allocation0]]
  $region89: #{forward.2} parent=0
    _
  %s13 = ssub.s32 1, %s11
  %s14 = scalar_select 0, %s13, %s11
  $region1: #{forward.2} parent=0
    #allocation2 [shape = 'u8[1024]{0}', space=smem, size = 0x400, scoped, tag = 'input window, operand 0, single buffered']
    #allocation3 [shape = 's32[2]{0}', space=sflag, size = 0x8, scoped, tag = 'scoped memory for forward.2']
    #allocation4 [shape = 'u8[1024]{0}', space=smem, size = 0x400, scoped, tag = 'input window, operand 1, single buffered']
    #allocation5 [shape = 's32[1]{0}', space=sflag, size = 0x4, scoped, tag = 'scoped memory for forward.2']
    %15 = vsyncpa [#allocation3], 0
    %16 = vsyncpa [#allocation5], 0
    loop: start=0, step=1, limit=4
    $region2: #{forward.2} parent=1 // loop_pre_header
      _
    $region3: #{forward.2} parent=1 // loop_header
      %s18 = sphi 0, %s22
      %p19 = scmp.ge.s32.totalorder %s18, 4
      %s26 = sphi 0, %s26
      %s28 = sphi 0, %s26
      %s29 = sphi 0, %s28
      %s43 = sphi 0, %s29
      %s47 = sphi 0, %s47
      %s49 = sphi 0, %s47
      %s50 = sphi 0, %s49
      %s64 = sphi 0, %s50
      %s68 = sphi 0, %s68
      %s70 = sphi 0, %s68
      %s71 = sphi 0, %s70
      %s85 = sphi 0, %s71
      %s89 = sphi 0, %s89
      %s91 = sphi 0, %s89
      %s92 = sphi 0, %s91
      %s106 = sphi 0, %s92
      %s110 = sphi 0, %s110
      %s112 = sphi 0, %s110
      %s113 = sphi 0, %s112
      %s127 = sphi 0, %s113
      %s131 = sphi 0, %s131
      %s133 = sphi 0, %s131
      %s134 = sphi 0, %s133
      %s148 = sphi 0, %s134
      %s152 = sphi 0, %s152
      %s154 = sphi 0, %s152
      %s155 = sphi 0, %s154
      %s169 = sphi 0, %s155
      %s173 = sphi 0, %s173
      %s175 = sphi 0, %s173
      %s176 = sphi 0, %s175
      %s190 = sphi 0, %s176
      %s196 = sphi 0, %s198
      %s199 = sphi 0, %s196
      %s200 = sphi 0, %s199
      %s216 = sphi 0, %s200
      %s222 = sphi 0, %s224
      %s225 = sphi 0, %s222
      %s226 = sphi 0, %s225
      %s242 = sphi 0, %s226
    $region4: #{forward.2} parent=1 // loop_header_branch
      %21 = sbr.rel (%p19) target = $region8
    $region5: #{forward.2} parent=1 // loop_body
      %s23 = ssub.s32 %s18, 1
      %s24 = ssub.s32 %s18, 2
      %s25 = sadd.s32 %s18, 1
      %s27 = sadd.s32 %s26, 1
      %p30 = scmp.eq.s32.totalorder %s18, 1
      %p31 = scmp.ne.s32.totalorder %s26, %s28
      %p32 = scmp.eq.s32.totalorder %s18, 0
      %p33 = por %p31, %p32
      %p34 = scmp.ne.s32.totalorder %s26, %s28
      %p35 = scmp.eq.s32.totalorder %s23, 1
      %p36 = por %p34, %p35
      %p37 = scmp.ne.s32.totalorder %s28, %s29
      %p38 = scmp.eq.s32.totalorder %s23, 0
      %p39 = por %p37, %p38
      %p40 = scmp.ne.s32.totalorder %s28, %s29
      %p41 = scmp.eq.s32.totalorder %s24, 1
      %p42 = por %p40, %p41
      %p44 = scmp.ne.s32.totalorder %s29, %s43
      %p45 = scmp.eq.s32.totalorder %s24, 0
      %p46 = por %p44, %p45
      %s48 = sadd.s32 %s47, 1
      %p51 = scmp.eq.s32.totalorder %s18, 1
      %p52 = scmp.ne.s32.totalorder %s47, %s49
      %p53 = scmp.eq.s32.totalorder %s18, 0
      %p54 = por %p52, %p53
      %p55 = scmp.ne.s32.totalorder %s47, %s49
      %p56 = scmp.eq.s32.totalorder %s23, 1
      %p57 = por %p55, %p56
      %p58 = scmp.ne.s32.totalorder %s49, %s50
      %p59 = scmp.eq.s32.totalorder %s23, 0
      %p60 = por %p58, %p59
      %p61 = scmp.ne.s32.totalorder %s49, %s50
      %p62 = scmp.eq.s32.totalorder %s24, 1
      %p63 = por %p61, %p62
      %p65 = scmp.ne.s32.totalorder %s50, %s64
      %p66 = scmp.eq.s32.totalorder %s24, 0
      %p67 = por %p65, %p66
      %s69 = sadd.s32 %s68, 1
      %p72 = scmp.eq.s32.totalorder %s18, 1
      %p73 = scmp.ne.s32.totalorder %s68, %s70
      %p74 = scmp.eq.s32.totalorder %s18, 0
      %p75 = por %p73, %p74
      %p76 = scmp.ne.s32.totalorder %s68, %s70
      %p77 = scmp.eq.s32.totalorder %s23, 1
      %p78 = por %p76, %p77
      %p79 = scmp.ne.s32.totalorder %s70, %s71
      %p80 = scmp.eq.s32.totalorder %s23, 0
      %p81 = por %p79, %p80
      %p82 = scmp.ne.s32.totalorder %s70, %s71
      %p83 = scmp.eq.s32.totalorder %s24, 1
      %p84 = por %p82, %p83
      %p86 = scmp.ne.s32.totalorder %s71, %s85
      %p87 = scmp.eq.s32.totalorder %s24, 0
      %p88 = por %p86, %p87
      %s90 = sadd.s32 %s89, 1
      %p93 = scmp.eq.s32.totalorder %s18, 1
      %p94 = scmp.ne.s32.totalorder %s89, %s91
      %p95 = scmp.eq.s32.totalorder %s18, 0
      %p96 = por %p94, %p95
      %p97 = scmp.ne.s32.totalorder %s89, %s91
      %p98 = scmp.eq.s32.totalorder %s23, 1
      %p99 = por %p97, %p98
      %p100 = scmp.ne.s32.totalorder %s91, %s92
      %p101 = scmp.eq.s32.totalorder %s23, 0
      %p102 = por %p100, %p101
      %p103 = scmp.ne.s32.totalorder %s91, %s92
      %p104 = scmp.eq.s32.totalorder %s24, 1
      %p105 = por %p103, %p104
      %p107 = scmp.ne.s32.totalorder %s92, %s106
      %p108 = scmp.eq.s32.totalorder %s24, 0
      %p109 = por %p107, %p108
      %s111 = sadd.s32 %s110, 1
      %p114 = scmp.eq.s32.totalorder %s18, 1
      %p115 = scmp.ne.s32.totalorder %s110, %s112
      %p116 = scmp.eq.s32.totalorder %s18, 0
      %p117 = por %p115, %p116
      %p118 = scmp.ne.s32.totalorder %s110, %s112
      %p119 = scmp.eq.s32.totalorder %s23, 1
      %p120 = por %p118, %p119
      %p121 = scmp.ne.s32.totalorder %s112, %s113
      %p122 = scmp.eq.s32.totalorder %s23, 0
      %p123 = por %p121, %p122
      %p124 = scmp.ne.s32.totalorder %s112, %s113
      %p125 = scmp.eq.s32.totalorder %s24, 1
      %p126 = por %p124, %p125
      %p128 = scmp.ne.s32.totalorder %s113, %s127
      %p129 = scmp.eq.s32.totalorder %s24, 0
      %p130 = por %p128, %p129
      %s132 = sadd.s32 %s131, 1
      %p135 = scmp.eq.s32.totalorder %s18, 1
      %p136 = scmp.ne.s32.totalorder %s131, %s133
      %p137 = scmp.eq.s32.totalorder %s18, 0
      %p138 = por %p136, %p137
      %p139 = scmp.ne.s32.totalorder %s131, %s133
      %p140 = scmp.eq.s32.totalorder %s23, 1
      %p141 = por %p139, %p140
      %p142 = scmp.ne.s32.totalorder %s133, %s134
      %p143 = scmp.eq.s32.totalorder %s23, 0
      %p144 = por %p142, %p143
      %p145 = scmp.ne.s32.totalorder %s133, %s134
      %p146 = scmp.eq.s32.totalorder %s24, 1
      %p147 = por %p145, %p146
      %p149 = scmp.ne.s32.totalorder %s134, %s148
      %p150 = scmp.eq.s32.totalorder %s24, 0
      %p151 = por %p149, %p150
      %s153 = sadd.s32 %s152, 1
      %p156 = scmp.eq.s32.totalorder %s18, 1
      %p157 = scmp.ne.s32.totalorder %s152, %s154
      %p158 = scmp.eq.s32.totalorder %s18, 0
      %p159 = por %p157, %p158
      %p160 = scmp.ne.s32.totalorder %s152, %s154
      %p161 = scmp.eq.s32.totalorder %s23, 1
      %p162 = por %p160, %p161
      %p163 = scmp.ne.s32.totalorder %s154, %s155
      %p164 = scmp.eq.s32.totalorder %s23, 0
      %p165 = por %p163, %p164
      %p166 = scmp.ne.s32.totalorder %s154, %s155
      %p167 = scmp.eq.s32.totalorder %s24, 1
      %p168 = por %p166, %p167
      %p170 = scmp.ne.s32.totalorder %s155, %s169
      %p171 = scmp.eq.s32.totalorder %s24, 0
      %p172 = por %p170, %p171
      %s174 = sadd.s32 %s173, 1
      %p177 = scmp.eq.s32.totalorder %s18, 1
      %p178 = scmp.ne.s32.totalorder %s173, %s175
      %p179 = scmp.eq.s32.totalorder %s18, 0
      %p180 = por %p178, %p179
      %p181 = scmp.ne.s32.totalorder %s173, %s175
      %p182 = scmp.eq.s32.totalorder %s23, 1
      %p183 = por %p181, %p182
      %p184 = scmp.ne.s32.totalorder %s175, %s176
      %p185 = scmp.eq.s32.totalorder %s23, 0
      %p186 = por %p184, %p185
      %p187 = scmp.ne.s32.totalorder %s175, %s176
      %p188 = scmp.eq.s32.totalorder %s24, 1
      %p189 = por %p187, %p188
      %p191 = scmp.ne.s32.totalorder %s176, %s190
      %p192 = scmp.eq.s32.totalorder %s24, 0
      %p193 = por %p191, %p192
      %s194 = ssub.s32 %s18, %s25
      %p195 = scmp.eq.s32.totalorder %s194, 0
      %s197 = sadd.s32 %s196, 1
      %s198 = scalar_select %p195, %s196, %s197
      %p201 = pneg %p195
      %p202 = scmp.eq.s32.totalorder %s18, 1
      %p203 = por %p201, %p202
      %p204 = scmp.ne.s32.totalorder %s196, %s199
      %p205 = scmp.eq.s32.totalorder %s18, 0
      %p206 = por %p204, %p205
      %p207 = scmp.ne.s32.totalorder %s196, %s199
      %p208 = scmp.eq.s32.totalorder %s23, 1
      %p209 = por %p207, %p208
      %p210 = scmp.ne.s32.totalorder %s199, %s200
      %p211 = scmp.eq.s32.totalorder %s23, 0
      %p212 = por %p210, %p211
      %p213 = scmp.ne.s32.totalorder %s199, %s200
      %p214 = scmp.eq.s32.totalorder %s24, 1
      %p215 = por %p213, %p214
      %p217 = scmp.ne.s32.totalorder %s200, %s216
      %p218 = scmp.eq.s32.totalorder %s24, 0
      %p219 = por %p217, %p218
      %s220 = ssub.s32 %s18, %s25
      %p221 = scmp.eq.s32.totalorder %s220, 0
      %s223 = sadd.s32 %s222, 1
      %s224 = scalar_select %p221, %s222, %s223
      %p227 = pneg %p221
      %p228 = scmp.eq.s32.totalorder %s18, 1
      %p229 = por %p227, %p228
      %p230 = scmp.ne.s32.totalorder %s222, %s225
      %p231 = scmp.eq.s32.totalorder %s18, 0
      %p232 = por %p230, %p231
      %p233 = scmp.ne.s32.totalorder %s222, %s225
      %p234 = scmp.eq.s32.totalorder %s23, 1
      %p235 = por %p233, %p234
      %p236 = scmp.ne.s32.totalorder %s225, %s226
      %p237 = scmp.eq.s32.totalorder %s23, 0
      %p238 = por %p236, %p237
      %p239 = scmp.ne.s32.totalorder %s225, %s226
      %p240 = scmp.eq.s32.totalorder %s24, 1
      %p241 = por %p239, %p240
      %p243 = scmp.ne.s32.totalorder %s226, %s242
      %p244 = scmp.eq.s32.totalorder %s24, 0
      %p245 = por %p243, %p244
      %p246 = scmp.le.s32.totalorder 1, %s18
      %p247 = scmp.lt.s32.totalorder %s18, 3
      %p248 = pnand %p246, %p247
      %p249 = pneg %p248
      // Predicated region
      $region9: #{forward.2} parent=5 // pred_check
        _
      $region10: #{forward.2} parent=5 // pred_check_branch
        %251 = sbr.rel (%p248) target = $region12
      $region11: #{forward.2} parent=5 // pred_region
        %s252 = ssub.s32 %s18, 1
        // Predicated region
        $region13: #{forward.2} parent=11 // pred_check
          %p253 = pneg %p39
        $region14: #{forward.2} parent=11 // pred_check_branch
          %255 = sbr.rel (%p253) target = $region16
        $region15: #{forward.2} parent=11 // pred_region
          %257 = vsyncadd [#allocation3], 0
          %s259 = sshll.u32 %s0, 4
          %s260 = int_to_ptr.vmem [resolvable:$true] %s259
          %262 = dma.vmem_to_smem %s260, 32, [#allocation2], [#allocation3]
        $region16: #{forward.2} parent=11 // pred_fallthru
          _
        // Predicated region
        $region17: #{forward.2} parent=11 // pred_check
          %p263 = pneg %p60
        $region18: #{forward.2} parent=11 // pred_check_branch
          %265 = sbr.rel (%p263) target = $region20
        $region19: #{forward.2} parent=11 // pred_region
          %267 = vsyncadd [#allocation5], 0
          %s269 = sshll.u32 %s1, 4
          %s270 = int_to_ptr.vmem [resolvable:$true] %s269
          %272 = dma.vmem_to_smem %s270, 32, [#allocation4], [#allocation5]
        $region20: #{forward.2} parent=11 // pred_fallthru
          _
        // Predicated region
        $region21: #{forward.2} parent=11 // pred_check
          %p273 = pneg %p81
        $region22: #{forward.2} parent=11 // pred_check_branch
          %275 = sbr.rel (%p273) target = $region24
        $region23: #{forward.2} parent=11 // pred_region
          _
        $region24: #{forward.2} parent=11 // pred_fallthru
          _
        // Predicated region
        $region25: #{forward.2} parent=11 // pred_check
          %p276 = pneg %p102
        $region26: #{forward.2} parent=11 // pred_check_branch
          %278 = sbr.rel (%p276) target = $region28
        $region27: #{forward.2} parent=11 // pred_region
          _
        $region28: #{forward.2} parent=11 // pred_fallthru
          _
        // Predicated region
        $region29: #{forward.2} parent=11 // pred_check
          %p279 = pneg %p123
        $region30: #{forward.2} parent=11 // pred_check_branch
          %281 = sbr.rel (%p279) target = $region32
        $region31: #{forward.2} parent=11 // pred_region
          _
        $region32: #{forward.2} parent=11 // pred_fallthru
          _
        // Predicated region
        $region33: #{forward.2} parent=11 // pred_check
          %p282 = pneg %p144
        $region34: #{forward.2} parent=11 // pred_check_branch
          %284 = sbr.rel (%p282) target = $region36
        $region35: #{forward.2} parent=11 // pred_region
          _
        $region36: #{forward.2} parent=11 // pred_fallthru
          _
        // Predicated region
        $region37: #{forward.2} parent=11 // pred_check
          %p285 = pneg %p165
        $region38: #{forward.2} parent=11 // pred_check_branch
          %287 = sbr.rel (%p285) target = $region40
        $region39: #{forward.2} parent=11 // pred_region
          _
        $region40: #{forward.2} parent=11 // pred_fallthru
          _
      $region12: #{forward.2} parent=5 // pred_fallthru
        _
      %p288 = scmp.lt.s32.totalorder %s18, 2
      // Predicated region
      $region41: #{forward.2} parent=5 // pred_check
        %p289 = pneg %p288
      $region42: #{forward.2} parent=5 // pred_check_branch
        %291 = sbr.rel (%p289) target = $region44
      $region43: #{forward.2} parent=5 // pred_region
        _
      $region44: #{forward.2} parent=5 // pred_fallthru
        _
      %p292 = scmp.le.s32.totalorder 1, %s18
      %p293 = scmp.lt.s32.totalorder %s18, 3
      %p294 = pnand %p292, %p293
      %p295 = pneg %p294
      // Predicated region
      $region45: #{forward.2} parent=5 // pred_check
        _
      $region46: #{forward.2} parent=5 // pred_check_branch
        %297 = sbr.rel (%p294) target = $region48
      $region47: #{forward.2} parent=5 // pred_region
        %s298 = ssub.s32 %s18, 1
        // Predicated region
        $region49: #{forward.2} parent=47 // pred_check
          %p299 = pneg %p39
        $region50: #{forward.2} parent=47 // pred_check_branch
          %301 = sbr.rel (%p299) target = $region52
        $region51: #{forward.2} parent=47 // pred_region
          %303 = dma.done [#allocation3], 32
        $region52: #{forward.2} parent=47 // pred_fallthru
          _
        // Predicated region
        $region53: #{forward.2} parent=47 // pred_check
          %p304 = pneg %p60
        $region54: #{forward.2} parent=47 // pred_check_branch
          %306 = sbr.rel (%p304) target = $region56
        $region55: #{forward.2} parent=47 // pred_region
          %308 = dma.done [#allocation5], 32
        $region56: #{forward.2} parent=47 // pred_fallthru
          _
        %309 = sfence
        %p310 = pneg %p39
        %p311 = pneg %p36
        %p312 = pneg %p60
        %p313 = pneg %p57
        %p314 = pneg %p81
        %p315 = pneg %p78
        %p316 = pneg %p102
        %p317 = pneg %p99
        %p318 = pneg %p123
        %p319 = pneg %p120
        %p320 = pneg %p144
        %p321 = pneg %p141
        %p322 = pneg %p165
        %p323 = pneg %p162
        %p324 = pneg %p186
        %p325 = pneg %p183
        %p326 = pneg %p212
        %p327 = pneg %p209
        %p328 = scmp.lt.s32.totalorder %s23, 1
        %s329 = scalar_select %p328, %s23, 1
        %s330 = smul.addr %s329, 2
        %s331 = smul.addr %s330, 2
        %s332 = scalar_lea.vmem %s8, %s331
        %p333 = pneg %p238
        %p334 = pneg %p235
        %p335 = scmp.lt.s32.totalorder %s23, 1
        %s336 = scalar_select %p335, %s23, 1
        %s337 = smul.addr %s336, 2
        %s338 = smul.addr %s337, 4
        %s339 = scalar_lea.vmem %s9, %s338
        %p340 = scmp.lt.s32.totalorder %s23, 1
        %s341 = scalar_select %p340, %s23, 1
        %s342 = smul.addr %s341, 2
        %s343 = smul.addr %s342, 2
        %s344 = scalar_lea.vmem %s8, %s343
        %p345 = scmp.lt.s32.totalorder %s23, 1
        %s346 = scalar_select %p345, %s23, 1
        %s347 = smul.addr %s346, 2
        %s348 = smul.addr %s347, 4
        %s349 = scalar_lea.vmem %s9, %s348
        %v350 = vld [vmem:[%s2] sm:$0x3]
        %v351 = vld [vmem:[%s3] sm:$0x3]
        %v352 = vand.u32 2147483647, %v351
        %vm353 = vcmp.le.f32.partialorder %v352, 0.7853982
        %vm354 = vcmp.lt.s32.totalorder %v351, 0
        %v355 = vand.u32 %v351, 2139095040
        %v356 = vshrl.u32 %v355, 23
        %v357 = vsub.s32 %v356, 127
        %v358 = vand.u32 2147483647, %v351
        %v359 = vand.u32 %v358, 8388607
        %v360 = vor.u32 %v359, 8388608
        %v361 = vsub.s32 0, %v360
        %v362 = vadd.s32 %v357, 1
        %vm363 = vcmp.gt.s32.totalorder %v362, 0
        %v364 = vsel %vm363, %v362, 0
        %v365 = vshrl.u32 %v364, 5
        %v366 = vand.u32 %v364, 31
        %v367 = vsub.s32 32, %v366
        %v368 = vshrl.u32 683565275, %v367
        %v369 = vshll.u32 683565275, %v366
        %v370 = vshrl.u32 2475754826, %v367
        %v371 = vor.u32 %v369, %v370
        %v372 = vshll.u32 2475754826, %v366
        %v373 = vshrl.u32 2131351028, %v367
        %v374 = vor.u32 %v372, %v373
        %v375 = vshll.u32 2131351028, %v366
        %v376 = vshrl.u32 2102212464, %v367
        %v377 = vor.u32 %v375, %v376
        %v378 = vshll.u32 2102212464, %v366
        %v379 = vshrl.u32 920167782, %v367
        %v380 = vor.u32 %v378, %v379
        %v381 = vshll.u32 920167782, %v366
        %v382 = vshrl.u32 1326507024, %v367
        %v383 = vor.u32 %v381, %v382
        %vm384 = vcmp.lt.s32.totalorder %v365, 1
        %vm385 = vcmp.lt.s32.totalorder %v365, 2
        %vm386 = vcmp.lt.s32.totalorder %v365, 3
        %vm387 = vcmp.lt.s32.totalorder %v365, 4
        %v388 = vsel %vm384, %v368, %v371
        %v389 = vsel %vm387, %v377, 2102212464
        %v390 = vsel %vm386, %v374, %v389
        %v391 = vsel %vm385, %v388, %v390
        %v392 = vsel %vm384, %v371, %v374
        %v393 = vsel %vm387, %v380, 920167782
        %v394 = vsel %vm386, %v377, %v393
        %v395 = vsel %vm385, %v392, %v394
        %v396 = vsel %vm384, %v374, %v377
        %v397 = vsel %vm387, %v383, 1326507024
        %v398 = vsel %vm386, %v380, %v397
        %v399 = vsel %vm385, %v396, %v398
        %v400 = vshll.u32 %v360, 8
        %v401 = vand.u32 %v400, 65535
        %v402 = vshrl.u32 %v400, 16
        %v403 = vand.u32 %v399, 65535
        %v404 = vshrl.u32 %v399, 16
        %v405 = vmul.u32 %v401, %v403
        %v406 = vmul.u32 %v401, %v404
        %v407 = vmul.u32 %v402, %v403
        %v408 = vmul.u32 %v402, %v404
        %v409 = vshll.u32 %v406, 16
        %v410 = vshrl.u32 %v406, 16
        %v411 = vshll.u32 %v407, 16
        %v412 = vshrl.u32 %v407, 16
        %vm413 = vc.u32 %v405, %v409
        %v414 = vsel %vm413, 1, 0
        %v415 = vadd.s32 %v405, %v409
        %v416 = vadd.s32 %v408, %v414
        %vm417 = vc.u32 %v415, %v411
        %v418 = vsel %vm417, 1, 0
        %v419 = vadd.s32 %v415, %v411
        %v420 = vadd.s32 %v416, %v418
        %v421 = vadd.s32 %v420, %v410
        %v422 = vadd.s32 %v421, %v412
        %v423 = vand.u32 %v400, 65535
        %v424 = vshrl.u32 %v400, 16
        %v425 = vand.u32 %v395, 65535
        %v426 = vshrl.u32 %v395, 16
        %v427 = vmul.u32 %v423, %v425
        %v428 = vmul.u32 %v423, %v426
        %v429 = vmul.u32 %v424, %v425
        %v430 = vmul.u32 %v424, %v426
        %v431 = vshll.u32 %v428, 16
        %v432 = vshrl.u32 %v428, 16
        %v433 = vshll.u32 %v429, 16
        %v434 = vshrl.u32 %v429, 16
        %vm435 = vc.u32 %v427, %v431
        %v436 = vsel %vm435, 1, 0
        %v437 = vadd.s32 %v427, %v431
        %v438 = vadd.s32 %v430, %v436
        %vm439 = vc.u32 %v437, %v433
        %v440 = vsel %vm439, 1, 0
        %v441 = vadd.s32 %v437, %v433
        %v442 = vadd.s32 %v438, %v440
        %v443 = vadd.s32 %v442, %v432
        %v444 = vadd.s32 %v443, %v434
        %v445 = vmul.u32 %v400, %v391
        %v446 = vadd.s32 %v422, %v441
        %vm447 = vc.u32 %v422, %v441
        %v448 = vadd.s32 %v444, 1
        %v449 = vsel %vm447, %v448, %v444
        %v450 = vadd.s32 %v445, %v449
        %v451 = vadd.s32 %v450, 536870912
        %v452 = vshrl.u32 %v451, 30
        %v453 = vshll.u32 %v452, 30
        %v454 = vsub.s32 %v450, %v453
        %vm455 = vcmp.lt.s32.totalorder %v454, 0
        %v456 = vsub.s32 0, %v454
        %v457 = vsel %vm455, %v456, %v454
        %v458 = vclz %v457
        %v459 = vsub.s32 %v458, 2
        %vm460 = vcmp.gt.s32.totalorder 0, %v459
        %v461 = vsel %vm460, 0, %v459
        %v462 = vsub.s32 32, %v461
        %v463 = vshll.u32 %v454, %v461
        %v464 = vshrl.u32 %v446, %v462
        %v465 = vor.u32 %v463, %v464
        %v466 = vsub.s32 4294967266, %v461
        %v467 = vadd.s32 %v466, 127
        %v468 = vshll.u32 %v467, 23
        %v469 = vor.u32 4788187, %v468
        %v470 = vand.u32 2147483647, %v469
        %v472 = vcvt.s32.f32 %v465
        %v473 = vmul.f32 %v472, %v470
        %v474 = vxor.u32 %v473, 2147483648
        %v475 = vsel %vm354, %v474, %v473
        %v476 = vsub.s32 4, %v452
        %v477 = vsel %vm354, %v476, %v452
        %v478 = vsel %vm353, %v351, %v475
        %v479 = vsel %vm353, 0, %v477
        %v480 = vmul.f32 %v478, %v478
        %v481 = vmul.f32 %v480, -0.001358992
        %v482 = vadd.f32 %v481, 0.041655596
        %v483 = vmul.f32 %v480, %v482
        %v484 = vadd.f32 %v483, -0.4999988
        %v485 = vmul.f32 %v480, %v484
        %v486 = vadd.f32 1.0, %v485
        %v487 = vmul.f32 %v478, %v478
        %v488 = vmul.f32 %v487, -0.00019511016
        %v489 = vadd.f32 %v488, 0.008332121
        %v490 = vmul.f32 %v487, %v489
        %v491 = vadd.f32 %v490, -0.16666654
        %v492 = vmul.f32 %v487, %v491
        %v493 = vadd.f32 %v492, 1.0
        %v494 = vmul.f32 %v493, %v478
        %vm495 = vweird.f32 %v351
        %v496 = vand.u32 %v479, 3
        %vm497 = vcmp.lt.s32.totalorder %v496, 2
        %vm498 = vcmp.eq.s32.totalorder %v496, 0
        %v499 = vxor.u32 %v494, 2147483648
        %v500 = vsel %vm498, %v486, %v499
        %vm501 = vcmp.eq.s32.totalorder %v496, 2
        %v502 = vxor.u32 %v486, 2147483648
        %v503 = vsel %vm501, %v502, %v494
        %v504 = vsel %vm497, %v500, %v503
        %v505 = vsel %vm495, nan, %v504
        %v506 = vand.u32 2147483647, %v350
        %vm507 = vcmp.le.f32.partialorder %v506, 0.7853982
        %vm508 = vcmp.lt.s32.totalorder %v350, 0
        %v509 = vand.u32 %v350, 2139095040
        %v510 = vshrl.u32 %v509, 23
        %v511 = vsub.s32 %v510, 127
        %v512 = vand.u32 2147483647, %v350
        %v513 = vand.u32 %v512, 8388607
        %v514 = vor.u32 %v513, 8388608
        %v515 = vsub.s32 0, %v514
        %v516 = vadd.s32 %v511, 1
        %vm517 = vcmp.gt.s32.totalorder %v516, 0
        %v518 = vsel %vm517, %v516, 0
        %v519 = vshrl.u32 %v518, 5
        %v520 = vand.u32 %v518, 31
        %v521 = vsub.s32 32, %v520
        %v522 = vshrl.u32 683565275, %v521
        %v523 = vshll.u32 683565275, %v520
        %v524 = vshrl.u32 2475754826, %v521
        %v525 = vor.u32 %v523, %v524
        %v526 = vshll.u32 2475754826, %v520
        %v527 = vshrl.u32 2131351028, %v521
        %v528 = vor.u32 %v526, %v527
        %v529 = vshll.u32 2131351028, %v520
        %v530 = vshrl.u32 2102212464, %v521
        %v531 = vor.u32 %v529, %v530
        %v532 = vshll.u32 2102212464, %v520
        %v533 = vshrl.u32 920167782, %v521
        %v534 = vor.u32 %v532, %v533
        %v535 = vshll.u32 920167782, %v520
        %v536 = vshrl.u32 1326507024, %v521
        %v537 = vor.u32 %v535, %v536
        %vm538 = vcmp.lt.s32.totalorder %v519, 1
        %vm539 = vcmp.lt.s32.totalorder %v519, 2
        %vm540 = vcmp.lt.s32.totalorder %v519, 3
        %vm541 = vcmp.lt.s32.totalorder %v519, 4
        %v542 = vsel %vm538, %v522, %v525
        %v543 = vsel %vm541, %v531, 2102212464
        %v544 = vsel %vm540, %v528, %v543
        %v545 = vsel %vm539, %v542, %v544
        %v546 = vsel %vm538, %v525, %v528
        %v547 = vsel %vm541, %v534, 920167782
        %v548 = vsel %vm540, %v531, %v547
        %v549 = vsel %vm539, %v546, %v548
        %v550 = vsel %vm538, %v528, %v531
        %v551 = vsel %vm541, %v537, 1326507024
        %v552 = vsel %vm540, %v534, %v551
        %v553 = vsel %vm539, %v550, %v552
        %v554 = vshll.u32 %v514, 8
        %v555 = vand.u32 %v554, 65535
        %v556 = vshrl.u32 %v554, 16
        %v557 = vand.u32 %v553, 65535
        %v558 = vshrl.u32 %v553, 16
        %v559 = vmul.u32 %v555, %v557
        %v560 = vmul.u32 %v555, %v558
        %v561 = vmul.u32 %v556, %v557
        %v562 = vmul.u32 %v556, %v558
        %v563 = vshll.u32 %v560, 16
        %v564 = vshrl.u32 %v560, 16
        %v565 = vshll.u32 %v561, 16
        %v566 = vshrl.u32 %v561, 16
        %vm567 = vc.u32 %v559, %v563
        %v568 = vsel %vm567, 1, 0
        %v569 = vadd.s32 %v559, %v563
        %v570 = vadd.s32 %v562, %v568
        %vm571 = vc.u32 %v569, %v565
        %v572 = vsel %vm571, 1, 0
        %v573 = vadd.s32 %v569, %v565
        %v574 = vadd.s32 %v570, %v572
        %v575 = vadd.s32 %v574, %v564
        %v576 = vadd.s32 %v575, %v566
        %v577 = vand.u32 %v554, 65535
        %v578 = vshrl.u32 %v554, 16
        %v579 = vand.u32 %v549, 65535
        %v580 = vshrl.u32 %v549, 16
        %v581 = vmul.u32 %v577, %v579
        %v582 = vmul.u32 %v577, %v580
        %v583 = vmul.u32 %v578, %v579
        %v584 = vmul.u32 %v578, %v580
        %v585 = vshll.u32 %v582, 16
        %v586 = vshrl.u32 %v582, 16
        %v587 = vshll.u32 %v583, 16
        %v588 = vshrl.u32 %v583, 16
        %vm589 = vc.u32 %v581, %v585
        %v590 = vsel %vm589, 1, 0
        %v591 = vadd.s32 %v581, %v585
        %v592 = vadd.s32 %v584, %v590
        %vm593 = vc.u32 %v591, %v587
        %v594 = vsel %vm593, 1, 0
        %v595 = vadd.s32 %v591, %v587
        %v596 = vadd.s32 %v592, %v594
        %v597 = vadd.s32 %v596, %v586
        %v598 = vadd.s32 %v597, %v588
        %v599 = vmul.u32 %v554, %v545
        %v600 = vadd.s32 %v576, %v595
        %vm601 = vc.u32 %v576, %v595
        %v602 = vadd.s32 %v598, 1
        %v603 = vsel %vm601, %v602, %v598
        %v604 = vadd.s32 %v599, %v603
        %v605 = vadd.s32 %v604, 536870912
        %v606 = vshrl.u32 %v605, 30
        %v607 = vshll.u32 %v606, 30
        %v608 = vsub.s32 %v604, %v607
        %vm609 = vcmp.lt.s32.totalorder %v608, 0
        %v610 = vsub.s32 0, %v608
        %v611 = vsel %vm609, %v610, %v608
        %v612 = vclz %v611
        %v613 = vsub.s32 %v612, 2
        %vm614 = vcmp.gt.s32.totalorder 0, %v613
        %v615 = vsel %vm614, 0, %v613
        %v616 = vsub.s32 32, %v615
        %v617 = vshll.u32 %v608, %v615
        %v618 = vshrl.u32 %v600, %v616
        %v619 = vor.u32 %v617, %v618
        %v620 = vsub.s32 4294967266, %v615
        %v621 = vadd.s32 %v620, 127
        %v622 = vshll.u32 %v621, 23
        %v623 = vor.u32 4788187, %v622
        %v624 = vand.u32 2147483647, %v623
        %v626 = vcvt.s32.f32 %v619
        %v627 = vmul.f32 %v626, %v624
        %v628 = vxor.u32 %v627, 2147483648
        %v629 = vsel %vm508, %v628, %v627
        %v630 = vsub.s32 4, %v606
        %v631 = vsel %vm508, %v630, %v606
        %v632 = vsel %vm507, %v350, %v629
        %v633 = vsel %vm507, 0, %v631
        %v634 = vmul.f32 %v632, %v632
        %v635 = vmul.f32 %v634, -0.001358992
        %v636 = vadd.f32 %v635, 0.041655596
        %v637 = vmul.f32 %v634, %v636
        %v638 = vadd.f32 %v637, -0.4999988
        %v639 = vmul.f32 %v634, %v638
        %v640 = vadd.f32 1.0, %v639
        %v641 = vmul.f32 %v632, %v632
        %v642 = vmul.f32 %v641, -0.00019511016
        %v643 = vadd.f32 %v642, 0.008332121
        %v644 = vmul.f32 %v641, %v643
        %v645 = vadd.f32 %v644, -0.16666654
        %v646 = vmul.f32 %v641, %v645
        %v647 = vadd.f32 %v646, 1.0
        %v648 = vmul.f32 %v647, %v632
        %vm649 = vweird.f32 %v350
        %v650 = vadd.s32 %v633, 3
        %v651 = vand.u32 %v650, 3
        %vm652 = vcmp.lt.s32.totalorder %v651, 2
        %vm653 = vcmp.eq.s32.totalorder %v651, 0
        %v654 = vxor.u32 %v648, 2147483648
        %v655 = vsel %vm653, %v640, %v654
        %vm656 = vcmp.eq.s32.totalorder %v651, 2
        %v657 = vxor.u32 %v640, 2147483648
        %v658 = vsel %vm656, %v657, %v648
        %v659 = vsel %vm652, %v655, %v658
        %v660 = vsel %vm649, nan, %v659
        %v661 = vmul.f32 %v505, %v660
        %v662 = vand.u32 2147483647, %v351
        %vm663 = vcmp.le.f32.partialorder %v662, 0.7853982
        %vm664 = vcmp.lt.s32.totalorder %v351, 0
        %v665 = vand.u32 %v351, 2139095040
        %v666 = vshrl.u32 %v665, 23
        %v667 = vsub.s32 %v666, 127
        %v668 = vand.u32 2147483647, %v351
        %v669 = vand.u32 %v668, 8388607
        %v670 = vor.u32 %v669, 8388608
        %v671 = vsub.s32 0, %v670
        %v672 = vadd.s32 %v667, 1
        %vm673 = vcmp.gt.s32.totalorder %v672, 0
        %v674 = vsel %vm673, %v672, 0
        %v675 = vshrl.u32 %v674, 5
        %v676 = vand.u32 %v674, 31
        %v677 = vsub.s32 32, %v676
        %v678 = vshrl.u32 683565275, %v677
        %v679 = vshll.u32 683565275, %v676
        %v680 = vshrl.u32 2475754826, %v677
        %v681 = vor.u32 %v679, %v680
        %v682 = vshll.u32 2475754826, %v676
        %v683 = vshrl.u32 2131351028, %v677
        %v684 = vor.u32 %v682, %v683
        %v685 = vshll.u32 2131351028, %v676
        %v686 = vshrl.u32 2102212464, %v677
        %v687 = vor.u32 %v685, %v686
        %v688 = vshll.u32 2102212464, %v676
        %v689 = vshrl.u32 920167782, %v677
        %v690 = vor.u32 %v688, %v689
        %v691 = vshll.u32 920167782, %v676
        %v692 = vshrl.u32 1326507024, %v677
        %v693 = vor.u32 %v691, %v692
        %vm694 = vcmp.lt.s32.totalorder %v675, 1
        %vm695 = vcmp.lt.s32.totalorder %v675, 2
        %vm696 = vcmp.lt.s32.totalorder %v675, 3
        %vm697 = vcmp.lt.s32.totalorder %v675, 4
        %v698 = vsel %vm694, %v678, %v681
        %v699 = vsel %vm697, %v687, 2102212464
        %v700 = vsel %vm696, %v684, %v699
        %v701 = vsel %vm695, %v698, %v700
        %v702 = vsel %vm694, %v681, %v684
        %v703 = vsel %vm697, %v690, 920167782
        %v704 = vsel %vm696, %v687, %v703
        %v705 = vsel %vm695, %v702, %v704
        %v706 = vsel %vm694, %v684, %v687
        %v707 = vsel %vm697, %v693, 1326507024
        %v708 = vsel %vm696, %v690, %v707
        %v709 = vsel %vm695, %v706, %v708
        %v710 = vshll.u32 %v670, 8
        %v711 = vand.u32 %v710, 65535
        %v712 = vshrl.u32 %v710, 16
        %v713 = vand.u32 %v709, 65535
        %v714 = vshrl.u32 %v709, 16
        %v715 = vmul.u32 %v711, %v713
        %v716 = vmul.u32 %v711, %v714
        %v717 = vmul.u32 %v712, %v713
        %v718 = vmul.u32 %v712, %v714
        %v719 = vshll.u32 %v716, 16
        %v720 = vshrl.u32 %v716, 16
        %v721 = vshll.u32 %v717, 16
        %v722 = vshrl.u32 %v717, 16
        %vm723 = vc.u32 %v715, %v719
        %v724 = vsel %vm723, 1, 0
        %v725 = vadd.s32 %v715, %v719
        %v726 = vadd.s32 %v718, %v724
        %vm727 = vc.u32 %v725, %v721
        %v728 = vsel %vm727, 1, 0
        %v729 = vadd.s32 %v725, %v721
        %v730 = vadd.s32 %v726, %v728
        %v731 = vadd.s32 %v730, %v720
        %v732 = vadd.s32 %v731, %v722
        %v733 = vand.u32 %v710, 65535
        %v734 = vshrl.u32 %v710, 16
        %v735 = vand.u32 %v705, 65535
        %v736 = vshrl.u32 %v705, 16
        %v737 = vmul.u32 %v733, %v735
        %v738 = vmul.u32 %v733, %v736
        %v739 = vmul.u32 %v734, %v735
        %v740 = vmul.u32 %v734, %v736
        %v741 = vshll.u32 %v738, 16
        %v742 = vshrl.u32 %v738, 16
        %v743 = vshll.u32 %v739, 16
        %v744 = vshrl.u32 %v739, 16
        %vm745 = vc.u32 %v737, %v741
        %v746 = vsel %vm745, 1, 0
        %v747 = vadd.s32 %v737, %v741
        %v748 = vadd.s32 %v740, %v746
        %vm749 = vc.u32 %v747, %v743
        %v750 = vsel %vm749, 1, 0
        %v751 = vadd.s32 %v747, %v743
        %v752 = vadd.s32 %v748, %v750
        %v753 = vadd.s32 %v752, %v742
        %v754 = vadd.s32 %v753, %v744
        %v755 = vmul.u32 %v710, %v701
        %v756 = vadd.s32 %v732, %v751
        %vm757 = vc.u32 %v732, %v751
        %v758 = vadd.s32 %v754, 1
        %v759 = vsel %vm757, %v758, %v754
        %v760 = vadd.s32 %v755, %v759
        %v761 = vadd.s32 %v760, 536870912
        %v762 = vshrl.u32 %v761, 30
        %v763 = vshll.u32 %v762, 30
        %v764 = vsub.s32 %v760, %v763
        %vm765 = vcmp.lt.s32.totalorder %v764, 0
        %v766 = vsub.s32 0, %v764
        %v767 = vsel %vm765, %v766, %v764
        %v768 = vclz %v767
        %v769 = vsub.s32 %v768, 2
        %vm770 = vcmp.gt.s32.totalorder 0, %v769
        %v771 = vsel %vm770, 0, %v769
        %v772 = vsub.s32 32, %v771
        %v773 = vshll.u32 %v764, %v771
        %v774 = vshrl.u32 %v756, %v772
        %v775 = vor.u32 %v773, %v774
        %v776 = vsub.s32 4294967266, %v771
        %v777 = vadd.s32 %v776, 127
        %v778 = vshll.u32 %v777, 23
        %v779 = vor.u32 4788187, %v778
        %v780 = vand.u32 2147483647, %v779
        %v782 = vcvt.s32.f32 %v775
        %v783 = vmul.f32 %v782, %v780
        %v784 = vxor.u32 %v783, 2147483648
        %v785 = vsel %vm664, %v784, %v783
        %v786 = vsub.s32 4, %v762
        %v787 = vsel %vm664, %v786, %v762
        %v788 = vsel %vm663, %v351, %v785
        %v789 = vsel %vm663, 0, %v787
        %v790 = vmul.f32 %v788, %v788
        %v791 = vmul.f32 %v790, -0.001358992
        %v792 = vadd.f32 %v791, 0.041655596
        %v793 = vmul.f32 %v790, %v792
        %v794 = vadd.f32 %v793, -0.4999988
        %v795 = vmul.f32 %v790, %v794
        %v796 = vadd.f32 1.0, %v795
        %v797 = vmul.f32 %v788, %v788
        %v798 = vmul.f32 %v797, -0.00019511016
        %v799 = vadd.f32 %v798, 0.008332121
        %v800 = vmul.f32 %v797, %v799
        %v801 = vadd.f32 %v800, -0.16666654
        %v802 = vmul.f32 %v797, %v801
        %v803 = vadd.f32 %v802, 1.0
        %v804 = vmul.f32 %v803, %v788
        %vm805 = vweird.f32 %v351
        %v806 = vadd.s32 %v789, 3
        %v807 = vand.u32 %v806, 3
        %vm808 = vcmp.lt.s32.totalorder %v807, 2
        %vm809 = vcmp.eq.s32.totalorder %v807, 0
        %v810 = vxor.u32 %v804, 2147483648
        %v811 = vsel %vm809, %v796, %v810
        %vm812 = vcmp.eq.s32.totalorder %v807, 2
        %v813 = vxor.u32 %v796, 2147483648
        %v814 = vsel %vm812, %v813, %v804
        %v815 = vsel %vm808, %v811, %v814
        %v816 = vsel %vm805, nan, %v815
        %v817 = vand.u32 2147483647, %v350
        %vm818 = vcmp.le.f32.partialorder %v817, 0.7853982
        %vm819 = vcmp.lt.s32.totalorder %v350, 0
        %v820 = vand.u32 %v350, 2139095040
        %v821 = vshrl.u32 %v820, 23
        %v822 = vsub.s32 %v821, 127
        %v823 = vand.u32 2147483647, %v350
        %v824 = vand.u32 %v823, 8388607
        %v825 = vor.u32 %v824, 8388608
        %v826 = vsub.s32 0, %v825
        %v827 = vadd.s32 %v822, 1
        %vm828 = vcmp.gt.s32.totalorder %v827, 0
        %v829 = vsel %vm828, %v827, 0
        %v830 = vshrl.u32 %v829, 5
        %v831 = vand.u32 %v829, 31
        %v832 = vsub.s32 32, %v831
        %v833 = vshrl.u32 683565275, %v832
        %v834 = vshll.u32 683565275, %v831
        %v835 = vshrl.u32 2475754826, %v832
        %v836 = vor.u32 %v834, %v835
        %v837 = vshll.u32 2475754826, %v831
        %v838 = vshrl.u32 2131351028, %v832
        %v839 = vor.u32 %v837, %v838
        %v840 = vshll.u32 2131351028, %v831
        %v841 = vshrl.u32 2102212464, %v832
        %v842 = vor.u32 %v840, %v841
        %v843 = vshll.u32 2102212464, %v831
        %v844 = vshrl.u32 920167782, %v832
        %v845 = vor.u32 %v843, %v844
        %v846 = vshll.u32 920167782, %v831
        %v847 = vshrl.u32 1326507024, %v832
        %v848 = vor.u32 %v846, %v847
        %vm849 = vcmp.lt.s32.totalorder %v830, 1
        %vm850 = vcmp.lt.s32.totalorder %v830, 2
        %vm851 = vcmp.lt.s32.totalorder %v830, 3
        %vm852 = vcmp.lt.s32.totalorder %v830, 4
        %v853 = vsel %vm849, %v833, %v836
        %v854 = vsel %vm852, %v842, 2102212464
        %v855 = vsel %vm851, %v839, %v854
        %v856 = vsel %vm850, %v853, %v855
        %v857 = vsel %vm849, %v836, %v839
        %v858 = vsel %vm852, %v845, 920167782
        %v859 = vsel %vm851, %v842, %v858
        %v860 = vsel %vm850, %v857, %v859
        %v861 = vsel %vm849, %v839, %v842
        %v862 = vsel %vm852, %v848, 1326507024
        %v863 = vsel %vm851, %v845, %v862
        %v864 = vsel %vm850, %v861, %v863
        %v865 = vshll.u32 %v825, 8
        %v866 = vand.u32 %v865, 65535
        %v867 = vshrl.u32 %v865, 16
        %v868 = vand.u32 %v864, 65535
        %v869 = vshrl.u32 %v864, 16
        %v870 = vmul.u32 %v866, %v868
        %v871 = vmul.u32 %v866, %v869
        %v872 = vmul.u32 %v867, %v868
        %v873 = vmul.u32 %v867, %v869
        %v874 = vshll.u32 %v871, 16
        %v875 = vshrl.u32 %v871, 16
        %v876 = vshll.u32 %v872, 16
        %v877 = vshrl.u32 %v872, 16
        %vm878 = vc.u32 %v870, %v874
        %v879 = vsel %vm878, 1, 0
        %v880 = vadd.s32 %v870, %v874
        %v881 = vadd.s32 %v873, %v879
        %vm882 = vc.u32 %v880, %v876
        %v883 = vsel %vm882, 1, 0
        %v884 = vadd.s32 %v880, %v876
        %v885 = vadd.s32 %v881, %v883
        %v886 = vadd.s32 %v885, %v875
        %v887 = vadd.s32 %v886, %v877
        %v888 = vand.u32 %v865, 65535
        %v889 = vshrl.u32 %v865, 16
        %v890 = vand.u32 %v860, 65535
        %v891 = vshrl.u32 %v860, 16
        %v892 = vmul.u32 %v888, %v890
        %v893 = vmul.u32 %v888, %v891
        %v894 = vmul.u32 %v889, %v890
        %v895 = vmul.u32 %v889, %v891
        %v896 = vshll.u32 %v893, 16
        %v897 = vshrl.u32 %v893, 16
        %v898 = vshll.u32 %v894, 16
        %v899 = vshrl.u32 %v894, 16
        %vm900 = vc.u32 %v892, %v896
        %v901 = vsel %vm900, 1, 0
        %v902 = vadd.s32 %v892, %v896
        %v903 = vadd.s32 %v895, %v901
        %vm904 = vc.u32 %v902, %v898
        %v905 = vsel %vm904, 1, 0
        %v906 = vadd.s32 %v902, %v898
        %v907 = vadd.s32 %v903, %v905
        %v908 = vadd.s32 %v907, %v897
        %v909 = vadd.s32 %v908, %v899
        %v910 = vmul.u32 %v865, %v856
        %v911 = vadd.s32 %v887, %v906
        %vm912 = vc.u32 %v887, %v906
        %v913 = vadd.s32 %v909, 1
        %v914 = vsel %vm912, %v913, %v909
        %v915 = vadd.s32 %v910, %v914
        %v916 = vadd.s32 %v915, 536870912
        %v917 = vshrl.u32 %v916, 30
        %v918 = vshll.u32 %v917, 30
        %v919 = vsub.s32 %v915, %v918
        %vm920 = vcmp.lt.s32.totalorder %v919, 0
        %v921 = vsub.s32 0, %v919
        %v922 = vsel %vm920, %v921, %v919
        %v923 = vclz %v922
        %v924 = vsub.s32 %v923, 2
        %vm925 = vcmp.gt.s32.totalorder 0, %v924
        %v926 = vsel %vm925, 0, %v924
        %v927 = vsub.s32 32, %v926
        %v928 = vshll.u32 %v919, %v926
        %v929 = vshrl.u32 %v911, %v927
        %v930 = vor.u32 %v928, %v929
        %v931 = vsub.s32 4294967266, %v926
        %v932 = vadd.s32 %v931, 127
        %v933 = vshll.u32 %v932, 23
        %v934 = vor.u32 4788187, %v933
        %v935 = vand.u32 2147483647, %v934
        %v937 = vcvt.s32.f32 %v930
        %v938 = vmul.f32 %v937, %v935
        %v939 = vxor.u32 %v938, 2147483648
        %v940 = vsel %vm819, %v939, %v938
        %v941 = vsub.s32 4, %v917
        %v942 = vsel %vm819, %v941, %v917
        %v943 = vsel %vm818, %v350, %v940
        %v944 = vsel %vm818, 0, %v942
        %v945 = vmul.f32 %v943, %v943
        %v946 = vmul.f32 %v945, -0.001358992
        %v947 = vadd.f32 %v946, 0.041655596
        %v948 = vmul.f32 %v945, %v947
        %v949 = vadd.f32 %v948, -0.4999988
        %v950 = vmul.f32 %v945, %v949
        %v951 = vadd.f32 1.0, %v950
        %v952 = vmul.f32 %v943, %v943
        %v953 = vmul.f32 %v952, -0.00019511016
        %v954 = vadd.f32 %v953, 0.008332121
        %v955 = vmul.f32 %v952, %v954
        %v956 = vadd.f32 %v955, -0.16666654
        %v957 = vmul.f32 %v952, %v956
        %v958 = vadd.f32 %v957, 1.0
        %v959 = vmul.f32 %v958, %v943
        %vm960 = vweird.f32 %v350
        %v961 = vand.u32 %v944, 3
        %vm962 = vcmp.lt.s32.totalorder %v961, 2
        %vm963 = vcmp.eq.s32.totalorder %v961, 0
        %v964 = vxor.u32 %v959, 2147483648
        %v965 = vsel %vm963, %v951, %v964
        %vm966 = vcmp.eq.s32.totalorder %v961, 2
        %v967 = vxor.u32 %v951, 2147483648
        %v968 = vsel %vm966, %v967, %v959
        %v969 = vsel %vm962, %v965, %v968
        %v970 = vsel %vm960, nan, %v969
        %v971 = vmul.f32 %v505, %v970
        %p972 = scmp.eq.s32.totalorder %s23, 0
        // Predicated region
        $region57: #{forward.2} parent=47 // pred_check
          %p973 = pneg %p972
        $region58: #{forward.2} parent=47 // pred_check_branch
          %975 = sbr.rel (%p973) target = $region60
        $region59: #{forward.2} parent=47 // pred_region
          %v976 = vlaneseq
          %vm977 = vcmp.ge.s32.totalorder %v976, 0
          %vm978 = vcmp.lt.s32.totalorder %v976, 256
          %vm979 = vmand %vm977, %vm978
          %980 = vst.msk [vmem:[%s7] ss:$4 sm:$0x3] %vm979, %v661
          %s981 = scalar_lea.vmem %s7, 1
          %982 = vst.msk [vmem:[%s981] ss:$4 sm:$0x3] %vm979, %v816
          %s983 = scalar_lea.vmem %s7, 2
          %984 = vst.msk [vmem:[%s983] ss:$4 sm:$0x3] %vm979, %v971
        $region60: #{forward.2} parent=47 // pred_fallthru
          _
        %v985 = vmul.f32 %v661, 0.30151135
        %v986 = vmul.f32 %v816, 0.30151135
        %v987 = vadd.f32 %v985, %v986
        %v988 = vmul.f32 %v971, 0.90453404
        %v989 = vadd.f32 %v987, %v988
        %v990 = vmax.f32 %v989, 0.0
        %v991 = vmul.f32 %v990, 0.6
        %v992 = vadd.f32 %v991, 0.4
        %v993 = vld [vmem:[%s5] ss:$4 sm:$0x3]
        %s994 = scalar_lea.vmem %s5, 1
        %v995 = vld [vmem:[%s994] ss:$4 sm:$0x3]
        %s996 = scalar_lea.vmem %s5, 2
        %v997 = vld [vmem:[%s996] ss:$4 sm:$0x3]
        %s998 = smul.u32 %s23, 128
        %s999 = sld [smem:[#allocation2 + %s998]]
        %v1000 = vstv %s999
        %v1001 = vmul.f32 %v1000, %v993
        %s1002 = sadd.s32 %s998, 1
        %s1003 = sld [smem:[#allocation2 + %s1002]]
        %v1004 = vstv %s1003
        %v1005 = vmul.f32 %v1004, %v995
        %v1006 = vadd.f32 %v1001, %v1005
        %s1007 = sadd.s32 %s998, 2
        %s1008 = sld [smem:[#allocation2 + %s1007]]
        %v1009 = vstv %s1008
        %v1010 = vmul.f32 %v1009, %v997
        %v1011 = vadd.f32 %v1006, %v1010
        %s1012 = sld [smem:[#allocation4 + %s998]]
        %v1013 = vstv %s1012
        %v1014 = vadd.f32 %v1011, %v1013
        %s1015 = sadd.s32 %s998, 3
        %s1016 = sld [smem:[#allocation2 + %s1015]]
        %v1017 = vstv %s1016
        %v1018 = vmul.f32 %v1017, %v993
        %s1019 = sadd.s32 %s998, 4
        %s1020 = sld [smem:[#allocation2 + %s1019]]
        %v1021 = vstv %s1020
        %v1022 = vmul.f32 %v1021, %v995
        %v1023 = vadd.f32 %v1018, %v1022
        %s1024 = sadd.s32 %s998, 5
        %s1025 = sld [smem:[#allocation2 + %s1024]]
        %v1026 = vstv %s1025
        %v1027 = vmul.f32 %v1026, %v997
        %v1028 = vadd.f32 %v1023, %v1027
        %s1029 = sld [smem:[#allocation4 + %s1002]]
        %v1030 = vstv %s1029
        %v1031 = vadd.f32 %v1028, %v1030
        %s1032 = sadd.s32 %s998, 6
        %s1033 = sld [smem:[#allocation2 + %s1032]]
        %v1034 = vstv %s1033
        %v1035 = vmul.f32 %v1034, %v993
        %s1036 = sadd.s32 %s998, 7
        %s1037 = sld [smem:[#allocation2 + %s1036]]
        %v1038 = vstv %s1037
        %v1039 = vmul.f32 %v1038, %v995
        %v1040 = vadd.f32 %v1035, %v1039
        %s1041 = sadd.s32 %s998, 8
        %s1042 = sld [smem:[#allocation2 + %s1041]]
        %v1043 = vstv %s1042
        %v1044 = vmul.f32 %v1043, %v997
        %v1045 = vadd.f32 %v1040, %v1044
        %s1046 = sld [smem:[#allocation4 + %s1007]]
        %v1047 = vstv %s1046
        %v1048 = vadd.f32 %v1045, %v1047
        %vm1049 = vcmp.gt.f32.partialorder %v1048, 1e-06
        %v1050 = vsel %vm1049, %v1048, 1.0
        %v1051 = vrcp.pop %v1050
        %v1052 = vmul.f32 %v1050, %v1051
        %v1053 = vsub.f32 1.0, %v1052
        %v1054 = vmul.f32 %v1051, %v1053
        %v1055 = vadd.f32 %v1051, %v1054
        %vm1056 = vweird.f32 %v1050
        %vm1057 = vweird.f32 %v1051
        %vm1058 = vmor %vm1056, %vm1057
        %v1059 = vsel %vm1058, %v1051, %v1055
        %v1060 = vand.u32 2147483647, %v1050
        %vm1061 = vcmp.eq.f32.partialorder %v1060, 8.507059e+37
        %v1062 = vand.u32 %v1050, 2147483648
        %v1063 = vor.u32 1.1754944e-38, %v1062
        %v1064 = vsel %vm1061, %v1063, %v1059
        %v1065 = vmul.f32 1.0, %v1064
        %v1066 = vmul.f32 %v1014, %v1065
        %v1067 = vlaneseq
        %vm1068 = vcmp.ge.s32.totalorder %v1067, 0
        %vm1069 = vcmp.lt.s32.totalorder %v1067, 256
        %vm1070 = vmand %vm1068, %vm1069
        %1071 = vst.msk [vmem:[%s344] ss:$2 sm:$0x3] %vm1070, %v1066
        %v1072 = vmul.f32 %v1031, %v1065
        %s1073 = scalar_lea.vmem %s344, 1
        %1074 = vst.msk [vmem:[%s1073] ss:$2 sm:$0x3] %vm1070, %v1072
        %v1075 = vsel %vm1049, 1.0, 0.0
        %v1076 = vld [vmem:[%s6] sm:$0x3]
        %v1077 = vmul.f32 %v1075, %v1076
        %v1078 = vmul.f32 %v992, %v1077
        %v1079 = vld [vmem:[%s4] ss:$4 sm:$0x3]
        %v1080 = vmul.f32 %v1079, %v1078
        %1081 = vst.msk [vmem:[%s349] ss:$4 sm:$0x3] %vm1070, %v1080
        %s1082 = scalar_lea.vmem %s4, 1
        %v1083 = vld [vmem:[%s1082] ss:$4 sm:$0x3]
        %v1084 = vmul.f32 %v1083, %v1078
        %s1085 = scalar_lea.vmem %s349, 1
        %1086 = vst.msk [vmem:[%s1085] ss:$4 sm:$0x3] %vm1070, %v1084
        %s1087 = scalar_lea.vmem %s4, 2
        %v1088 = vld [vmem:[%s1087] ss:$4 sm:$0x3]
        %v1089 = vmul.f32 %v1088, %v1078
        %s1090 = scalar_lea.vmem %s349, 2
        %1091 = vst.msk [vmem:[%s1090] ss:$4 sm:$0x3] %vm1070, %v1089
        %s1092 = scalar_lea.vmem %s349, 3
        %1093 = vst.msk [vmem:[%s1092] ss:$4 sm:$0x3] %vm1070, %v1077
        %p1094 = scmp.lt.s32.totalorder %s23, 1
        %s1095 = scalar_select %p1094, %s23, 1
        %s1096 = smul.addr %s1095, 2
        %s1097 = smul.addr %s1096, 2
        %s1098 = scalar_lea.vmem %s8, %s1097
        %p1099 = scmp.lt.s32.totalorder %s23, 1
        %s1100 = scalar_select %p1099, %s23, 1
        %s1101 = smul.addr %s1100, 2
        %s1102 = smul.addr %s1101, 4
        %s1103 = scalar_lea.vmem %s9, %s1102
        // Predicated region
        $region61: #{forward.2} parent=47 // pred_check
          %p1104 = pneg %p183
        $region62: #{forward.2} parent=47 // pred_check_branch
          %1106 = sbr.rel (%p1104) target = $region64
        $region63: #{forward.2} parent=47 // pred_region
          _
        $region64: #{forward.2} parent=47 // pred_fallthru
          _
        // Predicated region
        $region65: #{forward.2} parent=47 // pred_check
          %p1107 = pneg %p209
        $region66: #{forward.2} parent=47 // pred_check_branch
          %1109 = sbr.rel (%p1107) target = $region68
        $region67: #{forward.2} parent=47 // pred_region
          _
        $region68: #{forward.2} parent=47 // pred_fallthru
          _
        // Predicated region
        $region69: #{forward.2} parent=47 // pred_check
          %p1110 = pneg %p235
        $region70: #{forward.2} parent=47 // pred_check_branch
          %1112 = sbr.rel (%p1110) target = $region72
        $region71: #{forward.2} parent=47 // pred_region
          _
        $region72: #{forward.2} parent=47 // pred_fallthru
          _
        // Predicated region
        $region73: #{forward.2} parent=47 // pred_check
          %p1113 = pneg %p183
        $region74: #{forward.2} parent=47 // pred_check_branch
          %1115 = sbr.rel (%p1113) target = $region76
        $region75: #{forward.2} parent=47 // pred_region
          _
        $region76: #{forward.2} parent=47 // pred_fallthru
          _
      $region48: #{forward.2} parent=5 // pred_fallthru
        _
      %p1116 = scmp.le.s32.totalorder 2, %s18
      // Predicated region
      $region77: #{forward.2} parent=5 // pred_check
        %p1117 = pneg %p1116
      $region78: #{forward.2} parent=5 // pred_check_branch
        %1119 = sbr.rel (%p1117) target = $region80
      $region79: #{forward.2} parent=5 // pred_region
        %s1120 = ssub.s32 %s18, 2
        // Predicated region
        $region81: #{forward.2} parent=79 // pred_check
          %p1121 = pneg %p215
        $region82: #{forward.2} parent=79 // pred_check_branch
          %1123 = sbr.rel (%p1121) target = $region84
        $region83: #{forward.2} parent=79 // pred_region
          %p1124 = scmp.lt.s32.totalorder %s24, 1
          %s1125 = scalar_select %p1124, %s24, 1
          %s1126 = smul.addr %s1125, 2
          %s1127 = smul.addr %s1126, 2
          %s1128 = scalar_lea.vmem %s8, %s1127
        $region84: #{forward.2} parent=79 // pred_fallthru
          _
        // Predicated region
        $region85: #{forward.2} parent=79 // pred_check
          %p1129 = pneg %p241
        $region86: #{forward.2} parent=79 // pred_check_branch
          %1131 = sbr.rel (%p1129) target = $region88
        $region87: #{forward.2} parent=79 // pred_region
          %p1132 = scmp.lt.s32.totalorder %s24, 1
          %s1133 = scalar_select %p1132, %s24, 1
          %s1134 = smul.addr %s1133, 2
          %s1135 = smul.addr %s1134, 4
          %s1136 = scalar_lea.vmem %s9, %s1135
        $region88: #{forward.2} parent=79 // pred_fallthru
          _
      $region80: #{forward.2} parent=5 // pred_fallthru
        _
    $region6: #{forward.2} parent=1 // loop_footer
      %s22 = sadd.s32 1, %s18
    $region7: #{forward.2} parent=1 // loop_footer_branch
      %17 = sbr.rel target = $region3
    $region8: #{forward.2} parent=1 // loop_exit
      _
    %1137 = vsyncpa [#allocation3], 1
    %s1138 = scalar_lea.sflag [#allocation3], 1
    %1139 = vsyncpa %s1138, 1
    %1140 = vsyncpa [#allocation5], 1

// kernel: forward.3
$region0: #{forward.3}
  #allocation0 [shape = 'u32[]', space=smem, size = 0x4, offset = 0x4, fixed_abs, tag = 'smem constant byte address 0x4 - core index']
  #allocation1 [shape = 'u32[72,128]{1,0:T(1,128)}', space=vmem, size = 0x9000, scoped, tag = 'internal scratch']
  #allocation2 [shape = 'f32[256,4]{1,0:T(8,128)}', space=vmem, size = 0x20000, scoped, tag = 'scratch operand']
  #allocation3 [shape = 'f32[1,1]{1,0:T(1,128)S(6)}', space=smem, size = 0x200, scoped, tag = 'scoped memory for forward.3']
  %s0 = inlined_call_operand.<no memory space> [shape: f32[1,1], index: 0, kind: input, shape index: {}]
  %s1 = inlined_call_operand.vmem [shape: f32[2,2,256], index: 1, kind: input, shape index: {}]
  %s2 = inlined_call_operand.vmem [shape: f32[2,4,256], index: 2, kind: input, shape index: {}]
  %s3 = inlined_call_operand.vmem [shape: f32[2,256,4], index: 3, kind: output, shape index: {}]
  %s4 = sld [smem:[#allocation0]]
  $region53: #{forward.3} parent=0
    _
  %s6 = ssub.s32 1, %s4
  %s7 = scalar_select 0, %s6, %s4
  %8 = sst [smem:[#allocation3]] %s0
  loop: start=0, step=1, limit=4
  $region2: #{forward.3} parent=0 // loop_pre_header
    _
  $region3: #{forward.3} parent=0 // loop_header
    %s10 = sphi 0, %s14
    %p11 = scmp.ge.s32.totalorder %s10, 4
    %s17 = sphi 0, %s36
    %s18 = sphi 0, %s32
    %s19 = sphi 0, %s28
    %s20 = sphi 0, %s17
    %s21 = sphi 0, %s18
    %s22 = sphi 0, %s19
    %s23 = sphi 0, %s20
    %s24 = sphi 0, %s21
    %s25 = sphi 0, %s22
    %s37 = sphi 0, %s37
    %s39 = sphi 0, %s37
    %s40 = sphi 0, %s39
    %s54 = sphi 0, %s40
    %s62 = sphi 0, %s64
    %s65 = sphi 0, %s62
    %s66 = sphi 0, %s65
    %s82 = sphi 0, %s66
    %s90 = sphi 0, %s92
    %s93 = sphi 0, %s90
    %s94 = sphi 0, %s93
    %s110 = sphi 0, %s94
    %s118 = sphi 0, %s120
    %s121 = sphi 0, %s118
    %s122 = sphi 0, %s121
    %s138 = sphi 0, %s122
  $region4: #{forward.3} parent=0 // loop_header_branch
    %13 = sbr.rel (%p11) target = $region8
  $region5: #{forward.3} parent=0 // loop_body
    %s15 = ssub.s32 %s10, 1
    %s16 = ssub.s32 %s10, 2
    %s26 = sadd.s32 1, %s19
    %p27 = scmp.ge.s32.totalorder %s26, 1
    %s28 = scalar_select %p27, 0, %s26
    %s29 = sadd.s32 1, %s18
    %s30 = scalar_select %p27, %s29, %s18
    %p31 = scmp.ge.s32.totalorder %s30, 1
    %s32 = scalar_select %p31, 0, %s30
    %s33 = sadd.s32 1, %s17
    %s34 = scalar_select %p31, %s33, %s17
    %p35 = scmp.ge.s32.totalorder %s34, 2
    %s36 = scalar_select %p35, 0, %s34
    %s38 = sadd.s32 %s37, 1
    %p41 = scmp.eq.s32.totalorder %s10, 1
    %p42 = scmp.ne.s32.totalorder %s37, %s39
    %p43 = scmp.eq.s32.totalorder %s10, 0
    %p44 = por %p42, %p43
    %p45 = scmp.ne.s32.totalorder %s37, %s39
    %p46 = scmp.eq.s32.totalorder %s15, 1
    %p47 = por %p45, %p46
    %p48 = scmp.ne.s32.totalorder %s39, %s40
    %p49 = scmp.eq.s32.totalorder %s15, 0
    %p50 = por %p48, %p49
    %p51 = scmp.ne.s32.totalorder %s39, %s40
    %p52 = scmp.eq.s32.totalorder %s16, 1
    %p53 = por %p51, %p52
    %p55 = scmp.ne.s32.totalorder %s40, %s54
    %p56 = scmp.eq.s32.totalorder %s16, 0
    %p57 = por %p55, %p56
    %s58 = ssub.s32 %s17, %s36
    %s59 = ssub.s32 %s19, %s28
    %s60 = sor.u32 %s58, %s59
    %p61 = scmp.eq.s32.totalorder %s60, 0
    %s63 = sadd.s32 %s62, 1
    %s64 = scalar_select %p61, %s62, %s63
    %p67 = pneg %p61
    %p68 = scmp.eq.s32.totalorder %s10, 1
    %p69 = por %p67, %p68
    %p70 = scmp.ne.s32.totalorder %s62, %s65
    %p71 = scmp.eq.s32.totalorder %s10, 0
    %p72 = por %p70, %p71
    %p73 = scmp.ne.s32.totalorder %s62, %s65
    %p74 = scmp.eq.s32.totalorder %s15, 1
    %p75 = por %p73, %p74
    %p76 = scmp.ne.s32.totalorder %s65, %s66
    %p77 = scmp.eq.s32.totalorder %s15, 0
    %p78 = por %p76, %p77
    %p79 = scmp.ne.s32.totalorder %s65, %s66
    %p80 = scmp.eq.s32.totalorder %s16, 1
    %p81 = por %p79, %p80
    %p83 = scmp.ne.s32.totalorder %s66, %s82
    %p84 = scmp.eq.s32.totalorder %s16, 0
    %p85 = por %p83, %p84
    %s86 = ssub.s32 %s17, %s36
    %s87 = ssub.s32 %s19, %s28
    %s88 = sor.u32 %s86, %s87
    %p89 = scmp.eq.s32.totalorder %s88, 0
    %s91 = sadd.s32 %s90, 1
    %s92 = scalar_select %p89, %s90, %s91
    %p95 = pneg %p89
    %p96 = scmp.eq.s32.totalorder %s10, 1
    %p97 = por %p95, %p96
    %p98 = scmp.ne.s32.totalorder %s90, %s93
    %p99 = scmp.eq.s32.totalorder %s10, 0
    %p100 = por %p98, %p99
    %p101 = scmp.ne.s32.totalorder %s90, %s93
    %p102 = scmp.eq.s32.totalorder %s15, 1
    %p103 = por %p101, %p102
    %p104 = scmp.ne.s32.totalorder %s93, %s94
    %p105 = scmp.eq.s32.totalorder %s15, 0
    %p106 = por %p104, %p105
    %p107 = scmp.ne.s32.totalorder %s93, %s94
    %p108 = scmp.eq.s32.totalorder %s16, 1
    %p109 = por %p107, %p108
    %p111 = scmp.ne.s32.totalorder %s94, %s110
    %p112 = scmp.eq.s32.totalorder %s16, 0
    %p113 = por %p111, %p112
    %s114 = ssub.s32 %s17, %s36
    %s115 = ssub.s32 %s18, %s32
    %s116 = sor.u32 %s114, %s115
    %p117 = scmp.eq.s32.totalorder %s116, 0
    %s119 = sadd.s32 %s118, 1
    %s120 = scalar_select %p117, %s118, %s119
    %p123 = pneg %p117
    %p124 = scmp.eq.s32.totalorder %s10, 1
    %p125 = por %p123, %p124
    %p126 = scmp.ne.s32.totalorder %s118, %s121
    %p127 = scmp.eq.s32.totalorder %s10, 0
    %p128 = por %p126, %p127
    %p129 = scmp.ne.s32.totalorder %s118, %s121
    %p130 = scmp.eq.s32.totalorder %s15, 1
    %p131 = por %p129, %p130
    %p132 = scmp.ne.s32.totalorder %s121, %s122
    %p133 = scmp.eq.s32.totalorder %s15, 0
    %p134 = por %p132, %p133
    %p135 = scmp.ne.s32.totalorder %s121, %s122
    %p136 = scmp.eq.s32.totalorder %s16, 1
    %p137 = por %p135, %p136
    %p139 = scmp.ne.s32.totalorder %s122, %s138
    %p140 = scmp.eq.s32.totalorder %s16, 0
    %p141 = por %p139, %p140
    %p142 = scmp.le.s32.totalorder 1, %s10
    %p143 = scmp.lt.s32.totalorder %s10, 3
    %p144 = pnand %p142, %p143
    %p145 = pneg %p144
    // Predicated region
    $region9: #{forward.3} parent=5 // pred_check
      _
    $region10: #{forward.3} parent=5 // pred_check_branch
      %147 = sbr.rel (%p144) target = $region12
    $region11: #{forward.3} parent=5 // pred_region
      %s148 = ssub.s32 %s10, 1
      // Predicated region
      $region13: #{forward.3} parent=11 // pred_check
        %p149 = pneg %p50
      $region14: #{forward.3} parent=11 // pred_check_branch
        %151 = sbr.rel (%p149) target = $region16
      $region15: #{forward.3} parent=11 // pred_region
        _
      $region16: #{forward.3} parent=11 // pred_fallthru
        _
    $region12: #{forward.3} parent=5 // pred_fallthru
      _
    %p152 = scmp.lt.s32.totalorder %s10, 2
    // Predicated region
    $region17: #{forward.3} parent=5 // pred_check
      %p153 = pneg %p152
    $region18: #{forward.3} parent=5 // pred_check_branch
      %155 = sbr.rel (%p153) target = $region20
    $region19: #{forward.3} parent=5 // pred_region
      // Predicated region
      $region21: #{forward.3} parent=19 // pred_check
        %p156 = pneg %p72
      $region22: #{forward.3} parent=19 // pred_check_branch
        %158 = sbr.rel (%p156) target = $region24
      $region23: #{forward.3} parent=19 // pred_region
        %s159 = smul.u32 2, %s19
        %p160 = scmp.lt.s32.totalorder %s17, 1
        %s161 = scalar_select %p160, %s17, 1
        %p162 = scmp.lt.s32.totalorder %s159, 1
        %s163 = scalar_select %p162, %s159, 1
        %s164 = smul.addr %s161, 2
        %s165 = sadd.s32 %s163, %s164
        %s166 = smul.addr %s165, 2
        %s167 = scalar_lea.vmem %s1, %s166
        %s168 = smul.u32 2, %s19
      $region24: #{forward.3} parent=19 // pred_fallthru
        _
      // Predicated region
      $region25: #{forward.3} parent=19 // pred_check
        %p169 = pneg %p100
      $region26: #{forward.3} parent=19 // pred_check_branch
        %171 = sbr.rel (%p169) target = $region28
      $region27: #{forward.3} parent=19 // pred_region
        %s172 = smul.u32 2, %s19
        %p173 = scmp.lt.s32.totalorder %s17, 1
        %s174 = scalar_select %p173, %s17, 1
        %p175 = scmp.lt.s32.totalorder %s172, 1
        %s176 = scalar_select %p175, %s172, 1
        %s177 = smul.addr %s174, 2
        %s178 = sadd.s32 %s176, %s177
        %s179 = smul.addr %s178, 4
        %s180 = scalar_lea.vmem %s2, %s179
        %s181 = smul.u32 2, %s19
      $region28: #{forward.3} parent=19 // pred_fallthru
        _
    $region20: #{forward.3} parent=5 // pred_fallthru
      _
    %p182 = scmp.le.s32.totalorder 1, %s10
    %p183 = scmp.lt.s32.totalorder %s10, 3
    %p184 = pnand %p182, %p183
    %p185 = pneg %p184
    // Predicated region
    $region29: #{forward.3} parent=5 // pred_check
      _
    $region30: #{forward.3} parent=5 // pred_check_branch
      %187 = sbr.rel (%p184) target = $region32
    $region31: #{forward.3} parent=5 // pred_region
      %s188 = ssub.s32 %s10, 1
      %p189 = pneg %p50
      %p190 = pneg %p47
      %s191 = smul.u32 2, %s22
      %p192 = scmp.lt.s32.totalorder %s20, 1
      %s193 = scalar_select %p192, %s20, 1
      %p194 = scmp.lt.s32.totalorder %s191, 1
      %s195 = scalar_select %p194, %s191, 1
      %s196 = smul.addr %s193, 2
      %s197 = sadd.s32 %s195, %s196
      %s198 = smul.addr %s197, 2
      %s199 = scalar_lea.vmem %s1, %s198
      %p200 = pneg %p78
      %p201 = pneg %p75
      %s202 = smul.u32 2, %s22
      %p203 = scmp.lt.s32.totalorder %s20, 1
      %s204 = scalar_select %p203, %s20, 1
      %p205 = scmp.lt.s32.totalorder %s202, 1
      %s206 = scalar_select %p205, %s202, 1
      %s207 = smul.addr %s204, 2
      %s208 = sadd.s32 %s206, %s207
      %s209 = smul.addr %s208, 4
      %s210 = scalar_lea.vmem %s2, %s209
      %p211 = pneg %p106
      %p212 = pneg %p103
      %p213 = pneg %p134
      %p214 = pneg %p131
      %s215 = smul.u32 32, %s21
      %p216 = scmp.lt.s32.totalorder %s20, 1
      %s217 = scalar_select %p216, %s20, 1
      %p218 = scmp.lt.s32.totalorder %s215, 31
      %s219 = scalar_select %p218, %s215, 31
      %s220 = smul.addr %s217, 32
      %s221 = sadd.s32 %s219, %s220
      %s222 = smul.addr %s221, 8
      %s223 = scalar_lea.vmem %s3, %s222
      %s224 = smul.u32 2, %s22
      %p225 = scmp.lt.s32.totalorder %s20, 1
      %s226 = scalar_select %p225, %s20, 1
      %p227 = scmp.lt.s32.totalorder %s224, 1
      %s228 = scalar_select %p227, %s224, 1
      %s229 = smul.addr %s226, 2
      %s230 = sadd.s32 %s228, %s229
      %s231 = smul.addr %s230, 2
      %s232 = scalar_lea.vmem %s1, %s231
      %s233 = smul.u32 2, %s22
      %s234 = smul.u32 2, %s22
      %p235 = scmp.lt.s32.totalorder %s20, 1
      %s236 = scalar_select %p235, %s20, 1
      %p237 = scmp.lt.s32.totalorder %s234, 1
      %s238 = scalar_select %p237, %s234, 1
      %s239 = smul.addr %s236, 2
      %s240 = sadd.s32 %s238, %s239
      %s241 = smul.addr %s240, 4
      %s242 = scalar_lea.vmem %s2, %s241
      %s243 = smul.u32 2, %s22
      %s244 = smul.u32 32, %s21
      %p245 = scmp.lt.s32.totalorder %s20, 1
      %s246 = scalar_select %p245, %s20, 1
      %p247 = scmp.lt.s32.totalorder %s244, 31
      %s248 = scalar_select %p247, %s244, 31
      %s249 = smul.addr %s246, 32
      %s250 = sadd.s32 %s248, %s249
      %s251 = smul.addr %s250, 8
      %s252 = scalar_lea.vmem %s3, %s251
      %s253 = smul.u32 32, %s21
      %p255 = scmp.eq.s32.totalorder %s22, 0
      // Predicated region
      $region33: #{forward.3} parent=31 // pred_check
        %p256 = pneg %p255
      $region34: #{forward.3} parent=31 // pred_check_branch
        %258 = sbr.rel (%p256) target = $region36
      $region35: #{forward.3} parent=31 // pred_region
        %vm259 = vcmask 31744
        %260 = vst.msk [vmem:[#allocation2] sm:$0xff] %vm259, 0.0
        %261 = vst.msk [vmem:[#allocation2 + $0x8] sm:$0xff] %vm259, 0.0
        %262 = vst.msk [vmem:[#allocation2 + $0x10] sm:$0xff] %vm259, 0.0
        %263 = vst.msk [vmem:[#allocation2 + $0x18] sm:$0xff] %vm259, 0.0
        %264 = vst.msk [vmem:[#allocation2 + $0x20] sm:$0xff] %vm259, 0.0
        %265 = vst.msk [vmem:[#allocation2 + $0x28] sm:$0xff] %vm259, 0.0
        %266 = vst.msk [vmem:[#allocation2 + $0x30] sm:$0xff] %vm259, 0.0
        %267 = vst.msk [vmem:[#allocation2 + $0x38] sm:$0xff] %vm259, 0.0
        %268 = vst.msk [vmem:[#allocation2 + $0x40] sm:$0xff] %vm259, 0.0
        %269 = vst.msk [vmem:[#allocation2 + $0x48] sm:$0xff] %vm259, 0.0
        %270 = vst.msk [vmem:[#allocation2 + $0x50] sm:$0xff] %vm259, 0.0
        %271 = vst.msk [vmem:[#allocation2 + $0x58] sm:$0xff] %vm259, 0.0
        %272 = vst.msk [vmem:[#allocation2 + $0x60] sm:$0xff] %vm259, 0.0
        %273 = vst.msk [vmem:[#allocation2 + $0x68] sm:$0xff] %vm259, 0.0
        %274 = vst.msk [vmem:[#allocation2 + $0x70] sm:$0xff] %vm259, 0.0
        %275 = vst.msk [vmem:[#allocation2 + $0x78] sm:$0xff] %vm259, 0.0
        %276 = vst.msk [vmem:[#allocation2 + $0x80] sm:$0xff] %vm259, 0.0
        %277 = vst.msk [vmem:[#allocation2 + $0x88] sm:$0xff] %vm259, 0.0
        %278 = vst.msk [vmem:[#allocation2 + $0x90] sm:$0xff] %vm259, 0.0
        %279 = vst.msk [vmem:[#allocation2 + $0x98] sm:$0xff] %vm259, 0.0
        %280 = vst.msk [vmem:[#allocation2 + $0xa0] sm:$0xff] %vm259, 0.0
        %281 = vst.msk [vmem:[#allocation2 + $0xa8] sm:$0xff] %vm259, 0.0
        %282 = vst.msk [vmem:[#allocation2 + $0xb0] sm:$0xff] %vm259, 0.0
        %283 = vst.msk [vmem:[#allocation2 + $0xb8] sm:$0xff] %vm259, 0.0
        %284 = vst.msk [vmem:[#allocation2 + $0xc0] sm:$0xff] %vm259, 0.0
        %285 = vst.msk [vmem:[#allocation2 + $0xc8] sm:$0xff] %vm259, 0.0
        %286 = vst.msk [vmem:[#allocation2 + $0xd0] sm:$0xff] %vm259, 0.0
        %287 = vst.msk [vmem:[#allocation2 + $0xd8] sm:$0xff] %vm259, 0.0
        %288 = vst.msk [vmem:[#allocation2 + $0xe0] sm:$0xff] %vm259, 0.0
        %289 = vst.msk [vmem:[#allocation2 + $0xe8] sm:$0xff] %vm259, 0.0
        %290 = vst.msk [vmem:[#allocation2 + $0xf0] sm:$0xff] %vm259, 0.0
        %291 = vst.msk [vmem:[#allocation2 + $0xf8] sm:$0xff] %vm259, 0.0
      $region36: #{forward.3} parent=31 // pred_fallthru
        _
      %s292 = sld [smem:[#allocation3]]
      %v293 = vld [vmem:[%s232] ss:$2 sm:$0x3]
      %s294 = scalar_lea.vmem %s232, 1
      %v295 = vld [vmem:[%s294] ss:$2 sm:$0x3]
      %s296 = smul.u32 %s21, 256
      %v297 = vlaneseq
      %v298 = vshrl.u32 %v297, 7
      %v299 = vadd.s32 %v298, 8
      %v300 = vadd.s32 %v298, 16
      %v301 = vadd.s32 %v298, 24
      %v302 = vadd.s32 %v298, 32
      %v303 = vadd.s32 %v298, 40
      %v304 = vadd.s32 %v298, 48
      %v305 = vadd.s32 %v298, 56
      %v306 = vadd.s32 %v298, 64
      %v307 = vadd.s32 %v298, 72
      %v308 = vadd.s32 %v298, 80
      %v309 = vadd.s32 %v298, 88
      %v310 = vadd.s32 %v298, 96
      %v311 = vadd.s32 %v298, 104
      %v312 = vadd.s32 %v298, 112
      %v313 = vadd.s32 %v298, 120
      %v314 = vadd.s32 %v298, 128
      %v315 = vadd.s32 %v298, 136
      %v316 = vadd.s32 %v298, 144
      %v317 = vadd.s32 %v298, 152
      %v318 = vadd.s32 %v298, 160
      %v319 = vadd.s32 %v298, 168
      %v320 = vadd.s32 %v298, 176
      %v321 = vadd.s32 %v298, 184
      %v322 = vadd.s32 %v298, 192
      %v323 = vadd.s32 %v298, 200
      %v324 = vadd.s32 %v298, 208
      %v325 = vadd.s32 %v298, 216
      %v326 = vadd.s32 %v298, 224
      %v327 = vadd.s32 %v298, 232
      %v328 = vadd.s32 %v298, 240
      %v329 = vadd.s32 %v298, 248
      %v330 = vstv %s296
      %v331 = vadd.s32 %v330, %v298
      %v332 = vadd.s32 %v330, %v299
      %v333 = vadd.s32 %v330, %v300
      %v334 = vadd.s32 %v330, %v301
      %v335 = vadd.s32 %v330, %v302
      %v336 = vadd.s32 %v330, %v303
      %v337 = vadd.s32 %v330, %v304
      %v338 = vadd.s32 %v330, %v305
      %v339 = vadd.s32 %v330, %v306
      %v340 = vadd.s32 %v330, %v307
      %v341 = vadd.s32 %v330, %v308
      %v342 = vadd.s32 %v330, %v309
      %v343 = vadd.s32 %v330, %v310
      %v344 = vadd.s32 %v330, %v311
      %v345 = vadd.s32 %v330, %v312
      %v346 = vadd.s32 %v330, %v313
      %v347 = vadd.s32 %v330, %v314
      %v348 = vadd.s32 %v330, %v315
      %v349 = vadd.s32 %v330, %v316
      %v350 = vadd.s32 %v330, %v317
      %v351 = vadd.s32 %v330, %v318
      %v352 = vadd.s32 %v330, %v319
      %v353 = vadd.s32 %v330, %v320
      %v354 = vadd.s32 %v330, %v321
      %v355 = vadd.s32 %v330, %v322
      %v356 = vadd.s32 %v330, %v323
      %v357 = vadd.s32 %v330, %v324
      %v358 = vadd.s32 %v330, %v325
      %v359 = vadd.s32 %v330, %v326
      %v360 = vadd.s32 %v330, %v327
      %v361 = vadd.s32 %v330, %v328
      %v362 = vadd.s32 %v330, %v329
      %vm363 = vcmp.lt.s32.totalorder %v331, 0
      %v364 = vsub.s32 0, %v331
      %v365 = vsel %vm363, %v364, %v331
      %v366 = vshrl.u32 %v365, 4
      %v367 = vand.u32 %v365, 15
      %v368 = vsub.s32 0, %v366
      %v369 = vsel %vm363, %v368, %v366
      %vm370 = vcmp.lt.s32.totalorder %v332, 0
      %v371 = vsub.s32 0, %v332
      %v372 = vsel %vm370, %v371, %v332
      %v373 = vshrl.u32 %v372, 4
      %v374 = vand.u32 %v372, 15
      %v375 = vsub.s32 0, %v373
      %v376 = vsel %vm370, %v375, %v373
      %vm377 = vcmp.lt.s32.totalorder %v333, 0
      %v378 = vsub.s32 0, %v333
      %v379 = vsel %vm377, %v378, %v333
      %v380 = vshrl.u32 %v379, 4
      %v381 = vand.u32 %v379, 15
      %v382 = vsub.s32 0, %v380
      %v383 = vsel %vm377, %v382, %v380
      %vm384 = vcmp.lt.s32.totalorder %v334, 0
      %v385 = vsub.s32 0, %v334
      %v386 = vsel %vm384, %v385, %v334
      %v387 = vshrl.u32 %v386, 4
      %v388 = vand.u32 %v386, 15
      %v389 = vsub.s32 0, %v387
      %v390 = vsel %vm384, %v389, %v387
      %vm391 = vcmp.lt.s32.totalorder %v335, 0
      %v392 = vsub.s32 0, %v335
      %v393 = vsel %vm391, %v392, %v335
      %v394 = vshrl.u32 %v393, 4
      %v395 = vand.u32 %v393, 15
      %v396 = vsub.s32 0, %v394
      %v397 = vsel %vm391, %v396, %v394
      %vm398 = vcmp.lt.s32.totalorder %v336, 0
      %v399 = vsub.s32 0, %v336
      %v400 = vsel %vm398, %v399, %v336
      %v401 = vshrl.u32 %v400, 4
      %v402 = vand.u32 %v400, 15
      %v403 = vsub.s32 0, %v401
      %v404 = vsel %vm398, %v403, %v401
      %vm405 = vcmp.lt.s32.totalorder %v337, 0
      %v406 = vsub.s32 0, %v337
      %v407 = vsel %vm405, %v406, %v337
      %v408 = vshrl.u32 %v407, 4
      %v409 = vand.u32 %v407, 15
      %v410 = vsub.s32 0, %v408
      %v411 = vsel %vm405, %v410, %v408
      %vm412 = vcmp.lt.s32.totalorder %v338, 0
      %v413 = vsub.s32 0, %v338
      %v414 = vsel %vm412, %v413, %v338
      %v415 = vshrl.u32 %v414, 4
      %v416 = vand.u32 %v414, 15
      %v417 = vsub.s32 0, %v415
      %v418 = vsel %vm412, %v417, %v415
      %vm419 = vcmp.lt.s32.totalorder %v339, 0
      %v420 = vsub.s32 0, %v339
      %v421 = vsel %vm419, %v420, %v339
      %v422 = vshrl.u32 %v421, 4
      %v423 = vand.u32 %v421, 15
      %v424 = vsub.s32 0, %v422
      %v425 = vsel %vm419, %v424, %v422
      %vm426 = vcmp.lt.s32.totalorder %v340, 0
      %v427 = vsub.s32 0, %v340
      %v428 = vsel %vm426, %v427, %v340
      %v429 = vshrl.u32 %v428, 4
      %v430 = vand.u32 %v428, 15
      %v431 = vsub.s32 0, %v429
      %v432 = vsel %vm426, %v431, %v429
      %vm433 = vcmp.lt.s32.totalorder %v341, 0
      %v434 = vsub.s32 0, %v341
      %v435 = vsel %vm433, %v434, %v341
      %v436 = vshrl.u32 %v435, 4
      %v437 = vand.u32 %v435, 15
      %v438 = vsub.s32 0, %v436
      %v439 = vsel %vm433, %v438, %v436
      %vm440 = vcmp.lt.s32.totalorder %v342, 0
      %v441 = vsub.s32 0, %v342
      %v442 = vsel %vm440, %v441, %v342
      %v443 = vshrl.u32 %v442, 4
      %v444 = vand.u32 %v442, 15
      %v445 = vsub.s32 0, %v443
      %v446 = vsel %vm440, %v445, %v443
      %vm447 = vcmp.lt.s32.totalorder %v343, 0
      %v448 = vsub.s32 0, %v343
      %v449 = vsel %vm447, %v448, %v343
      %v450 = vshrl.u32 %v449, 4
      %v451 = vand.u32 %v449, 15
      %v452 = vsub.s32 0, %v450
      %v453 = vsel %vm447, %v452, %v450
      %vm454 = vcmp.lt.s32.totalorder %v344, 0
      %v455 = vsub.s32 0, %v344
      %v456 = vsel %vm454, %v455, %v344
      %v457 = vshrl.u32 %v456, 4
      %v458 = vand.u32 %v456, 15
      %v459 = vsub.s32 0, %v457
      %v460 = vsel %vm454, %v459, %v457
      %vm461 = vcmp.lt.s32.totalorder %v345, 0
      %v462 = vsub.s32 0, %v345
      %v463 = vsel %vm461, %v462, %v345
      %v464 = vshrl.u32 %v463, 4
      %v465 = vand.u32 %v463, 15
      %v466 = vsub.s32 0, %v464
      %v467 = vsel %vm461, %v466, %v464
      %vm468 = vcmp.lt.s32.totalorder %v346, 0
      %v469 = vsub.s32 0, %v346
      %v470 = vsel %vm468, %v469, %v346
      %v471 = vshrl.u32 %v470, 4
      %v472 = vand.u32 %v470, 15
      %v473 = vsub.s32 0, %v471
      %v474 = vsel %vm468, %v473, %v471
      %vm475 = vcmp.lt.s32.totalorder %v347, 0
      %v476 = vsub.s32 0, %v347
      %v477 = vsel %vm475, %v476, %v347
      %v478 = vshrl.u32 %v477, 4
      %v479 = vand.u32 %v477, 15
      %v480 = vsub.s32 0, %v478
      %v481 = vsel %vm475, %v480, %v478
      %vm482 = vcmp.lt.s32.totalorder %v348, 0
      %v483 = vsub.s32 0, %v348
      %v484 = vsel %vm482, %v483, %v348
      %v485 = vshrl.u32 %v484, 4
      %v486 = vand.u32 %v484, 15
      %v487 = vsub.s32 0, %v485
      %v488 = vsel %vm482, %v487, %v485
      %vm489 = vcmp.lt.s32.totalorder %v349, 0
      %v490 = vsub.s32 0, %v349
      %v491 = vsel %vm489, %v490, %v349
      %v492 = vshrl.u32 %v491, 4
      %v493 = vand.u32 %v491, 15
      %v494 = vsub.s32 0, %v492
      %v495 = vsel %vm489, %v494, %v492
      %vm496 = vcmp.lt.s32.totalorder %v350, 0
      %v497 = vsub.s32 0, %v350
      %v498 = vsel %vm496, %v497, %v350
      %v499 = vshrl.u32 %v498, 4
      %v500 = vand.u32 %v498, 15
      %v501 = vsub.s32 0, %v499
      %v502 = vsel %vm496, %v501, %v499
      %vm503 = vcmp.lt.s32.totalorder %v351, 0
      %v504 = vsub.s32 0, %v351
      %v505 = vsel %vm503, %v504, %v351
      %v506 = vshrl.u32 %v505, 4
      %v507 = vand.u32 %v505, 15
      %v508 = vsub.s32 0, %v506
      %v509 = vsel %vm503, %v508, %v506
      %vm510 = vcmp.lt.s32.totalorder %v352, 0
      %v511 = vsub.s32 0, %v352
      %v512 = vsel %vm510, %v511, %v352
      %v513 = vshrl.u32 %v512, 4
      %v514 = vand.u32 %v512, 15
      %v515 = vsub.s32 0, %v513
      %v516 = vsel %vm510, %v515, %v513
      %vm517 = vcmp.lt.s32.totalorder %v353, 0
      %v518 = vsub.s32 0, %v353
      %v519 = vsel %vm517, %v518, %v353
      %v520 = vshrl.u32 %v519, 4
      %v521 = vand.u32 %v519, 15
      %v522 = vsub.s32 0, %v520
      %v523 = vsel %vm517, %v522, %v520
      %vm524 = vcmp.lt.s32.totalorder %v354, 0
      %v525 = vsub.s32 0, %v354
      %v526 = vsel %vm524, %v525, %v354
      %v527 = vshrl.u32 %v526, 4
      %v528 = vand.u32 %v526, 15
      %v529 = vsub.s32 0, %v527
      %v530 = vsel %vm524, %v529, %v527
      %vm531 = vcmp.lt.s32.totalorder %v355, 0
      %v532 = vsub.s32 0, %v355
      %v533 = vsel %vm531, %v532, %v355
      %v534 = vshrl.u32 %v533, 4
      %v535 = vand.u32 %v533, 15
      %v536 = vsub.s32 0, %v534
      %v537 = vsel %vm531, %v536, %v534
      %vm538 = vcmp.lt.s32.totalorder %v356, 0
      %v539 = vsub.s32 0, %v356
      %v540 = vsel %vm538, %v539, %v356
      %v541 = vshrl.u32 %v540, 4
      %v542 = vand.u32 %v540, 15
      %v543 = vsub.s32 0, %v541
      %v544 = vsel %vm538, %v543, %v541
      %vm545 = vcmp.lt.s32.totalorder %v357, 0
      %v546 = vsub.s32 0, %v357
      %v547 = vsel %vm545, %v546, %v357
      %v548 = vshrl.u32 %v547, 4
      %v549 = vand.u32 %v547, 15
      %v550 = vsub.s32 0, %v548
      %v551 = vsel %vm545, %v550, %v548
      %vm552 = vcmp.lt.s32.totalorder %v358, 0
      %v553 = vsub.s32 0, %v358
      %v554 = vsel %vm552, %v553, %v358
      %v555 = vshrl.u32 %v554, 4
      %v556 = vand.u32 %v554, 15
      %v557 = vsub.s32 0, %v555
      %v558 = vsel %vm552, %v557, %v555
      %vm559 = vcmp.lt.s32.totalorder %v359, 0
      %v560 = vsub.s32 0, %v359
      %v561 = vsel %vm559, %v560, %v359
      %v562 = vshrl.u32 %v561, 4
      %v563 = vand.u32 %v561, 15
      %v564 = vsub.s32 0, %v562
      %v565 = vsel %vm559, %v564, %v562
      %vm566 = vcmp.lt.s32.totalorder %v360, 0
      %v567 = vsub.s32 0, %v360
      %v568 = vsel %vm566, %v567, %v360
      %v569 = vshrl.u32 %v568, 4
      %v570 = vand.u32 %v568, 15
      %v571 = vsub.s32 0, %v569
      %v572 = vsel %vm566, %v571, %v569
      %vm573 = vcmp.lt.s32.totalorder %v361, 0
      %v574 = vsub.s32 0, %v361
      %v575 = vsel %vm573, %v574, %v361
      %v576 = vshrl.u32 %v575, 4
      %v577 = vand.u32 %v575, 15
      %v578 = vsub.s32 0, %v576
      %v579 = vsel %vm573, %v578, %v576
      %vm580 = vcmp.lt.s32.totalorder %v362, 0
      %v581 = vsub.s32 0, %v362
      %v582 = vsel %vm580, %v581, %v362
      %v583 = vshrl.u32 %v582, 4
      %v584 = vand.u32 %v582, 15
      %v585 = vsub.s32 0, %v583
      %v586 = vsel %vm580, %v585, %v583
      %v587 = vmul.u32 %v369, 16
      %v588 = vmul.u32 %v376, 16
      %v589 = vmul.u32 %v383, 16
      %v590 = vmul.u32 %v390, 16
      %v591 = vmul.u32 %v397, 16
      %v592 = vmul.u32 %v404, 16
      %v593 = vmul.u32 %v411, 16
      %v594 = vmul.u32 %v418, 16
      %v595 = vmul.u32 %v425, 16
      %v596 = vmul.u32 %v432, 16
      %v597 = vmul.u32 %v439, 16
      %v598 = vmul.u32 %v446, 16
      %v599 = vmul.u32 %v453, 16
      %v600 = vmul.u32 %v460, 16
      %v601 = vmul.u32 %v467, 16
      %v602 = vmul.u32 %v474, 16
      %v603 = vmul.u32 %v481, 16
      %v604 = vmul.u32 %v488, 16
      %v605 = vmul.u32 %v495, 16
      %v606 = vmul.u32 %v502, 16
      %v607 = vmul.u32 %v509, 16
      %v608 = vmul.u32 %v516, 16
      %v609 = vmul.u32 %v523, 16
      %v610 = vmul.u32 %v530, 16
      %v611 = vmul.u32 %v537, 16
      %v612 = vmul.u32 %v544, 16
      %v613 = vmul.u32 %v551, 16
      %v614 = vmul.u32 %v558, 16
      %v615 = vmul.u32 %v565, 16
      %v616 = vmul.u32 %v572, 16
      %v617 = vmul.u32 %v579, 16
      %v618 = vmul.u32 %v586, 16
      %v619 = vsub.s32 %v331, %v587
      %v620 = vsub.s32 %v332, %v588
      %v621 = vsub.s32 %v333, %v589
      %v622 = vsub.s32 %v334, %v590
      %v623 = vsub.s32 %v335, %v591
      %v624 = vsub.s32 %v336, %v592
      %v625 = vsub.s32 %v337, %v593
      %v626 = vsub.s32 %v338, %v594
      %v627 = vsub.s32 %v339, %v595
      %v628 = vsub.s32 %v340, %v596
      %v629 = vsub.s32 %v341, %v597
      %v630 = vsub.s32 %v342, %v598
      %v631 = vsub.s32 %v343, %v599
      %v632 = vsub.s32 %v344, %v600
      %v633 = vsub.s32 %v345, %v601
      %v634 = vsub.s32 %v346, %v602
      %v635 = vsub.s32 %v347, %v603
      %v636 = vsub.s32 %v348, %v604
      %v637 = vsub.s32 %v349, %v605
      %v638 = vsub.s32 %v350, %v606
      %v639 = vsub.s32 %v351, %v607
      %v640 = vsub.s32 %v352, %v608
      %v641 = vsub.s32 %v353, %v609
      %v642 = vsub.s32 %v354, %v610
      %v643 = vsub.s32 %v355, %v611
      %v644 = vsub.s32 %v356, %v612
      %v645 = vsub.s32 %v357, %v613
      %v646 = vsub.s32 %v358, %v614
      %v647 = vsub.s32 %v359, %v615
      %v648 = vsub.s32 %v360, %v616
      %v649 = vsub.s32 %v361, %v617
      %v650 = vsub.s32 %v362, %v618
      %v651 = vcvt.s32.f32 %v619
      %v652 = vcvt.s32.f32 %v620
      %v653 = vcvt.s32.f32 %v621
      %v654 = vcvt.s32.f32 %v622
      %v655 = vcvt.s32.f32 %v623
      %v656 = vcvt.s32.f32 %v624
      %v657 = vcvt.s32.f32 %v625
      %v658 = vcvt.s32.f32 %v626
      %v659 = vcvt.s32.f32 %v627
      %v660 = vcvt.s32.f32 %v628
      %v661 = vcvt.s32.f32 %v629
      %v662 = vcvt.s32.f32 %v630
      %v663 = vcvt.s32.f32 %v631
      %v664 = vcvt.s32.f32 %v632
      %v665 = vcvt.s32.f32 %v633
      %v666 = vcvt.s32.f32 %v634
      %v667 = vcvt.s32.f32 %v635
      %v668 = vcvt.s32.f32 %v636
      %v669 = vcvt.s32.f32 %v637
      %v670 = vcvt.s32.f32 %v638
      %v671 = vcvt.s32.f32 %v639
      %v672 = vcvt.s32.f32 %v640
      %v673 = vcvt.s32.f32 %v641
      %v674 = vcvt.s32.f32 %v642
      %v675 = vcvt.s32.f32 %v643
      %v676 = vcvt.s32.f32 %v644
      %v677 = vcvt.s32.f32 %v645
      %v678 = vcvt.s32.f32 %v646
      %v679 = vcvt.s32.f32 %v647
      %v680 = vcvt.s32.f32 %v648
      %v681 = vcvt.s32.f32 %v649
      %v682 = vcvt.s32.f32 %v650
      %v683 = vadd.f32 %v651, 0.5
      %v684 = vadd.f32 %v652, 0.5
      %v685 = vadd.f32 %v653, 0.5
      %v686 = vadd.f32 %v654, 0.5
      %v687 = vadd.f32 %v655, 0.5
      %v688 = vadd.f32 %v656, 0.5
      %v689 = vadd.f32 %v657, 0.5
      %v690 = vadd.f32 %v658, 0.5
      %v691 = vadd.f32 %v659, 0.5
      %v692 = vadd.f32 %v660, 0.5
      %v693 = vadd.f32 %v661, 0.5
      %v694 = vadd.f32 %v662, 0.5
      %v695 = vadd.f32 %v663, 0.5
      %v696 = vadd.f32 %v664, 0.5
      %v697 = vadd.f32 %v665, 0.5
      %v698 = vadd.f32 %v666, 0.5
      %v699 = vadd.f32 %v667, 0.5
      %v700 = vadd.f32 %v668, 0.5
      %v701 = vadd.f32 %v669, 0.5
      %v702 = vadd.f32 %v670, 0.5
      %v703 = vadd.f32 %v671, 0.5
      %v704 = vadd.f32 %v672, 0.5
      %v705 = vadd.f32 %v673, 0.5
      %v706 = vadd.f32 %v674, 0.5
      %v707 = vadd.f32 %v675, 0.5
      %v708 = vadd.f32 %v676, 0.5
      %v709 = vadd.f32 %v677, 0.5
      %v710 = vadd.f32 %v678, 0.5
      %v711 = vadd.f32 %v679, 0.5
      %v712 = vadd.f32 %v680, 0.5
      %v713 = vadd.f32 %v681, 0.5
      %v714 = vadd.f32 %v682, 0.5
      %v715 = vmul.f32 %v683, 0.125
      %v716 = vmul.f32 %v684, 0.125
      %v717 = vmul.f32 %v685, 0.125
      %v718 = vmul.f32 %v686, 0.125
      %v719 = vmul.f32 %v687, 0.125
      %v720 = vmul.f32 %v688, 0.125
      %v721 = vmul.f32 %v689, 0.125
      %v722 = vmul.f32 %v690, 0.125
      %v723 = vmul.f32 %v691, 0.125
      %v724 = vmul.f32 %v692, 0.125
      %v725 = vmul.f32 %v693, 0.125
      %v726 = vmul.f32 %v694, 0.125
      %v727 = vmul.f32 %v695, 0.125
      %v728 = vmul.f32 %v696, 0.125
      %v729 = vmul.f32 %v697, 0.125
      %v730 = vmul.f32 %v698, 0.125
      %v731 = vmul.f32 %v699, 0.125
      %v732 = vmul.f32 %v700, 0.125
      %v733 = vmul.f32 %v701, 0.125
      %v734 = vmul.f32 %v702, 0.125
      %v735 = vmul.f32 %v703, 0.125
      %v736 = vmul.f32 %v704, 0.125
      %v737 = vmul.f32 %v705, 0.125
      %v738 = vmul.f32 %v706, 0.125
      %v739 = vmul.f32 %v707, 0.125
      %v740 = vmul.f32 %v708, 0.125
      %v741 = vmul.f32 %v709, 0.125
      %v742 = vmul.f32 %v710, 0.125
      %v743 = vmul.f32 %v711, 0.125
      %v744 = vmul.f32 %v712, 0.125
      %v745 = vmul.f32 %v713, 0.125
      %v746 = vmul.f32 %v714, 0.125
      %v747 = vsub.f32 %v715, 1.0
      %v748 = vsub.f32 %v716, 1.0
      %v749 = vsub.f32 %v717, 1.0
      %v750 = vsub.f32 %v718, 1.0
      %v751 = vsub.f32 %v719, 1.0
      %v752 = vsub.f32 %v720, 1.0
      %v753 = vsub.f32 %v721, 1.0
      %v754 = vsub.f32 %v722, 1.0
      %v755 = vsub.f32 %v723, 1.0
      %v756 = vsub.f32 %v724, 1.0
      %v757 = vsub.f32 %v725, 1.0
      %v758 = vsub.f32 %v726, 1.0
      %v759 = vsub.f32 %v727, 1.0
      %v760 = vsub.f32 %v728, 1.0
      %v761 = vsub.f32 %v729, 1.0
      %v762 = vsub.f32 %v730, 1.0
      %v763 = vsub.f32 %v731, 1.0
      %v764 = vsub.f32 %v732, 1.0
      %v765 = vsub.f32 %v733, 1.0
      %v766 = vsub.f32 %v734, 1.0
      %v767 = vsub.f32 %v735, 1.0
      %v768 = vsub.f32 %v736, 1.0
      %v769 = vsub.f32 %v737, 1.0
      %v770 = vsub.f32 %v738, 1.0
      %v771 = vsub.f32 %v739, 1.0
      %v772 = vsub.f32 %v740, 1.0
      %v773 = vsub.f32 %v741, 1.0
      %v774 = vsub.f32 %v742, 1.0
      %v775 = vsub.f32 %v743, 1.0
      %v776 = vsub.f32 %v744, 1.0
      %v777 = vsub.f32 %v745, 1.0
      %v778 = vsub.f32 %v746, 1.0
      %v779 = vcvt.s32.f32 %v369
      %v780 = vcvt.s32.f32 %v376
      %v781 = vcvt.s32.f32 %v383
      %v782 = vcvt.s32.f32 %v390
      %v783 = vcvt.s32.f32 %v397
      %v784 = vcvt.s32.f32 %v404
      %v785 = vcvt.s32.f32 %v411
      %v786 = vcvt.s32.f32 %v418
      %v787 = vcvt.s32.f32 %v425
      %v788 = vcvt.s32.f32 %v432
      %v789 = vcvt.s32.f32 %v439
      %v790 = vcvt.s32.f32 %v446
      %v791 = vcvt.s32.f32 %v453
      %v792 = vcvt.s32.f32 %v460
      %v793 = vcvt.s32.f32 %v467
      %v794 = vcvt.s32.f32 %v474
      %v795 = vcvt.s32.f32 %v481
      %v796 = vcvt.s32.f32 %v488
      %v797 = vcvt.s32.f32 %v495
      %v798 = vcvt.s32.f32 %v502
      %v799 = vcvt.s32.f32 %v509
      %v800 = vcvt.s32.f32 %v516
      %v801 = vcvt.s32.f32 %v523
      %v802 = vcvt.s32.f32 %v530
      %v803 = vcvt.s32.f32 %v537
      %v804 = vcvt.s32.f32 %v544
      %v805 = vcvt.s32.f32 %v551
      %v806 = vcvt.s32.f32 %v558
      %v807 = vcvt.s32.f32 %v565
      %v808 = vcvt.s32.f32 %v572
      %v809 = vcvt.s32.f32 %v579
      %v810 = vcvt.s32.f32 %v586
      %v811 = vadd.f32 %v779, 0.5
      %v812 = vadd.f32 %v780, 0.5
      %v813 = vadd.f32 %v781, 0.5
      %v814 = vadd.f32 %v782, 0.5
      %v815 = vadd.f32 %v783, 0.5
      %v816 = vadd.f32 %v784, 0.5
      %v817 = vadd.f32 %v785, 0.5
      %v818 = vadd.f32 %v786, 0.5
      %v819 = vadd.f32 %v787, 0.5
      %v820 = vadd.f32 %v788, 0.5
      %v821 = vadd.f32 %v789, 0.5
      %v822 = vadd.f32 %v790, 0.5
      %v823 = vadd.f32 %v791, 0.5
      %v824 = vadd.f32 %v792, 0.5
      %v825 = vadd.f32 %v793, 0.5
      %v826 = vadd.f32 %v794, 0.5
      %v827 = vadd.f32 %v795, 0.5
      %v828 = vadd.f32 %v796, 0.5
      %v829 = vadd.f32 %v797, 0.5
      %v830 = vadd.f32 %v798, 0.5
      %v831 = vadd.f32 %v799, 0.5
      %v832 = vadd.f32 %v800, 0.5
      %v833 = vadd.f32 %v801, 0.5
      %v834 = vadd.f32 %v802, 0.5
      %v835 = vadd.f32 %v803, 0.5
      %v836 = vadd.f32 %v804, 0.5
      %v837 = vadd.f32 %v805, 0.5
      %v838 = vadd.f32 %v806, 0.5
      %v839 = vadd.f32 %v807, 0.5
      %v840 = vadd.f32 %v808, 0.5
      %v841 = vadd.f32 %v809, 0.5
      %v842 = vadd.f32 %v810, 0.5
      %v843 = vmul.f32 %v811, 0.125
      %v844 = vmul.f32 %v812, 0.125
      %v845 = vmul.f32 %v813, 0.125
      %v846 = vmul.f32 %v814, 0.125
      %v847 = vmul.f32 %v815, 0.125
      %v848 = vmul.f32 %v816, 0.125
      %v849 = vmul.f32 %v817, 0.125
      %v850 = vmul.f32 %v818, 0.125
      %v851 = vmul.f32 %v819, 0.125
      %v852 = vmul.f32 %v820, 0.125
      %v853 = vmul.f32 %v821, 0.125
      %v854 = vmul.f32 %v822, 0.125
      %v855 = vmul.f32 %v823, 0.125
      %v856 = vmul.f32 %v824, 0.125
      %v857 = vmul.f32 %v825, 0.125
      %v858 = vmul.f32 %v826, 0.125
      %v859 = vmul.f32 %v827, 0.125
      %v860 = vmul.f32 %v828, 0.125
      %v861 = vmul.f32 %v829, 0.125
      %v862 = vmul.f32 %v830, 0.125
      %v863 = vmul.f32 %v831, 0.125
      %v864 = vmul.f32 %v832, 0.125
      %v865 = vmul.f32 %v833, 0.125
      %v866 = vmul.f32 %v834, 0.125
      %v867 = vmul.f32 %v835, 0.125
      %v868 = vmul.f32 %v836, 0.125
      %v869 = vmul.f32 %v837, 0.125
      %v870 = vmul.f32 %v838, 0.125
      %v871 = vmul.f32 %v839, 0.125
      %v872 = vmul.f32 %v840, 0.125
      %v873 = vmul.f32 %v841, 0.125
      %v874 = vmul.f32 %v842, 0.125
      %v875 = vsub.f32 %v843, 1.0
      %v876 = vsub.f32 %v844, 1.0
      %v877 = vsub.f32 %v845, 1.0
      %v878 = vsub.f32 %v846, 1.0
      %v879 = vsub.f32 %v847, 1.0
      %v880 = vsub.f32 %v848, 1.0
      %v881 = vsub.f32 %v849, 1.0
      %v882 = vsub.f32 %v850, 1.0
      %v883 = vsub.f32 %v851, 1.0
      %v884 = vsub.f32 %v852, 1.0
      %v885 = vsub.f32 %v853, 1.0
      %v886 = vsub.f32 %v854, 1.0
      %v887 = vsub.f32 %v855, 1.0
      %v888 = vsub.f32 %v856, 1.0
      %v889 = vsub.f32 %v857, 1.0
      %v890 = vsub.f32 %v858, 1.0
      %v891 = vsub.f32 %v859, 1.0
      %v892 = vsub.f32 %v860, 1.0
      %v893 = vsub.f32 %v861, 1.0
      %v894 = vsub.f32 %v862, 1.0
      %v895 = vsub.f32 %v863, 1.0
      %v896 = vsub.f32 %v864, 1.0
      %v897 = vsub.f32 %v865, 1.0
      %v898 = vsub.f32 %v866, 1.0
      %v899 = vsub.f32 %v867, 1.0
      %v900 = vsub.f32 %v868, 1.0
      %v901 = vsub.f32 %v869, 1.0
      %v902 = vsub.f32 %v870, 1.0
      %v903 = vsub.f32 %v871, 1.0
      %v904 = vsub.f32 %v872, 1.0
      %v905 = vsub.f32 %v873, 1.0
      %v906 = vsub.f32 %v874, 1.0
      %v908 = vperm.slane %v293, 0
      %v909 = vperm.slane %v293, 1
      %v912 = vsub.f32 %v747, %v908
      %v913 = vsub.f32 %v747, %v909
      %v914 = vsub.f32 %v748, %v908
      %v915 = vsub.f32 %v748, %v909
      %v916 = vsub.f32 %v749, %v908
      %v917 = vsub.f32 %v749, %v909
      %v918 = vsub.f32 %v750, %v908
      %v919 = vsub.f32 %v750, %v909
      %v920 = vsub.f32 %v751, %v908
      %v921 = vsub.f32 %v751, %v909
      %v922 = vsub.f32 %v752, %v908
      %v923 = vsub.f32 %v752, %v909
      %v924 = vsub.f32 %v753, %v908
      %v925 = vsub.f32 %v753, %v909
      %v926 = vsub.f32 %v754, %v908
      %v927 = vsub.f32 %v754, %v909
      %v928 = vsub.f32 %v755, %v908
      %v929 = vsub.f32 %v755, %v909
      %v930 = vsub.f32 %v756, %v908
      %v931 = vsub.f32 %v756, %v909
      %v932 = vsub.f32 %v757, %v908
      %v933 = vsub.f32 %v757, %v909
      %v934 = vsub.f32 %v758, %v908
      %v935 = vsub.f32 %v758, %v909
      %v936 = vsub.f32 %v759, %v908
      %v937 = vsub.f32 %v759, %v909
      %v938 = vsub.f32 %v760, %v908
      %v939 = vsub.f32 %v760, %v909
      %v940 = vsub.f32 %v761, %v908
      %v941 = vsub.f32 %v761, %v909
      %v942 = vsub.f32 %v762, %v908
      %v943 = vsub.f32 %v762, %v909
      %v944 = vsub.f32 %v763, %v908
      %v945 = vsub.f32 %v763, %v909
      %v946 = vsub.f32 %v764, %v908
      %v947 = vsub.f32 %v764, %v909
      %v948 = vsub.f32 %v765, %v908
      %v949 = vsub.f32 %v765, %v909
      %v950 = vsub.f32 %v766, %v908
      %v951 = vsub.f32 %v766, %v909
      %v952 = vsub.f32 %v767, %v908
      %v953 = vsub.f32 %v767, %v909
      %v954 = vsub.f32 %v768, %v908
      %v955 = vsub.f32 %v768, %v909
      %v956 = vsub.f32 %v769, %v908
      %v957 = vsub.f32 %v769, %v909
      %v958 = vsub.f32 %v770, %v908
      %v959 = vsub.f32 %v770, %v909
      %v960 = vsub.f32 %v771, %v908
      %v961 = vsub.f32 %v771, %v909
      %v962 = vsub.f32 %v772, %v908
      %v963 = vsub.f32 %v772, %v909
      %v964 = vsub.f32 %v773, %v908
      %v965 = vsub.f32 %v773, %v909
      %v966 = vsub.f32 %v774, %v908
      %v967 = vsub.f32 %v774, %v909
      %v968 = vsub.f32 %v775, %v908
      %v969 = vsub.f32 %v775, %v909
      %v970 = vsub.f32 %v776, %v908
      %v971 = vsub.f32 %v776, %v909
      %v972 = vsub.f32 %v777, %v908
      %v973 = vsub.f32 %v777, %v909
      %v974 = vsub.f32 %v778, %v908
      %v975 = vsub.f32 %v778, %v909
      %v977 = vperm.slane %v295, 0
      %v978 = vperm.slane %v295, 1
      %v981 = vsub.f32 %v875, %v977
      %v982 = vsub.f32 %v875, %v978
      %v983 = vsub.f32 %v876, %v977
      %v984 = vsub.f32 %v876, %v978
      %v985 = vsub.f32 %v877, %v977
      %v986 = vsub.f32 %v877, %v978
      %v987 = vsub.f32 %v878, %v977
      %v988 = vsub.f32 %v878, %v978
      %v989 = vsub.f32 %v879, %v977
      %v990 = vsub.f32 %v879, %v978
      %v991 = vsub.f32 %v880, %v977
      %v992 = vsub.f32 %v880, %v978
      %v993 = vsub.f32 %v881, %v977
      %v994 = vsub.f32 %v881, %v978
      %v995 = vsub.f32 %v882, %v977
      %v996 = vsub.f32 %v882, %v978
      %v997 = vsub.f32 %v883, %v977
      %v998 = vsub.f32 %v883, %v978
      %v999 = vsub.f32 %v884, %v977
      %v1000 = vsub.f32 %v884, %v978
      %v1001 = vsub.f32 %v885, %v977
      %v1002 = vsub.f32 %v885, %v978
      %v1003 = vsub.f32 %v886, %v977
      %v1004 = vsub.f32 %v886, %v978
      %v1005 = vsub.f32 %v887, %v977
      %v1006 = vsub.f32 %v887, %v978
      %v1007 = vsub.f32 %v888, %v977
      %v1008 = vsub.f32 %v888, %v978
      %v1009 = vsub.f32 %v889, %v977
      %v1010 = vsub.f32 %v889, %v978
      %v1011 = vsub.f32 %v890, %v977
      %v1012 = vsub.f32 %v890, %v978
      %v1013 = vsub.f32 %v891, %v977
      %v1014 = vsub.f32 %v891, %v978
      %v1015 = vsub.f32 %v892, %v977
      %v1016 = vsub.f32 %v892, %v978
      %v1017 = vsub.f32 %v893, %v977
      %v1018 = vsub.f32 %v893, %v978
      %v1019 = vsub.f32 %v894, %v977
      %v1020 = vsub.f32 %v894, %v978
      %v1021 = vsub.f32 %v895, %v977
      %v1022 = vsub.f32 %v895, %v978
      %v1023 = vsub.f32 %v896, %v977
      %v1024 = vsub.f32 %v896, %v978
      %v1025 = vsub.f32 %v897, %v977
      %v1026 = vsub.f32 %v897, %v978
      %v1027 = vsub.f32 %v898, %v977
      %v1028 = vsub.f32 %v898, %v978
      %v1029 = vsub.f32 %v899, %v977
      %v1030 = vsub.f32 %v899, %v978
      %v1031 = vsub.f32 %v900, %v977
      %v1032 = vsub.f32 %v900, %v978
      %v1033 = vsub.f32 %v901, %v977
      %v1034 = vsub.f32 %v901, %v978
      %v1035 = vsub.f32 %v902, %v977
      %v1036 = vsub.f32 %v902, %v978
      %v1037 = vsub.f32 %v903, %v977
      %v1038 = vsub.f32 %v903, %v978
      %v1039 = vsub.f32 %v904, %v977
      %v1040 = vsub.f32 %v904, %v978
      %v1041 = vsub.f32 %v905, %v977
      %v1042 = vsub.f32 %v905, %v978
      %v1043 = vsub.f32 %v906, %v977
      %v1044 = vsub.f32 %v906, %v978
      %v1045 = vmul.f32 %v912, %v912
      %v1046 = vmul.f32 %v913, %v913
      %v1047 = vmul.f32 %v914, %v914
      %v1048 = vmul.f32 %v915, %v915
      %v1049 = vmul.f32 %v916, %v916
      %v1050 = vmul.f32 %v917, %v917
      %v1051 = vmul.f32 %v918, %v918
      %v1052 = vmul.f32 %v919, %v919
      %v1053 = vmul.f32 %v920, %v920
      %v1054 = vmul.f32 %v921, %v921
      %v1055 = vmul.f32 %v922, %v922
      %v1056 = vmul.f32 %v923, %v923
      %v1057 = vmul.f32 %v924, %v924
      %v1058 = vmul.f32 %v925, %v925
      %v1059 = vmul.f32 %v926, %v926
      %v1060 = vmul.f32 %v927, %v927
      %v1061 = vmul.f32 %v928, %v928
      %v1062 = vmul.f32 %v929, %v929
      %v1063 = vmul.f32 %v930, %v930
      %v1064 = vmul.f32 %v931, %v931
      %v1065 = vmul.f32 %v932, %v932
      %v1066 = vmul.f32 %v933, %v933
      %v1067 = vmul.f32 %v934, %v934
      %v1068 = vmul.f32 %v935, %v935
      %v1069 = vmul.f32 %v936, %v936
      %v1070 = vmul.f32 %v937, %v937
      %v1071 = vmul.f32 %v938, %v938
      %v1072 = vmul.f32 %v939, %v939
      %v1073 = vmul.f32 %v940, %v940
      %v1074 = vmul.f32 %v941, %v941
      %v1075 = vmul.f32 %v942, %v942
      %v1076 = vmul.f32 %v943, %v943
      %v1077 = vmul.f32 %v944, %v944
      %v1078 = vmul.f32 %v945, %v945
      %v1079 = vmul.f32 %v946, %v946
      %v1080 = vmul.f32 %v947, %v947
      %v1081 = vmul.f32 %v948, %v948
      %v1082 = vmul.f32 %v949, %v949
      %v1083 = vmul.f32 %v950, %v950
      %v1084 = vmul.f32 %v951, %v951
      %v1085 = vmul.f32 %v952, %v952
      %v1086 = vmul.f32 %v953, %v953
      %v1087 = vmul.f32 %v954, %v954
      %v1088 = vmul.f32 %v955, %v955
      %v1089 = vmul.f32 %v956, %v956
      %v1090 = vmul.f32 %v957, %v957
      %v1091 = vmul.f32 %v958, %v958
      %v1092 = vmul.f32 %v959, %v959
      %v1093 = vmul.f32 %v960, %v960
      %v1094 = vmul.f32 %v961, %v961
      %v1095 = vmul.f32 %v962, %v962
      %v1096 = vmul.f32 %v963, %v963
      %v1097 = vmul.f32 %v964, %v964
      %v1098 = vmul.f32 %v965, %v965
      %v1099 = vmul.f32 %v966, %v966
      %v1100 = vmul.f32 %v967, %v967
      %v1101 = vmul.f32 %v968, %v968
      %v1102 = vmul.f32 %v969, %v969
      %v1103 = vmul.f32 %v970, %v970
      %v1104 = vmul.f32 %v971, %v971
      %v1105 = vmul.f32 %v972, %v972
      %v1106 = vmul.f32 %v973, %v973
      %v1107 = vmul.f32 %v974, %v974
      %v1108 = vmul.f32 %v975, %v975
      %v1109 = vmul.f32 %v981, %v981
      %v1110 = vmul.f32 %v982, %v982
      %v1111 = vmul.f32 %v983, %v983
      %v1112 = vmul.f32 %v984, %v984
      %v1113 = vmul.f32 %v985, %v985
      %v1114 = vmul.f32 %v986, %v986
      %v1115 = vmul.f32 %v987, %v987
      %v1116 = vmul.f32 %v988, %v988
      %v1117 = vmul.f32 %v989, %v989
      %v1118 = vmul.f32 %v990, %v990
      %v1119 = vmul.f32 %v991, %v991
      %v1120 = vmul.f32 %v992, %v992
      %v1121 = vmul.f32 %v993, %v993
      %v1122 = vmul.f32 %v994, %v994
      %v1123 = vmul.f32 %v995, %v995
      %v1124 = vmul.f32 %v996, %v996
      %v1125 = vmul.f32 %v997, %v997
      %v1126 = vmul.f32 %v998, %v998
      %v1127 = vmul.f32 %v999, %v999
      %v1128 = vmul.f32 %v1000, %v1000
      %v1129 = vmul.f32 %v1001, %v1001
      %v1130 = vmul.f32 %v1002, %v1002
      %v1131 = vmul.f32 %v1003, %v1003
      %v1132 = vmul.f32 %v1004, %v1004
      %v1133 = vmul.f32 %v1005, %v1005
      %v1134 = vmul.f32 %v1006, %v1006
      %v1135 = vmul.f32 %v1007, %v1007
      %v1136 = vmul.f32 %v1008, %v1008
      %v1137 = vmul.f32 %v1009, %v1009
      %v1138 = vmul.f32 %v1010, %v1010
      %v1139 = vmul.f32 %v1011, %v1011
      %v1140 = vmul.f32 %v1012, %v1012
      %v1141 = vmul.f32 %v1013, %v1013
      %v1142 = vmul.f32 %v1014, %v1014
      %v1143 = vmul.f32 %v1015, %v1015
      %v1144 = vmul.f32 %v1016, %v1016
      %v1145 = vmul.f32 %v1017, %v1017
      %v1146 = vmul.f32 %v1018, %v1018
      %v1147 = vmul.f32 %v1019, %v1019
      %v1148 = vmul.f32 %v1020, %v1020
      %v1149 = vmul.f32 %v1021, %v1021
      %v1150 = vmul.f32 %v1022, %v1022
      %v1151 = vmul.f32 %v1023, %v1023
      %v1152 = vmul.f32 %v1024, %v1024
      %v1153 = vmul.f32 %v1025, %v1025
      %v1154 = vmul.f32 %v1026, %v1026
      %v1155 = vmul.f32 %v1027, %v1027
      %v1156 = vmul.f32 %v1028, %v1028
      %v1157 = vmul.f32 %v1029, %v1029
      %v1158 = vmul.f32 %v1030, %v1030
      %v1159 = vmul.f32 %v1031, %v1031
      %v1160 = vmul.f32 %v1032, %v1032
      %v1161 = vmul.f32 %v1033, %v1033
      %v1162 = vmul.f32 %v1034, %v1034
      %v1163 = vmul.f32 %v1035, %v1035
      %v1164 = vmul.f32 %v1036, %v1036
      %v1165 = vmul.f32 %v1037, %v1037
      %v1166 = vmul.f32 %v1038, %v1038
      %v1167 = vmul.f32 %v1039, %v1039
      %v1168 = vmul.f32 %v1040, %v1040
      %v1169 = vmul.f32 %v1041, %v1041
      %v1170 = vmul.f32 %v1042, %v1042
      %v1171 = vmul.f32 %v1043, %v1043
      %v1172 = vmul.f32 %v1044, %v1044
      %v1173 = vadd.f32 %v1045, %v1109
      %v1174 = vadd.f32 %v1046, %v1110
      %v1175 = vadd.f32 %v1047, %v1111
      %v1176 = vadd.f32 %v1048, %v1112
      %v1177 = vadd.f32 %v1049, %v1113
      %v1178 = vadd.f32 %v1050, %v1114
      %v1179 = vadd.f32 %v1051, %v1115
      %v1180 = vadd.f32 %v1052, %v1116
      %v1181 = vadd.f32 %v1053, %v1117
      %v1182 = vadd.f32 %v1054, %v1118
      %v1183 = vadd.f32 %v1055, %v1119
      %v1184 = vadd.f32 %v1056, %v1120
      %v1185 = vadd.f32 %v1057, %v1121
      %v1186 = vadd.f32 %v1058, %v1122
      %v1187 = vadd.f32 %v1059, %v1123
      %v1188 = vadd.f32 %v1060, %v1124
      %v1189 = vadd.f32 %v1061, %v1125
      %v1190 = vadd.f32 %v1062, %v1126
      %v1191 = vadd.f32 %v1063, %v1127
      %v1192 = vadd.f32 %v1064, %v1128
      %v1193 = vadd.f32 %v1065, %v1129
      %v1194 = vadd.f32 %v1066, %v1130
      %v1195 = vadd.f32 %v1067, %v1131
      %v1196 = vadd.f32 %v1068, %v1132
      %v1197 = vadd.f32 %v1069, %v1133
      %v1198 = vadd.f32 %v1070, %v1134
      %v1199 = vadd.f32 %v1071, %v1135
      %v1200 = vadd.f32 %v1072, %v1136
      %v1201 = vadd.f32 %v1073, %v1137
      %v1202 = vadd.f32 %v1074, %v1138
      %v1203 = vadd.f32 %v1075, %v1139
      %v1204 = vadd.f32 %v1076, %v1140
      %v1205 = vadd.f32 %v1077, %v1141
      %v1206 = vadd.f32 %v1078, %v1142
      %v1207 = vadd.f32 %v1079, %v1143
      %v1208 = vadd.f32 %v1080, %v1144
      %v1209 = vadd.f32 %v1081, %v1145
      %v1210 = vadd.f32 %v1082, %v1146
      %v1211 = vadd.f32 %v1083, %v1147
      %v1212 = vadd.f32 %v1084, %v1148
      %v1213 = vadd.f32 %v1085, %v1149
      %v1214 = vadd.f32 %v1086, %v1150
      %v1215 = vadd.f32 %v1087, %v1151
      %v1216 = vadd.f32 %v1088, %v1152
      %v1217 = vadd.f32 %v1089, %v1153
      %v1218 = vadd.f32 %v1090, %v1154
      %v1219 = vadd.f32 %v1091, %v1155
      %v1220 = vadd.f32 %v1092, %v1156
      %v1221 = vadd.f32 %v1093, %v1157
      %v1222 = vadd.f32 %v1094, %v1158
      %v1223 = vadd.f32 %v1095, %v1159
      %v1224 = vadd.f32 %v1096, %v1160
      %v1225 = vadd.f32 %v1097, %v1161
      %v1226 = vadd.f32 %v1098, %v1162
      %v1227 = vadd.f32 %v1099, %v1163
      %v1228 = vadd.f32 %v1100, %v1164
      %v1229 = vadd.f32 %v1101, %v1165
      %v1230 = vadd.f32 %v1102, %v1166
      %v1231 = vadd.f32 %v1103, %v1167
      %v1232 = vadd.f32 %v1104, %v1168
      %v1233 = vadd.f32 %v1105, %v1169
      %v1234 = vadd.f32 %v1106, %v1170
      %v1235 = vadd.f32 %v1107, %v1171
      %v1236 = vadd.f32 %v1108, %v1172
      %v1237 = vsub.f32 0.0, %v1173
      %v1238 = vsub.f32 0.0, %v1174
      %v1239 = vsub.f32 0.0, %v1175
      %v1240 = vsub.f32 0.0, %v1176
      %v1241 = vsub.f32 0.0, %v1177
      %v1242 = vsub.f32 0.0, %v1178
      %v1243 = vsub.f32 0.0, %v1179
      %v1244 = vsub.f32 0.0, %v1180
      %v1245 = vsub.f32 0.0, %v1181
      %v1246 = vsub.f32 0.0, %v1182
      %v1247 = vsub.f32 0.0, %v1183
      %v1248 = vsub.f32 0.0, %v1184
      %v1249 = vsub.f32 0.0, %v1185
      %v1250 = vsub.f32 0.0, %v1186
      %v1251 = vsub.f32 0.0, %v1187
      %v1252 = vsub.f32 0.0, %v1188
      %v1253 = vsub.f32 0.0, %v1189
      %v1254 = vsub.f32 0.0, %v1190
      %v1255 = vsub.f32 0.0, %v1191
      %v1256 = vsub.f32 0.0, %v1192
      %v1257 = vsub.f32 0.0, %v1193
      %v1258 = vsub.f32 0.0, %v1194
      %v1259 = vsub.f32 0.0, %v1195
      %v1260 = vsub.f32 0.0, %v1196
      %v1261 = vsub.f32 0.0, %v1197
      %v1262 = vsub.f32 0.0, %v1198
      %v1263 = vsub.f32 0.0, %v1199
      %v1264 = vsub.f32 0.0, %v1200
      %v1265 = vsub.f32 0.0, %v1201
      %v1266 = vsub.f32 0.0, %v1202
      %v1267 = vsub.f32 0.0, %v1203
      %v1268 = vsub.f32 0.0, %v1204
      %v1269 = vsub.f32 0.0, %v1205
      %v1270 = vsub.f32 0.0, %v1206
      %v1271 = vsub.f32 0.0, %v1207
      %v1272 = vsub.f32 0.0, %v1208
      %v1273 = vsub.f32 0.0, %v1209
      %v1274 = vsub.f32 0.0, %v1210
      %v1275 = vsub.f32 0.0, %v1211
      %v1276 = vsub.f32 0.0, %v1212
      %v1277 = vsub.f32 0.0, %v1213
      %v1278 = vsub.f32 0.0, %v1214
      %v1279 = vsub.f32 0.0, %v1215
      %v1280 = vsub.f32 0.0, %v1216
      %v1281 = vsub.f32 0.0, %v1217
      %v1282 = vsub.f32 0.0, %v1218
      %v1283 = vsub.f32 0.0, %v1219
      %v1284 = vsub.f32 0.0, %v1220
      %v1285 = vsub.f32 0.0, %v1221
      %v1286 = vsub.f32 0.0, %v1222
      %v1287 = vsub.f32 0.0, %v1223
      %v1288 = vsub.f32 0.0, %v1224
      %v1289 = vsub.f32 0.0, %v1225
      %v1290 = vsub.f32 0.0, %v1226
      %v1291 = vsub.f32 0.0, %v1227
      %v1292 = vsub.f32 0.0, %v1228
      %v1293 = vsub.f32 0.0, %v1229
      %v1294 = vsub.f32 0.0, %v1230
      %v1295 = vsub.f32 0.0, %v1231
      %v1296 = vsub.f32 0.0, %v1232
      %v1297 = vsub.f32 0.0, %v1233
      %v1298 = vsub.f32 0.0, %v1234
      %v1299 = vsub.f32 0.0, %v1235
      %v1300 = vsub.f32 0.0, %v1236
      %v1301 = vstv %s292
      %v1302 = vmul.f32 %v1237, %v1301
      %v1303 = vmul.f32 %v1238, %v1301
      %v1304 = vmul.f32 %v1239, %v1301
      %v1305 = vmul.f32 %v1240, %v1301
      %v1306 = vmul.f32 %v1241, %v1301
      %v1307 = vmul.f32 %v1242, %v1301
      %v1308 = vmul.f32 %v1243, %v1301
      %v1309 = vmul.f32 %v1244, %v1301
      %v1310 = vmul.f32 %v1245, %v1301
      %v1311 = vmul.f32 %v1246, %v1301
      %v1312 = vmul.f32 %v1247, %v1301
      %v1313 = vmul.f32 %v1248, %v1301
      %v1314 = vmul.f32 %v1249, %v1301
      %v1315 = vmul.f32 %v1250, %v1301
      %v1316 = vmul.f32 %v1251, %v1301
      %v1317 = vmul.f32 %v1252, %v1301
      %v1318 = vmul.f32 %v1253, %v1301
      %v1319 = vmul.f32 %v1254, %v1301
      %v1320 = vmul.f32 %v1255, %v1301
      %v1321 = vmul.f32 %v1256, %v1301
      %v1322 = vmul.f32 %v1257, %v1301
      %v1323 = vmul.f32 %v1258, %v1301
      %v1324 = vmul.f32 %v1259, %v1301
      %v1325 = vmul.f32 %v1260, %v1301
      %v1326 = vmul.f32 %v1261, %v1301
      %v1327 = vmul.f32 %v1262, %v1301
      %v1328 = vmul.f32 %v1263, %v1301
      %v1329 = vmul.f32 %v1264, %v1301
      %v1330 = vmul.f32 %v1265, %v1301
      %v1331 = vmul.f32 %v1266, %v1301
      %v1332 = vmul.f32 %v1267, %v1301
      %v1333 = vmul.f32 %v1268, %v1301
      %v1334 = vmul.f32 %v1269, %v1301
      %v1335 = vmul.f32 %v1270, %v1301
      %v1336 = vmul.f32 %v1271, %v1301
      %v1337 = vmul.f32 %v1272, %v1301
      %v1338 = vmul.f32 %v1273, %v1301
      %v1339 = vmul.f32 %v1274, %v1301
      %v1340 = vmul.f32 %v1275, %v1301
      %v1341 = vmul.f32 %v1276, %v1301
      %v1342 = vmul.f32 %v1277, %v1301
      %v1343 = vmul.f32 %v1278, %v1301
      %v1344 = vmul.f32 %v1279, %v1301
      %v1345 = vmul.f32 %v1280, %v1301
      %v1346 = vmul.f32 %v1281, %v1301
      %v1347 = vmul.f32 %v1282, %v1301
      %v1348 = vmul.f32 %v1283, %v1301
      %v1349 = vmul.f32 %v1284, %v1301
      %v1350 = vmul.f32 %v1285, %v1301
      %v1351 = vmul.f32 %v1286, %v1301
      %v1352 = vmul.f32 %v1287, %v1301
      %v1353 = vmul.f32 %v1288, %v1301
      %v1354 = vmul.f32 %v1289, %v1301
      %v1355 = vmul.f32 %v1290, %v1301
      %v1356 = vmul.f32 %v1291, %v1301
      %v1357 = vmul.f32 %v1292, %v1301
      %v1358 = vmul.f32 %v1293, %v1301
      %v1359 = vmul.f32 %v1294, %v1301
      %v1360 = vmul.f32 %v1295, %v1301
      %v1361 = vmul.f32 %v1296, %v1301
      %v1362 = vmul.f32 %v1297, %v1301
      %v1363 = vmul.f32 %v1298, %v1301
      %v1364 = vmul.f32 %v1299, %v1301
      %v1365 = vmul.f32 %v1300, %v1301
      %v1366 = vmul.f32 %v1302, 1.442695
      %v1367 = vpow.pop %v1366
      %v1368 = vmul.f32 %v1303, 1.442695
      %v1369 = vpow.pop %v1368
      %v1370 = vmul.f32 %v1304, 1.442695
      %v1371 = vpow.pop %v1370
      %v1372 = vmul.f32 %v1305, 1.442695
      %v1373 = vpow.pop %v1372
      %v1374 = vmul.f32 %v1306, 1.442695
      %v1375 = vpow.pop %v1374
      %v1376 = vmul.f32 %v1307, 1.442695
      %v1377 = vpow.pop %v1376
      %v1378 = vmul.f32 %v1308, 1.442695
      %v1379 = vpow.pop %v1378
      %v1380 = vmul.f32 %v1309, 1.442695
      %v1381 = vpow.pop %v1380
      %v1382 = vmul.f32 %v1310, 1.442695
      %v1383 = vpow.pop %v1382
      %v1384 = vmul.f32 %v1311, 1.442695
      %v1385 = vpow.pop %v1384
      %v1386 = vmul.f32 %v1312, 1.442695
      %v1387 = vpow.pop %v1386
      %v1388 = vmul.f32 %v1313, 1.442695
      %v1389 = vpow.pop %v1388
      %v1390 = vmul.f32 %v1314, 1.442695
      %v1391 = vpow.pop %v1390
      %v1392 = vmul.f32 %v1315, 1.442695
      %v1393 = vpow.pop %v1392
      %v1394 = vmul.f32 %v1316, 1.442695
      %v1395 = vpow.pop %v1394
      %v1396 = vmul.f32 %v1317, 1.442695
      %v1397 = vpow.pop %v1396
      %v1398 = vmul.f32 %v1318, 1.442695
      %v1399 = vpow.pop %v1398
      %v1400 = vmul.f32 %v1319, 1.442695
      %v1401 = vpow.pop %v1400
      %v1402 = vmul.f32 %v1320, 1.442695
      %v1403 = vpow.pop %v1402
      %v1404 = vmul.f32 %v1321, 1.442695
      %v1405 = vpow.pop %v1404
      %v1406 = vmul.f32 %v1322, 1.442695
      %v1407 = vpow.pop %v1406
      %v1408 = vmul.f32 %v1323, 1.442695
      %v1409 = vpow.pop %v1408
      %v1410 = vmul.f32 %v1324, 1.442695
      %v1411 = vpow.pop %v1410
      %v1412 = vmul.f32 %v1325, 1.442695
      %v1413 = vpow.pop %v1412
      %v1414 = vmul.f32 %v1326, 1.442695
      %v1415 = vpow.pop %v1414
      %v1416 = vmul.f32 %v1327, 1.442695
      %v1417 = vpow.pop %v1416
      %v1418 = vmul.f32 %v1328, 1.442695
      %v1419 = vpow.pop %v1418
      %v1420 = vmul.f32 %v1329, 1.442695
      %v1421 = vpow.pop %v1420
      %v1422 = vmul.f32 %v1330, 1.442695
      %v1423 = vpow.pop %v1422
      %v1424 = vmul.f32 %v1331, 1.442695
      %v1425 = vpow.pop %v1424
      %v1426 = vmul.f32 %v1332, 1.442695
      %v1427 = vpow.pop %v1426
      %v1428 = vmul.f32 %v1333, 1.442695
      %v1429 = vpow.pop %v1428
      %v1430 = vmul.f32 %v1334, 1.442695
      %v1431 = vpow.pop %v1430
      %v1432 = vmul.f32 %v1335, 1.442695
      %v1433 = vpow.pop %v1432
      %v1434 = vmul.f32 %v1336, 1.442695
      %v1435 = vpow.pop %v1434
      %v1436 = vmul.f32 %v1337, 1.442695
      %v1437 = vpow.pop %v1436
      %v1438 = vmul.f32 %v1338, 1.442695
      %v1439 = vpow.pop %v1438
      %v1440 = vmul.f32 %v1339, 1.442695
      %v1441 = vpow.pop %v1440
      %v1442 = vmul.f32 %v1340, 1.442695
      %v1443 = vpow.pop %v1442
      %v1444 = vmul.f32 %v1341, 1.442695
      %v1445 = vpow.pop %v1444
      %v1446 = vmul.f32 %v1342, 1.442695
      %v1447 = vpow.pop %v1446
      %v1448 = vmul.f32 %v1343, 1.442695
      %v1449 = vpow.pop %v1448
      %v1450 = vmul.f32 %v1344, 1.442695
      %v1451 = vpow.pop %v1450
      %v1452 = vmul.f32 %v1345, 1.442695
      %v1453 = vpow.pop %v1452
      %v1454 = vmul.f32 %v1346, 1.442695
      %v1455 = vpow.pop %v1454
      %v1456 = vmul.f32 %v1347, 1.442695
      %v1457 = vpow.pop %v1456
      %v1458 = vmul.f32 %v1348, 1.442695
      %v1459 = vpow.pop %v1458
      %v1460 = vmul.f32 %v1349, 1.442695
      %v1461 = vpow.pop %v1460
      %v1462 = vmul.f32 %v1350, 1.442695
      %v1463 = vpow.pop %v1462
      %v1464 = vmul.f32 %v1351, 1.442695
      %v1465 = vpow.pop %v1464
      %v1466 = vmul.f32 %v1352, 1.442695
      %v1467 = vpow.pop %v1466
      %v1468 = vmul.f32 %v1353, 1.442695
      %v1469 = vpow.pop %v1468
      %v1470 = vmul.f32 %v1354, 1.442695
      %v1471 = vpow.pop %v1470
      %v1472 = vmul.f32 %v1355, 1.442695
      %v1473 = vpow.pop %v1472
      %v1474 = vmul.f32 %v1356, 1.442695
      %v1475 = vpow.pop %v1474
      %v1476 = vmul.f32 %v1357, 1.442695
      %v1477 = vpow.pop %v1476
      %v1478 = vmul.f32 %v1358, 1.442695
      %v1479 = vpow.pop %v1478
      %v1480 = vmul.f32 %v1359, 1.442695
      %v1481 = vpow.pop %v1480
      %v1482 = vmul.f32 %v1360, 1.442695
      %v1483 = vpow.pop %v1482
      %v1484 = vmul.f32 %v1361, 1.442695
      %v1485 = vpow.pop %v1484
      %v1486 = vmul.f32 %v1362, 1.442695
      %v1487 = vpow.pop %v1486
      %v1488 = vmul.f32 %v1363, 1.442695
      %v1489 = vpow.pop %v1488
      %v1490 = vmul.f32 %v1364, 1.442695
      %v1491 = vpow.pop %v1490
      %v1492 = vmul.f32 %v1365, 1.442695
      %v1493 = vpow.pop %v1492
      %v1494 = vpack.c.bf16 %v1371, %v1367
      %v1495 = vpack.c.bf16 %v1373, %v1369
      %v1496 = vpack.c.bf16 %v1379, %v1375
      %v1497 = vpack.c.bf16 %v1381, %v1377
      %v1498 = vpack.c.bf16 %v1387, %v1383
      %v1499 = vpack.c.bf16 %v1389, %v1385
      %v1500 = vpack.c.bf16 %v1395, %v1391
      %v1501 = vpack.c.bf16 %v1397, %v1393
      %v1502 = vpack.c.bf16 %v1403, %v1399
      %v1503 = vpack.c.bf16 %v1405, %v1401
      %v1504 = vpack.c.bf16 %v1411, %v1407
      %v1505 = vpack.c.bf16 %v1413, %v1409
      %v1506 = vpack.c.bf16 %v1419, %v1415
      %v1507 = vpack.c.bf16 %v1421, %v1417
      %v1508 = vpack.c.bf16 %v1427, %v1423
      %v1509 = vpack.c.bf16 %v1429, %v1425
      %v1510 = vpack.c.bf16 %v1435, %v1431
      %v1511 = vpack.c.bf16 %v1437, %v1433
      %v1512 = vpack.c.bf16 %v1443, %v1439
      %v1513 = vpack.c.bf16 %v1445, %v1441
      %v1514 = vpack.c.bf16 %v1451, %v1447
      %v1515 = vpack.c.bf16 %v1453, %v1449
      %v1516 = vpack.c.bf16 %v1459, %v1455
      %v1517 = vpack.c.bf16 %v1461, %v1457
      %v1518 = vpack.c.bf16 %v1467, %v1463
      %v1519 = vpack.c.bf16 %v1469, %v1465
      %v1520 = vpack.c.bf16 %v1475, %v1471
      %v1521 = vpack.c.bf16 %v1477, %v1473
      %v1522 = vpack.c.bf16 %v1483, %v1479
      %v1523 = vpack.c.bf16 %v1485, %v1481
      %v1524 = vpack.c.bf16 %v1491, %v1487
      %v1525 = vpack.c.bf16 %v1493, %v1489
      %v1526 = vld [vmem:[%s242] sm:$0xff]
      %1528 = vst [vmem:[#allocation1] ss:$2 sm:$0xff] %v1526
      %v1529 = vld.sshfl [vmem:[#allocation1] sm:$0xff pattern:$0x75316420]
      %v1530 = vld.sshfl [vmem:[#allocation1 + $0x8] sm:$0xff pattern:$0x75316420]
      %v1533 = vpack.c.bf16 %v1529, %v1529
      %v1534 = vpack.c.bf16 %v1530, %v1530
      %v1535 = vld [vmem:[#allocation2] sm:$0xff]
      %v1536 = vld [vmem:[#allocation2 + $0x8] sm:$0xff]
      %v1537 = vld [vmem:[#allocation2 + $0x10] sm:$0xff]
      %v1538 = vld [vmem:[#allocation2 + $0x18] sm:$0xff]
      %v1539 = vld [vmem:[#allocation2 + $0x20] sm:$0xff]
      %v1540 = vld [vmem:[#allocation2 + $0x28] sm:$0xff]
      %v1541 = vld [vmem:[#allocation2 + $0x30] sm:$0xff]
      %v1542 = vld [vmem:[#allocation2 + $0x38] sm:$0xff]
      %v1543 = vld [vmem:[#allocation2 + $0x40] sm:$0xff]
      %v1544 = vld [vmem:[#allocation2 + $0x48] sm:$0xff]
      %v1545 = vld [vmem:[#allocation2 + $0x50] sm:$0xff]
      %v1546 = vld [vmem:[#allocation2 + $0x58] sm:$0xff]
      %v1547 = vld [vmem:[#allocation2 + $0x60] sm:$0xff]
      %v1548 = vld [vmem:[#allocation2 + $0x68] sm:$0xff]
      %v1549 = vld [vmem:[#allocation2 + $0x70] sm:$0xff]
      %v1550 = vld [vmem:[#allocation2 + $0x78] sm:$0xff]
      %v1551 = vld [vmem:[#allocation2 + $0x80] sm:$0xff]
      %v1552 = vld [vmem:[#allocation2 + $0x88] sm:$0xff]
      %v1553 = vld [vmem:[#allocation2 + $0x90] sm:$0xff]
      %v1554 = vld [vmem:[#allocation2 + $0x98] sm:$0xff]
      %v1555 = vld [vmem:[#allocation2 + $0xa0] sm:$0xff]
      %v1556 = vld [vmem:[#allocation2 + $0xa8] sm:$0xff]
      %v1557 = vld [vmem:[#allocation2 + $0xb0] sm:$0xff]
      %v1558 = vld [vmem:[#allocation2 + $0xb8] sm:$0xff]
      %v1559 = vld [vmem:[#allocation2 + $0xc0] sm:$0xff]
      %v1560 = vld [vmem:[#allocation2 + $0xc8] sm:$0xff]
      %v1561 = vld [vmem:[#allocation2 + $0xd0] sm:$0xff]
      %v1562 = vld [vmem:[#allocation2 + $0xd8] sm:$0xff]
      %v1563 = vld [vmem:[#allocation2 + $0xe0] sm:$0xff]
      %v1564 = vld [vmem:[#allocation2 + $0xe8] sm:$0xff]
      %v1565 = vld [vmem:[#allocation2 + $0xf0] sm:$0xff]
      %v1566 = vld [vmem:[#allocation2 + $0xf8] sm:$0xff]
      %1567 = vmatpush.bf16.xpose.msra.mxu0 0
      %1568 = vmatpush.bf16.xpose.msra.mxu0 0
      %1569 = vmatpush.bf16.xpose.msra.mxu0 0
      %1570 = vmatpush.bf16.xpose.msra.mxu0 0
      %1571 = vmatpush.bf16.xpose.msra.mxu0 0
      %1572 = vmatpush.bf16.xpose.msra.mxu0 0
      %1573 = vmatpush.bf16.xpose.msra.mxu0 0
      %1574 = vmatpush.bf16.xpose.msra.mxu0 %v1533
      %1575 = vmatmul.bf16.gmra.mxu0 %v1494
      %v1576 = vpop.f32.mrf.mxu0
      %v1577 = vadd.f32 0.0, %v1576
      %v1578 = vpop.f32.mrf.mxu0
      %v1579 = vadd.f32 0.0, %v1578
      %1580 = vmatmul.bf16.gmra.mxu0 %v1496
      %v1581 = vpop.f32.mrf.mxu0
      %v1582 = vadd.f32 0.0, %v1581
      %v1583 = vpop.f32.mrf.mxu0
      %v1584 = vadd.f32 0.0, %v1583
      %1585 = vmatmul.bf16.gmra.mxu0 %v1498
      %v1586 = vpop.f32.mrf.mxu0
      %v1587 = vadd.f32 0.0, %v1586
      %v1588 = vpop.f32.mrf.mxu0
      %v1589 = vadd.f32 0.0, %v1588
      %1590 = vmatmul.bf16.gmra.mxu0 %v1500
      %v1591 = vpop.f32.mrf.mxu0
      %v1592 = vadd.f32 0.0, %v1591
      %v1593 = vpop.f32.mrf.mxu0
      %v1594 = vadd.f32 0.0, %v1593
      %1595 = vmatmul.bf16.gmra.mxu0 %v1502
      %v1596 = vpop.f32.mrf.mxu0
      %v1597 = vadd.f32 0.0, %v1596
      %v1598 = vpop.f32.mrf.mxu0
      %v1599 = vadd.f32 0.0, %v1598
      %1600 = vmatmul.bf16.gmra.mxu0 %v1504
      %v1601 = vpop.f32.mrf.mxu0
      %v1602 = vadd.f32 0.0, %v1601
      %v1603 = vpop.f32.mrf.mxu0
      %v1604 = vadd.f32 0.0, %v1603
      %1605 = vmatmul.bf16.gmra.mxu0 %v1506
      %v1606 = vpop.f32.mrf.mxu0
      %v1607 = vadd.f32 0.0, %v1606
      %v1608 = vpop.f32.mrf.mxu0
      %v1609 = vadd.f32 0.0, %v1608
      %1610 = vmatmul.bf16.gmra.mxu0 %v1508
      %v1611 = vpop.f32.mrf.mxu0
      %v1612 = vadd.f32 0.0, %v1611
      %v1613 = vpop.f32.mrf.mxu0
      %v1614 = vadd.f32 0.0, %v1613
      %1615 = vmatmul.bf16.gmra.mxu0 %v1510
      %v1616 = vpop.f32.mrf.mxu0
      %v1617 = vadd.f32 0.0, %v1616
      %v1618 = vpop.f32.mrf.mxu0
      %v1619 = vadd.f32 0.0, %v1618
      %1620 = vmatmul.bf16.gmra.mxu0 %v1512
      %v1621 = vpop.f32.mrf.mxu0
      %v1622 = vadd.f32 0.0, %v1621
      %v1623 = vpop.f32.mrf.mxu0
      %v1624 = vadd.f32 0.0, %v1623
      %1625 = vmatmul.bf16.gmra.mxu0 %v1514
      %v1626 = vpop.f32.mrf.mxu0
      %v1627 = vadd.f32 0.0, %v1626
      %v1628 = vpop.f32.mrf.mxu0
      %v1629 = vadd.f32 0.0, %v1628
      %1630 = vmatmul.bf16.gmra.mxu0 %v1516
      %v1631 = vpop.f32.mrf.mxu0
      %v1632 = vadd.f32 0.0, %v1631
      %v1633 = vpop.f32.mrf.mxu0
      %v1634 = vadd.f32 0.0, %v1633
      %1635 = vmatmul.bf16.gmra.mxu0 %v1518
      %v1636 = vpop.f32.mrf.mxu0
      %v1637 = vadd.f32 0.0, %v1636
      %v1638 = vpop.f32.mrf.mxu0
      %v1639 = vadd.f32 0.0, %v1638
      %1640 = vmatmul.bf16.gmra.mxu0 %v1520
      %v1641 = vpop.f32.mrf.mxu0
      %v1642 = vadd.f32 0.0, %v1641
      %v1643 = vpop.f32.mrf.mxu0
      %v1644 = vadd.f32 0.0, %v1643
      %1645 = vmatmul.bf16.gmra.mxu0 %v1522
      %v1646 = vpop.f32.mrf.mxu0
      %v1647 = vadd.f32 0.0, %v1646
      %v1648 = vpop.f32.mrf.mxu0
      %v1649 = vadd.f32 0.0, %v1648
      %1650 = vmatmul.bf16.gmra.mxu0 %v1524
      %v1651 = vpop.f32.mrf.mxu0
      %v1652 = vadd.f32 0.0, %v1651
      %v1653 = vpop.f32.mrf.mxu0
      %v1654 = vadd.f32 0.0, %v1653
      %1655 = vdwg.mxu0
      %1656 = vmatpush.bf16.xpose.msra.mxu0 0
      %1657 = vmatpush.bf16.xpose.msra.mxu0 0
      %1658 = vmatpush.bf16.xpose.msra.mxu0 0
      %1659 = vmatpush.bf16.xpose.msra.mxu0 0
      %1660 = vmatpush.bf16.xpose.msra.mxu0 0
      %1661 = vmatpush.bf16.xpose.msra.mxu0 0
      %1662 = vmatpush.bf16.xpose.msra.mxu0 0
      %1663 = vmatpush.bf16.xpose.msra.mxu0 %v1534
      %1664 = vmatmul.bf16.gmra.mxu0 %v1495
      %v1665 = vpop.f32.mrf.mxu0
      %v1666 = vadd.f32 %v1577, %v1665
      %v1667 = vpop.f32.mrf.mxu0
      %v1668 = vadd.f32 %v1579, %v1667
      %1669 = vmatmul.bf16.gmra.mxu0 %v1497
      %v1670 = vpop.f32.mrf.mxu0
      %v1671 = vadd.f32 %v1582, %v1670
      %v1672 = vpop.f32.mrf.mxu0
      %v1673 = vadd.f32 %v1584, %v1672
      %1674 = vmatmul.bf16.gmra.mxu0 %v1499
      %v1675 = vpop.f32.mrf.mxu0
      %v1676 = vadd.f32 %v1587, %v1675
      %v1677 = vpop.f32.mrf.mxu0
      %v1678 = vadd.f32 %v1589, %v1677
      %1679 = vmatmul.bf16.gmra.mxu0 %v1501
      %v1680 = vpop.f32.mrf.mxu0
      %v1681 = vadd.f32 %v1592, %v1680
      %v1682 = vpop.f32.mrf.mxu0
      %v1683 = vadd.f32 %v1594, %v1682
      %1684 = vmatmul.bf16.gmra.mxu0 %v1503
      %v1685 = vpop.f32.mrf.mxu0
      %v1686 = vadd.f32 %v1597, %v1685
      %v1687 = vpop.f32.mrf.mxu0
      %v1688 = vadd.f32 %v1599, %v1687
      %1689 = vmatmul.bf16.gmra.mxu0 %v1505
      %v1690 = vpop.f32.mrf.mxu0
      %v1691 = vadd.f32 %v1602, %v1690
      %v1692 = vpop.f32.mrf.mxu0
      %v1693 = vadd.f32 %v1604, %v1692
      %1694 = vmatmul.bf16.gmra.mxu0 %v1507
      %v1695 = vpop.f32.mrf.mxu0
      %v1696 = vadd.f32 %v1607, %v1695
      %v1697 = vpop.f32.mrf.mxu0
      %v1698 = vadd.f32 %v1609, %v1697
      %1699 = vmatmul.bf16.gmra.mxu0 %v1509
      %v1700 = vpop.f32.mrf.mxu0
      %v1701 = vadd.f32 %v1612, %v1700
      %v1702 = vpop.f32.mrf.mxu0
      %v1703 = vadd.f32 %v1614, %v1702
      %1704 = vmatmul.bf16.gmra.mxu0 %v1511
      %v1705 = vpop.f32.mrf.mxu0
      %v1706 = vadd.f32 %v1617, %v1705
      %v1707 = vpop.f32.mrf.mxu0
      %v1708 = vadd.f32 %v1619, %v1707
      %1709 = vmatmul.bf16.gmra.mxu0 %v1513
      %v1710 = vpop.f32.mrf.mxu0
      %v1711 = vadd.f32 %v1622, %v1710
      %v1712 = vpop.f32.mrf.mxu0
      %v1713 = vadd.f32 %v1624, %v1712
      %1714 = vmatmul.bf16.gmra.mxu0 %v1515
      %v1715 = vpop.f32.mrf.mxu0
      %v1716 = vadd.f32 %v1627, %v1715
      %v1717 = vpop.f32.mrf.mxu0
      %v1718 = vadd.f32 %v1629, %v1717
      %1719 = vmatmul.bf16.gmra.mxu0 %v1517
      %v1720 = vpop.f32.mrf.mxu0
      %v1721 = vadd.f32 %v1632, %v1720
      %v1722 = vpop.f32.mrf.mxu0
      %v1723 = vadd.f32 %v1634, %v1722
      %1724 = vmatmul.bf16.gmra.mxu0 %v1519
      %v1725 = vpop.f32.mrf.mxu0
      %v1726 = vadd.f32 %v1637, %v1725
      %v1727 = vpop.f32.mrf.mxu0
      %v1728 = vadd.f32 %v1639, %v1727
      %1729 = vmatmul.bf16.gmra.mxu0 %v1521
      %v1730 = vpop.f32.mrf.mxu0
      %v1731 = vadd.f32 %v1642, %v1730
      %v1732 = vpop.f32.mrf.mxu0
      %v1733 = vadd.f32 %v1644, %v1732
      %1734 = vmatmul.bf16.gmra.mxu0 %v1523
      %v1735 = vpop.f32.mrf.mxu0
      %v1736 = vadd.f32 %v1647, %v1735
      %v1737 = vpop.f32.mrf.mxu0
      %v1738 = vadd.f32 %v1649, %v1737
      %1739 = vmatmul.bf16.gmra.mxu0 %v1525
      %v1740 = vpop.f32.mrf.mxu0
      %v1741 = vadd.f32 %v1652, %v1740
      %v1742 = vpop.f32.mrf.mxu0
      %v1743 = vadd.f32 %v1654, %v1742
      %1744 = vdwg.mxu0
      %v1745 = vadd.f32 %v1535, %v1666
      %v1746 = vadd.f32 %v1536, %v1668
      %v1747 = vadd.f32 %v1537, %v1671
      %v1748 = vadd.f32 %v1538, %v1673
      %v1749 = vadd.f32 %v1539, %v1676
      %v1750 = vadd.f32 %v1540, %v1678
      %v1751 = vadd.f32 %v1541, %v1681
      %v1752 = vadd.f32 %v1542, %v1683
      %v1753 = vadd.f32 %v1543, %v1686
      %v1754 = vadd.f32 %v1544, %v1688
      %v1755 = vadd.f32 %v1545, %v1691
      %v1756 = vadd.f32 %v1546, %v1693
      %v1757 = vadd.f32 %v1547, %v1696
      %v1758 = vadd.f32 %v1548, %v1698
      %v1759 = vadd.f32 %v1549, %v1701
      %v1760 = vadd.f32 %v1550, %v1703
      %v1761 = vadd.f32 %v1551, %v1706
      %v1762 = vadd.f32 %v1552, %v1708
      %v1763 = vadd.f32 %v1553, %v1711
      %v1764 = vadd.f32 %v1554, %v1713
      %v1765 = vadd.f32 %v1555, %v1716
      %v1766 = vadd.f32 %v1556, %v1718
      %v1767 = vadd.f32 %v1557, %v1721
      %v1768 = vadd.f32 %v1558, %v1723
      %v1769 = vadd.f32 %v1559, %v1726
      %v1770 = vadd.f32 %v1560, %v1728
      %v1771 = vadd.f32 %v1561, %v1731
      %v1772 = vadd.f32 %v1562, %v1733
      %v1773 = vadd.f32 %v1563, %v1736
      %v1774 = vadd.f32 %v1564, %v1738
      %v1775 = vadd.f32 %v1565, %v1741
      %v1776 = vadd.f32 %v1566, %v1743
      %vm1777 = vcmask 31744
      %1778 = vst.msk [vmem:[#allocation2] sm:$0xff] %vm1777, %v1745
      %1779 = vst.msk [vmem:[#allocation2 + $0x8] sm:$0xff] %vm1777, %v1746
      %1780 = vst.msk [vmem:[#allocation2 + $0x10] sm:$0xff] %vm1777, %v1747
      %1781 = vst.msk [vmem:[#allocation2 + $0x18] sm:$0xff] %vm1777, %v1748
      %1782 = vst.msk [vmem:[#allocation2 + $0x20] sm:$0xff] %vm1777, %v1749
      %1783 = vst.msk [vmem:[#allocation2 + $0x28] sm:$0xff] %vm1777, %v1750
      %1784 = vst.msk [vmem:[#allocation2 + $0x30] sm:$0xff] %vm1777, %v1751
      %1785 = vst.msk [vmem:[#allocation2 + $0x38] sm:$0xff] %vm1777, %v1752
      %1786 = vst.msk [vmem:[#allocation2 + $0x40] sm:$0xff] %vm1777, %v1753
      %1787 = vst.msk [vmem:[#allocation2 + $0x48] sm:$0xff] %vm1777, %v1754
      %1788 = vst.msk [vmem:[#allocation2 + $0x50] sm:$0xff] %vm1777, %v1755
      %1789 = vst.msk [vmem:[#allocation2 + $0x58] sm:$0xff] %vm1777, %v1756
      %1790 = vst.msk [vmem:[#allocation2 + $0x60] sm:$0xff] %vm1777, %v1757
      %1791 = vst.msk [vmem:[#allocation2 + $0x68] sm:$0xff] %vm1777, %v1758
      %1792 = vst.msk [vmem:[#allocation2 + $0x70] sm:$0xff] %vm1777, %v1759
      %1793 = vst.msk [vmem:[#allocation2 + $0x78] sm:$0xff] %vm1777, %v1760
      %1794 = vst.msk [vmem:[#allocation2 + $0x80] sm:$0xff] %vm1777, %v1761
      %1795 = vst.msk [vmem:[#allocation2 + $0x88] sm:$0xff] %vm1777, %v1762
      %1796 = vst.msk [vmem:[#allocation2 + $0x90] sm:$0xff] %vm1777, %v1763
      %1797 = vst.msk [vmem:[#allocation2 + $0x98] sm:$0xff] %vm1777, %v1764
      %1798 = vst.msk [vmem:[#allocation2 + $0xa0] sm:$0xff] %vm1777, %v1765
      %1799 = vst.msk [vmem:[#allocation2 + $0xa8] sm:$0xff] %vm1777, %v1766
      %1800 = vst.msk [vmem:[#allocation2 + $0xb0] sm:$0xff] %vm1777, %v1767
      %1801 = vst.msk [vmem:[#allocation2 + $0xb8] sm:$0xff] %vm1777, %v1768
      %1802 = vst.msk [vmem:[#allocation2 + $0xc0] sm:$0xff] %vm1777, %v1769
      %1803 = vst.msk [vmem:[#allocation2 + $0xc8] sm:$0xff] %vm1777, %v1770
      %1804 = vst.msk [vmem:[#allocation2 + $0xd0] sm:$0xff] %vm1777, %v1771
      %1805 = vst.msk [vmem:[#allocation2 + $0xd8] sm:$0xff] %vm1777, %v1772
      %1806 = vst.msk [vmem:[#allocation2 + $0xe0] sm:$0xff] %vm1777, %v1773
      %1807 = vst.msk [vmem:[#allocation2 + $0xe8] sm:$0xff] %vm1777, %v1774
      %1808 = vst.msk [vmem:[#allocation2 + $0xf0] sm:$0xff] %vm1777, %v1775
      %1809 = vst.msk [vmem:[#allocation2 + $0xf8] sm:$0xff] %vm1777, %v1776
      // Predicated region
      $region37: #{forward.3} parent=31 // pred_check
        %p1810 = pneg %p255
      $region38: #{forward.3} parent=31 // pred_check_branch
        %1812 = sbr.rel (%p1810) target = $region40
      $region39: #{forward.3} parent=31 // pred_region
        %v1813 = vld [vmem:[#allocation2] sm:$0xff]
        %v1814 = vld [vmem:[#allocation2 + $0x8] sm:$0xff]
        %v1815 = vld [vmem:[#allocation2 + $0x10] sm:$0xff]
        %v1816 = vld [vmem:[#allocation2 + $0x18] sm:$0xff]
        %v1817 = vld [vmem:[#allocation2 + $0x20] sm:$0xff]
        %v1818 = vld [vmem:[#allocation2 + $0x28] sm:$0xff]
        %v1819 = vld [vmem:[#allocation2 + $0x30] sm:$0xff]
        %v1820 = vld [vmem:[#allocation2 + $0x38] sm:$0xff]
        %v1821 = vld [vmem:[#allocation2 + $0x40] sm:$0xff]
        %v1822 = vld [vmem:[#allocation2 + $0x48] sm:$0xff]
        %v1823 = vld [vmem:[#allocation2 + $0x50] sm:$0xff]
        %v1824 = vld [vmem:[#allocation2 + $0x58] sm:$0xff]
        %v1825 = vld [vmem:[#allocation2 + $0x60] sm:$0xff]
        %v1826 = vld [vmem:[#allocation2 + $0x68] sm:$0xff]
        %v1827 = vld [vmem:[#allocation2 + $0x70] sm:$0xff]
        %v1828 = vld [vmem:[#allocation2 + $0x78] sm:$0xff]
        %v1829 = vld [vmem:[#allocation2 + $0x80] sm:$0xff]
        %v1830 = vld [vmem:[#allocation2 + $0x88] sm:$0xff]
        %v1831 = vld [vmem:[#allocation2 + $0x90] sm:$0xff]
        %v1832 = vld [vmem:[#allocation2 + $0x98] sm:$0xff]
        %v1833 = vld [vmem:[#allocation2 + $0xa0] sm:$0xff]
        %v1834 = vld [vmem:[#allocation2 + $0xa8] sm:$0xff]
        %v1835 = vld [vmem:[#allocation2 + $0xb0] sm:$0xff]
        %v1836 = vld [vmem:[#allocation2 + $0xb8] sm:$0xff]
        %v1837 = vld [vmem:[#allocation2 + $0xc0] sm:$0xff]
        %v1838 = vld [vmem:[#allocation2 + $0xc8] sm:$0xff]
        %v1839 = vld [vmem:[#allocation2 + $0xd0] sm:$0xff]
        %v1840 = vld [vmem:[#allocation2 + $0xd8] sm:$0xff]
        %v1841 = vld [vmem:[#allocation2 + $0xe0] sm:$0xff]
        %v1842 = vld [vmem:[#allocation2 + $0xe8] sm:$0xff]
        %v1843 = vld [vmem:[#allocation2 + $0xf0] sm:$0xff]
        %v1844 = vld [vmem:[#allocation2 + $0xf8] sm:$0xff]
        %v1845 = vadd.f32 %v1813, 1e-06
        %v1846 = vadd.f32 %v1814, 1e-06
        %v1847 = vadd.f32 %v1815, 1e-06
        %v1848 = vadd.f32 %v1816, 1e-06
        %v1849 = vadd.f32 %v1817, 1e-06
        %v1850 = vadd.f32 %v1818, 1e-06
        %v1851 = vadd.f32 %v1819, 1e-06
        %v1852 = vadd.f32 %v1820, 1e-06
        %v1853 = vadd.f32 %v1821, 1e-06
        %v1854 = vadd.f32 %v1822, 1e-06
        %v1855 = vadd.f32 %v1823, 1e-06
        %v1856 = vadd.f32 %v1824, 1e-06
        %v1857 = vadd.f32 %v1825, 1e-06
        %v1858 = vadd.f32 %v1826, 1e-06
        %v1859 = vadd.f32 %v1827, 1e-06
        %v1860 = vadd.f32 %v1828, 1e-06
        %v1861 = vadd.f32 %v1829, 1e-06
        %v1862 = vadd.f32 %v1830, 1e-06
        %v1863 = vadd.f32 %v1831, 1e-06
        %v1864 = vadd.f32 %v1832, 1e-06
        %v1865 = vadd.f32 %v1833, 1e-06
        %v1866 = vadd.f32 %v1834, 1e-06
        %v1867 = vadd.f32 %v1835, 1e-06
        %v1868 = vadd.f32 %v1836, 1e-06
        %v1869 = vadd.f32 %v1837, 1e-06
        %v1870 = vadd.f32 %v1838, 1e-06
        %v1871 = vadd.f32 %v1839, 1e-06
        %v1872 = vadd.f32 %v1840, 1e-06
        %v1873 = vadd.f32 %v1841, 1e-06
        %v1874 = vadd.f32 %v1842, 1e-06
        %v1875 = vadd.f32 %v1843, 1e-06
        %v1876 = vadd.f32 %v1844, 1e-06
        %v1877 = vrcp.pop %v1845
        %v1878 = vrcp.pop %v1846
        %v1879 = vrcp.pop %v1847
        %v1880 = vrcp.pop %v1848
        %v1881 = vrcp.pop %v1849
        %v1882 = vrcp.pop %v1850
        %v1883 = vrcp.pop %v1851
        %v1884 = vrcp.pop %v1852
        %v1885 = vrcp.pop %v1853
        %v1886 = vrcp.pop %v1854
        %v1887 = vrcp.pop %v1855
        %v1888 = vrcp.pop %v1856
        %v1889 = vrcp.pop %v1857
        %v1890 = vrcp.pop %v1858
        %v1891 = vrcp.pop %v1859
        %v1892 = vrcp.pop %v1860
        %v1893 = vrcp.pop %v1861
        %v1894 = vrcp.pop %v1862
        %v1895 = vrcp.pop %v1863
        %v1896 = vrcp.pop %v1864
        %v1897 = vrcp.pop %v1865
        %v1898 = vrcp.pop %v1866
        %v1899 = vrcp.pop %v1867
        %v1900 = vrcp.pop %v1868
        %v1901 = vrcp.pop %v1869
        %v1902 = vrcp.pop %v1870
        %v1903 = vrcp.pop %v1871
        %v1904 = vrcp.pop %v1872
        %v1905 = vrcp.pop %v1873
        %v1906 = vrcp.pop %v1874
        %v1907 = vrcp.pop %v1875
        %v1908 = vrcp.pop %v1876
        %1910 = vset.pattern.permute.xlu0 3
        %1911 = vperm.xlu0 %1910, %v1877
        %v1912 = vpop.permute.xlu0 %1911
        %1915 = vset.pattern.permute.xlu0 3
        %1916 = vperm.xlu0 %1915, %v1878
        %v1917 = vpop.permute.xlu0 %1916
        %1920 = vset.pattern.permute.xlu0 3
        %1921 = vperm.xlu0 %1920, %v1879
        %v1922 = vpop.permute.xlu0 %1921
        %1925 = vset.pattern.permute.xlu0 3
        %1926 = vperm.xlu0 %1925, %v1880
        %v1927 = vpop.permute.xlu0 %1926
        %1930 = vset.pattern.permute.xlu0 3
        %1931 = vperm.xlu0 %1930, %v1881
        %v1932 = vpop.permute.xlu0 %1931
        %1935 = vset.pattern.permute.xlu0 3
        %1936 = vperm.xlu0 %1935, %v1882
        %v1937 = vpop.permute.xlu0 %1936
        %1940 = vset.pattern.permute.xlu0 3
        %1941 = vperm.xlu0 %1940, %v1883
        %v1942 = vpop.permute.xlu0 %1941
        %1945 = vset.pattern.permute.xlu0 3
        %1946 = vperm.xlu0 %1945, %v1884
        %v1947 = vpop.permute.xlu0 %1946
        %1950 = vset.pattern.permute.xlu0 3
        %1951 = vperm.xlu0 %1950, %v1885
        %v1952 = vpop.permute.xlu0 %1951
        %1955 = vset.pattern.permute.xlu0 3
        %1956 = vperm.xlu0 %1955, %v1886
        %v1957 = vpop.permute.xlu0 %1956
        %1960 = vset.pattern.permute.xlu0 3
        %1961 = vperm.xlu0 %1960, %v1887
        %v1962 = vpop.permute.xlu0 %1961
        %1965 = vset.pattern.permute.xlu0 3
        %1966 = vperm.xlu0 %1965, %v1888
        %v1967 = vpop.permute.xlu0 %1966
        %1970 = vset.pattern.permute.xlu0 3
        %1971 = vperm.xlu0 %1970, %v1889
        %v1972 = vpop.permute.xlu0 %1971
        %1975 = vset.pattern.permute.xlu0 3
        %1976 = vperm.xlu0 %1975, %v1890
        %v1977 = vpop.permute.xlu0 %1976
        %1980 = vset.pattern.permute.xlu0 3
        %1981 = vperm.xlu0 %1980, %v1891
        %v1982 = vpop.permute.xlu0 %1981
        %1985 = vset.pattern.permute.xlu0 3
        %1986 = vperm.xlu0 %1985, %v1892
        %v1987 = vpop.permute.xlu0 %1986
        %1990 = vset.pattern.permute.xlu0 3
        %1991 = vperm.xlu0 %1990, %v1893
        %v1992 = vpop.permute.xlu0 %1991
        %1995 = vset.pattern.permute.xlu0 3
        %1996 = vperm.xlu0 %1995, %v1894
        %v1997 = vpop.permute.xlu0 %1996
        %2000 = vset.pattern.permute.xlu0 3
        %2001 = vperm.xlu0 %2000, %v1895
        %v2002 = vpop.permute.xlu0 %2001
        %2005 = vset.pattern.permute.xlu0 3
        %2006 = vperm.xlu0 %2005, %v1896
        %v2007 = vpop.permute.xlu0 %2006
        %2010 = vset.pattern.permute.xlu0 3
        %2011 = vperm.xlu0 %2010, %v1897
        %v2012 = vpop.permute.xlu0 %2011
        %2015 = vset.pattern.permute.xlu0 3
        %2016 = vperm.xlu0 %2015, %v1898
        %v2017 = vpop.permute.xlu0 %2016
        %2020 = vset.pattern.permute.xlu0 3
        %2021 = vperm.xlu0 %2020, %v1899
        %v2022 = vpop.permute.xlu0 %2021
        %2025 = vset.pattern.permute.xlu0 3
        %2026 = vperm.xlu0 %2025, %v1900
        %v2027 = vpop.permute.xlu0 %2026
        %2030 = vset.pattern.permute.xlu0 3
        %2031 = vperm.xlu0 %2030, %v1901
        %v2032 = vpop.permute.xlu0 %2031
        %2035 = vset.pattern.permute.xlu0 3
        %2036 = vperm.xlu0 %2035, %v1902
        %v2037 = vpop.permute.xlu0 %2036
        %2040 = vset.pattern.permute.xlu0 3
        %2041 = vperm.xlu0 %2040, %v1903
        %v2042 = vpop.permute.xlu0 %2041
        %2045 = vset.pattern.permute.xlu0 3
        %2046 = vperm.xlu0 %2045, %v1904
        %v2047 = vpop.permute.xlu0 %2046
        %2050 = vset.pattern.permute.xlu0 3
        %2051 = vperm.xlu0 %2050, %v1905
        %v2052 = vpop.permute.xlu0 %2051
        %2055 = vset.pattern.permute.xlu0 3
        %2056 = vperm.xlu0 %2055, %v1906
        %v2057 = vpop.permute.xlu0 %2056
        %2060 = vset.pattern.permute.xlu0 3
        %2061 = vperm.xlu0 %2060, %v1907
        %v2062 = vpop.permute.xlu0 %2061
        %2065 = vset.pattern.permute.xlu0 3
        %2066 = vperm.xlu0 %2065, %v1908
        %v2067 = vpop.permute.xlu0 %2066
        %v2069 = vmul.f32 %v1813, %v1912
        %v2070 = vmul.f32 %v1814, %v1917
        %v2071 = vmul.f32 %v1815, %v1922
        %v2072 = vmul.f32 %v1816, %v1927
        %v2073 = vmul.f32 %v1817, %v1932
        %v2074 = vmul.f32 %v1818, %v1937
        %v2075 = vmul.f32 %v1819, %v1942
        %v2076 = vmul.f32 %v1820, %v1947
        %v2077 = vmul.f32 %v1821, %v1952
        %v2078 = vmul.f32 %v1822, %v1957
        %v2079 = vmul.f32 %v1823, %v1962
        %v2080 = vmul.f32 %v1824, %v1967
        %v2081 = vmul.f32 %v1825, %v1972
        %v2082 = vmul.f32 %v1826, %v1977
        %v2083 = vmul.f32 %v1827, %v1982
        %v2084 = vmul.f32 %v1828, %v1987
        %v2085 = vmul.f32 %v1829, %v1992
        %v2086 = vmul.f32 %v1830, %v1997
        %v2087 = vmul.f32 %v1831, %v2002
        %v2088 = vmul.f32 %v1832, %v2007
        %v2089 = vmul.f32 %v1833, %v2012
        %v2090 = vmul.f32 %v1834, %v2017
        %v2091 = vmul.f32 %v1835, %v2022
        %v2092 = vmul.f32 %v1836, %v2027
        %v2093 = vmul.f32 %v1837, %v2032
        %v2094 = vmul.f32 %v1838, %v2037
        %v2095 = vmul.f32 %v1839, %v2042
        %v2096 = vmul.f32 %v1840, %v2047
        %v2097 = vmul.f32 %v1841, %v2052
        %v2098 = vmul.f32 %v1842, %v2057
        %v2099 = vmul.f32 %v1843, %v2062
        %v2100 = vmul.f32 %v1844, %v2067
        %vm2101 = vcmask 23552
        %2102 = vst.msk [vmem:[%s252] sm:$0xff] %vm2101, %v2069
        %2103 = vst.msk [vmem:[%s252 + $0x8] sm:$0xff] %vm2101, %v2070
        %2104 = vst.msk [vmem:[%s252 + $0x10] sm:$0xff] %vm2101, %v2071
        %2105 = vst.msk [vmem:[%s252 + $0x18] sm:$0xff] %vm2101, %v2072
        %2106 = vst.msk [vmem:[%s252 + $0x20] sm:$0xff] %vm2101, %v2073
        %2107 = vst.msk [vmem:[%s252 + $0x28] sm:$0xff] %vm2101, %v2074
        %2108 = vst.msk [vmem:[%s252 + $0x30] sm:$0xff] %vm2101, %v2075
        %2109 = vst.msk [vmem:[%s252 + $0x38] sm:$0xff] %vm2101, %v2076
        %2110 = vst.msk [vmem:[%s252 + $0x40] sm:$0xff] %vm2101, %v2077
        %2111 = vst.msk [vmem:[%s252 + $0x48] sm:$0xff] %vm2101, %v2078
        %2112 = vst.msk [vmem:[%s252 + $0x50] sm:$0xff] %vm2101, %v2079
        %2113 = vst.msk [vmem:[%s252 + $0x58] sm:$0xff] %vm2101, %v2080
        %2114 = vst.msk [vmem:[%s252 + $0x60] sm:$0xff] %vm2101, %v2081
        %2115 = vst.msk [vmem:[%s252 + $0x68] sm:$0xff] %vm2101, %v2082
        %2116 = vst.msk [vmem:[%s252 + $0x70] sm:$0xff] %vm2101, %v2083
        %2117 = vst.msk [vmem:[%s252 + $0x78] sm:$0xff] %vm2101, %v2084
        %2118 = vst.msk [vmem:[%s252 + $0x80] sm:$0xff] %vm2101, %v2085
        %2119 = vst.msk [vmem:[%s252 + $0x88] sm:$0xff] %vm2101, %v2086
        %2120 = vst.msk [vmem:[%s252 + $0x90] sm:$0xff] %vm2101, %v2087
        %2121 = vst.msk [vmem:[%s252 + $0x98] sm:$0xff] %vm2101, %v2088
        %2122 = vst.msk [vmem:[%s252 + $0xa0] sm:$0xff] %vm2101, %v2089
        %2123 = vst.msk [vmem:[%s252 + $0xa8] sm:$0xff] %vm2101, %v2090
        %2124 = vst.msk [vmem:[%s252 + $0xb0] sm:$0xff] %vm2101, %v2091
        %2125 = vst.msk [vmem:[%s252 + $0xb8] sm:$0xff] %vm2101, %v2092
        %2126 = vst.msk [vmem:[%s252 + $0xc0] sm:$0xff] %vm2101, %v2093
        %2127 = vst.msk [vmem:[%s252 + $0xc8] sm:$0xff] %vm2101, %v2094
        %2128 = vst.msk [vmem:[%s252 + $0xd0] sm:$0xff] %vm2101, %v2095
        %2129 = vst.msk [vmem:[%s252 + $0xd8] sm:$0xff] %vm2101, %v2096
        %2130 = vst.msk [vmem:[%s252 + $0xe0] sm:$0xff] %vm2101, %v2097
        %2131 = vst.msk [vmem:[%s252 + $0xe8] sm:$0xff] %vm2101, %v2098
        %2132 = vst.msk [vmem:[%s252 + $0xf0] sm:$0xff] %vm2101, %v2099
        %2133 = vst.msk [vmem:[%s252 + $0xf8] sm:$0xff] %vm2101, %v2100
        %v2134 = vmax.f32 %v1813, 0.0
        %v2135 = vmax.f32 %v1814, 0.0
        %v2136 = vmax.f32 %v1815, 0.0
        %v2137 = vmax.f32 %v1816, 0.0
        %v2138 = vmax.f32 %v1817, 0.0
        %v2139 = vmax.f32 %v1818, 0.0
        %v2140 = vmax.f32 %v1819, 0.0
        %v2141 = vmax.f32 %v1820, 0.0
        %v2142 = vmax.f32 %v1821, 0.0
        %v2143 = vmax.f32 %v1822, 0.0
        %v2144 = vmax.f32 %v1823, 0.0
        %v2145 = vmax.f32 %v1824, 0.0
        %v2146 = vmax.f32 %v1825, 0.0
        %v2147 = vmax.f32 %v1826, 0.0
        %v2148 = vmax.f32 %v1827, 0.0
        %v2149 = vmax.f32 %v1828, 0.0
        %v2150 = vmax.f32 %v1829, 0.0
        %v2151 = vmax.f32 %v1830, 0.0
        %v2152 = vmax.f32 %v1831, 0.0
        %v2153 = vmax.f32 %v1832, 0.0
        %v2154 = vmax.f32 %v1833, 0.0
        %v2155 = vmax.f32 %v1834, 0.0
        %v2156 = vmax.f32 %v1835, 0.0
        %v2157 = vmax.f32 %v1836, 0.0
        %v2158 = vmax.f32 %v1837, 0.0
        %v2159 = vmax.f32 %v1838, 0.0
        %v2160 = vmax.f32 %v1839, 0.0
        %v2161 = vmax.f32 %v1840, 0.0
        %v2162 = vmax.f32 %v1841, 0.0
        %v2163 = vmax.f32 %v1842, 0.0
        %v2164 = vmax.f32 %v1843, 0.0
        %v2165 = vmax.f32 %v1844, 0.0
        %v2166 = vmin.f32 %v2134, 1.0
        %v2167 = vmin.f32 %v2135, 1.0
        %v2168 = vmin.f32 %v2136, 1.0
        %v2169 = vmin.f32 %v2137, 1.0
        %v2170 = vmin.f32 %v2138, 1.0
        %v2171 = vmin.f32 %v2139, 1.0
        %v2172 = vmin.f32 %v2140, 1.0
        %v2173 = vmin.f32 %v2141, 1.0
        %v2174 = vmin.f32 %v2142, 1.0
        %v2175 = vmin.f32 %v2143, 1.0
        %v2176 = vmin.f32 %v2144, 1.0
        %v2177 = vmin.f32 %v2145, 1.0
        %v2178 = vmin.f32 %v2146, 1.0
        %v2179 = vmin.f32 %v2147, 1.0
        %v2180 = vmin.f32 %v2148, 1.0
        %v2181 = vmin.f32 %v2149, 1.0
        %v2182 = vmin.f32 %v2150, 1.0
        %v2183 = vmin.f32 %v2151, 1.0
        %v2184 = vmin.f32 %v2152, 1.0
        %v2185 = vmin.f32 %v2153, 1.0
        %v2186 = vmin.f32 %v2154, 1.0
        %v2187 = vmin.f32 %v2155, 1.0
        %v2188 = vmin.f32 %v2156, 1.0
        %v2189 = vmin.f32 %v2157, 1.0
        %v2190 = vmin.f32 %v2158, 1.0
        %v2191 = vmin.f32 %v2159, 1.0
        %v2192 = vmin.f32 %v2160, 1.0
        %v2193 = vmin.f32 %v2161, 1.0
        %v2194 = vmin.f32 %v2162, 1.0
        %v2195 = vmin.f32 %v2163, 1.0
        %v2196 = vmin.f32 %v2164, 1.0
        %v2197 = vmin.f32 %v2165, 1.0
        %vm2198 = vcmask 31768
        %2199 = vst.msk [vmem:[%s252] sm:$0xff] %vm2198, %v2166
        %2200 = vst.msk [vmem:[%s252 + $0x8] sm:$0xff] %vm2198, %v2167
        %2201 = vst.msk [vmem:[%s252 + $0x10] sm:$0xff] %vm2198, %v2168
        %2202 = vst.msk [vmem:[%s252 + $0x18] sm:$0xff] %vm2198, %v2169
        %2203 = vst.msk [vmem:[%s252 + $0x20] sm:$0xff] %vm2198, %v2170
        %2204 = vst.msk [vmem:[%s252 + $0x28] sm:$0xff] %vm2198, %v2171
        %2205 = vst.msk [vmem:[%s252 + $0x30] sm:$0xff] %vm2198, %v2172
        %2206 = vst.msk [vmem:[%s252 + $0x38] sm:$0xff] %vm2198, %v2173
        %2207 = vst.msk [vmem:[%s252 + $0x40] sm:$0xff] %vm2198, %v2174
        %2208 = vst.msk [vmem:[%s252 + $0x48] sm:$0xff] %vm2198, %v2175
        %2209 = vst.msk [vmem:[%s252 + $0x50] sm:$0xff] %vm2198, %v2176
        %2210 = vst.msk [vmem:[%s252 + $0x58] sm:$0xff] %vm2198, %v2177
        %2211 = vst.msk [vmem:[%s252 + $0x60] sm:$0xff] %vm2198, %v2178
        %2212 = vst.msk [vmem:[%s252 + $0x68] sm:$0xff] %vm2198, %v2179
        %2213 = vst.msk [vmem:[%s252 + $0x70] sm:$0xff] %vm2198, %v2180
        %2214 = vst.msk [vmem:[%s252 + $0x78] sm:$0xff] %vm2198, %v2181
        %2215 = vst.msk [vmem:[%s252 + $0x80] sm:$0xff] %vm2198, %v2182
        %2216 = vst.msk [vmem:[%s252 + $0x88] sm:$0xff] %vm2198, %v2183
        %2217 = vst.msk [vmem:[%s252 + $0x90] sm:$0xff] %vm2198, %v2184
        %2218 = vst.msk [vmem:[%s252 + $0x98] sm:$0xff] %vm2198, %v2185
        %2219 = vst.msk [vmem:[%s252 + $0xa0] sm:$0xff] %vm2198, %v2186
        %2220 = vst.msk [vmem:[%s252 + $0xa8] sm:$0xff] %vm2198, %v2187
        %2221 = vst.msk [vmem:[%s252 + $0xb0] sm:$0xff] %vm2198, %v2188
        %2222 = vst.msk [vmem:[%s252 + $0xb8] sm:$0xff] %vm2198, %v2189
        %2223 = vst.msk [vmem:[%s252 + $0xc0] sm:$0xff] %vm2198, %v2190
        %2224 = vst.msk [vmem:[%s252 + $0xc8] sm:$0xff] %vm2198, %v2191
        %2225 = vst.msk [vmem:[%s252 + $0xd0] sm:$0xff] %vm2198, %v2192
        %2226 = vst.msk [vmem:[%s252 + $0xd8] sm:$0xff] %vm2198, %v2193
        %2227 = vst.msk [vmem:[%s252 + $0xe0] sm:$0xff] %vm2198, %v2194
        %2228 = vst.msk [vmem:[%s252 + $0xe8] sm:$0xff] %vm2198, %v2195
        %2229 = vst.msk [vmem:[%s252 + $0xf0] sm:$0xff] %vm2198, %v2196
        %2230 = vst.msk [vmem:[%s252 + $0xf8] sm:$0xff] %vm2198, %v2197
      $region40: #{forward.3} parent=31 // pred_fallthru
        _
      %s2231 = smul.u32 32, %s21
      %p2232 = scmp.lt.s32.totalorder %s20, 1
      %s2233 = scalar_select %p2232, %s20, 1
      %p2234 = scmp.lt.s32.totalorder %s2231, 31
      %s2235 = scalar_select %p2234, %s2231, 31
      %s2236 = smul.addr %s2233, 32
      %s2237 = sadd.s32 %s2235, %s2236
      %s2238 = smul.addr %s2237, 8
      %s2239 = scalar_lea.vmem %s3, %s2238
      // Predicated region
      $region41: #{forward.3} parent=31 // pred_check
        %p2240 = pneg %p131
      $region42: #{forward.3} parent=31 // pred_check_branch
        %2242 = sbr.rel (%p2240) target = $region44
      $region43: #{forward.3} parent=31 // pred_region
        %s2243 = smul.u32 32, %s21
      $region44: #{forward.3} parent=31 // pred_fallthru
        _
    $region32: #{forward.3} parent=5 // pred_fallthru
      _
    %p2244 = scmp.le.s32.totalorder 2, %s10
    // Predicated region
    $region45: #{forward.3} parent=5 // pred_check
      %p2245 = pneg %p2244
    $region46: #{forward.3} parent=5 // pred_check_branch
      %2247 = sbr.rel (%p2245) target = $region48
    $region47: #{forward.3} parent=5 // pred_region
      %s2248 = ssub.s32 %s10, 2
      // Predicated region
      $region49: #{forward.3} parent=47 // pred_check
        %p2249 = pneg %p137
      $region50: #{forward.3} parent=47 // pred_check_branch
        %2251 = sbr.rel (%p2249) target = $region52
      $region51: #{forward.3} parent=47 // pred_region
        %s2252 = smul.u32 32, %s24
        %p2253 = scmp.lt.s32.totalorder %s23, 1
        %s2254 = scalar_select %p2253, %s23, 1
        %p2255 = scmp.lt.s32.totalorder %s2252, 31
        %s2256 = scalar_select %p2255, %s2252, 31
        %s2257 = smul.addr %s2254, 32
        %s2258 = sadd.s32 %s2256, %s2257
        %s2259 = smul.addr %s2258, 8
        %s2260 = scalar_lea.vmem %s3, %s2259
      $region52: #{forward.3} parent=47 // pred_fallthru
        _
    $region48: #{forward.3} parent=5 // pred_fallthru
      _
  $region6: #{forward.3} parent=0 // loop_footer
    %s14 = sadd.s32 1, %s10
  $region7: #{forward.3} parent=0 // loop_footer_branch
    %9 = sbr.rel target = $region3
  $region8: #{forward.3} parent=0 // loop_exit
    _

</llo_original>
